<compile_context>
chip_gen: v7x
topology: tpu7x:2x2x1
jax: 0.10.0
libtpu: 0.0.40
codegen_flags: <defaults>
</compile_context>

<pallas_src>
import jax
import jax.numpy as jnp
from jax import lax
from jax.experimental import pallas as pl
from jax.experimental.pallas import tpu as pltpu

EPS = 1e-5


def _temporal_mix(a, wt, Bt, L):
    """y[b*L + l, c] = sum_j wt[l, j] * a[b*L + j, c] for an (Bt*L, F) slab.

    Unrolled VPU broadcast-accumulate (L is tiny) instead of a block-diagonal
    kron(I_Bt, Wt) MXU matmul: no wasted O((Bt*L)^2) FLOPs / weight bytes and
    the batch tile is no longer capped by a single MXU pass.
    """
    F = a.shape[1]
    a3 = a.reshape(Bt, L, F)
    y3 = jnp.zeros((Bt, L, F), jnp.float32)
    for j in range(L):                                    # static, unrolled
        y3 = y3 + wt[:, j:j + 1][None] * a3[:, j:j + 1, :]
    return a3, y3


def _layer_norm(v3, gamma, beta):
    """nn.LayerNorm(normalized_shape=[L, F]) over (Bt, L, F); two-pass stats."""
    n = v3.shape[1] * v3.shape[2]
    mean = jnp.sum(jnp.sum(v3, axis=2, keepdims=True), axis=1, keepdims=True) / n
    d = v3 - mean
    var = jnp.sum(jnp.sum(d * d, axis=2, keepdims=True), axis=1, keepdims=True) / n
    return d * lax.rsqrt(var + EPS) * gamma[None] + beta[None]


def mixer_stack_kernel(
    x_ref,    # (Bt*L, C0)      batch tile, flattened (batch, time) rows, f32
    wt0_ref,  # (L, L)          block-0 temporal weight, f32
    wf0_ref,  # (C0, H+O)       block-0 fused [linear1 | res_linear] weight
    bf0_ref,  # (1, H+O)        block-0 fused [b1 | br] bias, f32
    w20_ref,  # (H, O)          block-0 linear2 weight
    pA0_ref,  # (3, L, C0)      [bt bcast, LN1 gamma, LN1 beta], f32
    pB0_ref,  # (3, L, O)       [LN2 gamma, LN2 beta, b2 bcast], f32
    wtR_ref,  # (Nr, L, L)      extra-block temporal weights, f32
    w1R_ref,  # (Nr, H, H)      extra-block linear1 weights
    w2R_ref,  # (Nr, H, H)      extra-block linear2 weights
    pR_ref,   # (Nr, 7, L, H)   [bt, LN1 g, LN1 b, b1, b2, LN2 g, LN2 b], f32
    o_ref,    # (Bt*L, O)
):
    BtL, C0 = x_ref.shape
    L = wt0_ref.shape[0]
    Bt = BtL // L
    H = w20_ref.shape[0]
    O = o_ref.shape[1]
    n_extra = wtR_ref.shape[0]
    cdt = wf0_ref.dtype          # MXU operand dtype (bf16 by default)

    x = x_ref[...]
    pA0 = pA0_ref[...]
    pB0 = pB0_ref[...]

    # ---- block 0: TemporalResBlock (width C0) -----------------------------
    x3, y3 = _temporal_mix(x, wt0_ref[...], Bt, L)
    y3 = jnp.maximum(y3 + pA0[0][None], 0.0)                  # + bias, relu
    vn = _layer_norm(x3 + y3, pA0[1], pA0[2]).reshape(BtL, C0)

    # ---- block 0: FeaturalResBlock (C0 -> H, res_linear branch fused) -----
    # One (Bt*L, C0) @ (C0, H+O) GEMM feeds both linear1 and res_linear.
    f = jnp.dot(vn.astype(cdt), wf0_ref[...],
                preferred_element_type=jnp.float32) + bf0_ref[...]
    h = jnp.maximum(f[:, :H], 0.0)                            # linear1 + relu
    res = f[:, H:]                                            # res_linear
    z = jnp.dot(h.astype(cdt), w20_ref[...],
                preferred_element_type=jnp.float32)
    u3 = (res + z).reshape(Bt, L, O) + pB0[2][None]           # + b2
    act = _layer_norm(u3, pB0[0], pB0[1]).reshape(BtL, O)

    # ---- blocks 1..n-1 (width H, identity featural residual) --------------
    for i in range(n_extra):                                  # static, unrolled
        p = pR_ref[i]                                         # (7, L, H)
        a3, y3 = _temporal_mix(act, wtR_ref[i], Bt, L)
        y3 = jnp.maximum(y3 + p[0][None], 0.0)
        vn = _layer_norm(a3 + y3, p[1], p[2]).reshape(BtL, H)
        h = jnp.maximum(
            jnp.dot(vn.astype(cdt), w1R_ref[i],
                    preferred_element_type=jnp.float32) + p[3][0:1, :], 0.0)
        z = jnp.dot(h.astype(cdt), w2R_ref[i],
                    preferred_element_type=jnp.float32)
        u3 = (vn + z).reshape(Bt, L, H) + p[4][None]
        act = _layer_norm(u3, p[5], p[6]).reshape(BtL, H)

    o_ref[...] = act             # lane-dense store (O is a multiple of 128)


def prepare_mixer_stack_params(block0, extra, *, matmul_dtype=jnp.bfloat16):
    """One-time parameter packing, hoisted out of the forward path.

    block0: first MixerBlock (input_size C0 = 2*hidden, output = hidden,
            res_linear present).  extra: subsequent blocks (hidden -> hidden,
            identity featural residual).  matmul_dtype: MXU operand dtype
    (bf16 default); LayerNorm / relu / bias math stays in f32.
    """
    assert len(extra) >= 1, "fused stack expects n_block >= 2"
    L = block0["wt"].shape[0]
    C0, H = block0["w1"].shape
    O = block0["w2"].shape[1]

    wf0 = jnp.concatenate([block0["w1"], block0["wr"]], axis=1)      # (C0, H+O)
    bf0 = jnp.concatenate([block0["b1"], block0["br"]], axis=1)      # (1, H+O)
    pA0 = jnp.stack([jnp.broadcast_to(block0["bt"], (L, C0)),
                     block0["gamma1"], block0["beta1"]])             # (3, L, C0)
    pB0 = jnp.stack([block0["gamma2"], block0["beta2"],
                     jnp.broadcast_to(block0["b2"], (L, O))])        # (3, L, O)
    wtR = jnp.stack([b["wt"] for b in extra])                        # (Nr, L, L)
    w1R = jnp.stack([b["w1"] for b in extra])                        # (Nr, H, H)
    w2R = jnp.stack([b["w2"] for b in extra])                        # (Nr, H, H)
    pR = jnp.stack([
        jnp.stack([jnp.broadcast_to(b["bt"], (L, H)),
                   b["gamma1"], b["beta1"],
                   jnp.broadcast_to(b["b1"], (L, H)),
                   jnp.broadcast_to(b["b2"], (L, H)),
                   b["gamma2"], b["beta2"]])
        for b in extra])                                             # (Nr,7,L,H)
    return {
        "L": L, "C0": C0, "H": H, "O": O,
        "wt0": block0["wt"],
        "wf0": wf0.astype(matmul_dtype),
        "bf0": bf0,
        "w20": block0["w2"].astype(matmul_dtype),
        "pA0": pA0, "pB0": pB0,
        "wtR": wtR,
        "w1R": w1R.astype(matmul_dtype),
        "w2R": w2R.astype(matmul_dtype),
        "pR": pR,
    }


def mixer_stack(x, prep, *, block_b=16):
    """x: (B, L, C0) f32 -> (B, L, H) f32. Eval-mode fused MixerBlock stack.

    block_b batch elements per grid step.  Aim for block_b*L >= 128 (v5e MXU
    M-fill) or >= 256 (v6e/v7x) while keeping grid = B//block_b >= 2 (ideally
    >= 4) so x-block DMA pipelines / megacore can shard steps.  The per-step
    VMEM footprint is ~1 MiB at these widths, far under the 32 MiB scoped
    default on every generation, so no explicit vmem_limit_bytes is needed.
    """
    B, L, C0 = x.shape
    H, O = prep["H"], prep["O"]
    assert L == prep["L"] and C0 == prep["C0"]
    assert O == H, "stacked blocks require output_size == hidden_size"
    assert L % 8 == 0, "input_len must be a multiple of the f32 sublane count"
    assert C0 % 128 == 0 and H % 128 == 0, "feature widths must be lane multiples"
    Bt = min(block_b, B)
    assert B % Bt == 0, "batch must be divisible by the batch tile"
    assert (Bt * L) % 8 == 0
    n_extra = prep["wtR"].shape[0]
    grid = (B // Bt,)

    x2 = x.reshape(B * L, C0)

    def const(shape):
        n = len(shape)
        return pl.BlockSpec(shape, lambda b, n=n: (0,) * n)

    mm_bytes = jnp.dtype(prep["wf0"].dtype).itemsize
    flops = (2 * B * L * (L * C0 + C0 * (H + O) + H * O)
             + n_extra * 2 * B * L * (L * H + 2 * H * H))
    bytes_accessed = (4 * B * L * (C0 + O)
                      + mm_bytes * (C0 * (H + O) + H * O + n_extra * 2 * H * H)
                      + 4 * ((1 + n_extra) * L * L + (H + O)
                             + 3 * L * (C0 + O) + n_extra * 7 * L * H))

    out2 = pl.pallas_call(
        mixer_stack_kernel,
        out_shape=jax.ShapeDtypeStruct((B * L, O), jnp.float32),
        grid_spec=pltpu.PrefetchScalarGridSpec(
            num_scalar_prefetch=0,
            grid=grid,
            in_specs=[
                pl.BlockSpec((Bt * L, C0), lambda b: (b, 0)),   # x batch tile
                const((L, L)),                                  # wt0
                const((C0, H + O)),                             # fused w1 | wr
                const((1, H + O)),                              # fused b1 | br
                const((H, O)),                                  # w20
                const((3, L, C0)),                              # pA0
                const((3, L, O)),                               # pB0
                const((n_extra, L, L)),                         # wtR
                const((n_extra, H, H)),                         # w1R
                const((n_extra, H, H)),                         # w2R
                const((n_extra, 7, L, H)),                      # pR
            ],
            out_specs=pl.BlockSpec((Bt * L, O), lambda b: (b, 0)),
        ),
        compiler_params=pltpu.CompilerParams(
            dimension_semantics=("parallel",)),
        cost_estimate=pl.CostEstimate(
            flops=int(flops),
            transcendentals=int(2 * B * (1 + n_extra)),
            bytes_accessed=int(bytes_accessed)),
    )(x2, prep["wt0"], prep["wf0"], prep["bf0"], prep["w20"],
      prep["pA0"], prep["pB0"], prep["wtR"], prep["w1R"], prep["w2R"],
      prep["pR"])
    return out2.reshape(B, L, O)


# ----------------------------- pure-JAX reference ---------------------------

def _temporal_res_ref(x, p):
    y = jnp.einsum("lj,bjc->blc", p["wt"], x) + p["bt"][None]
    y = jnp.maximum(y, 0.0)
    v = x + y
    mean = jnp.mean(v, axis=(1, 2), keepdims=True)
    var = jnp.mean((v - mean) ** 2, axis=(1, 2), keepdims=True)
    return (v - mean) * lax.rsqrt(var + EPS) * p["gamma1"] + p["beta1"]


def mixer_stack_ref(x, block0, extra):
    """Pure-JAX (f32) reference mirroring the PyTorch modules (eval mode)."""
    v = _temporal_res_ref(x, block0)
    res = v @ block0["wr"] + block0["br"]
    h = jnp.maximum(v @ block0["w1"] + block0["b1"], 0.0)
    z = h @ block0["w2"] + block0["b2"]
    u = res + z
    mean = jnp.mean(u, axis=(1, 2), keepdims=True)
    var = jnp.mean((u - mean) ** 2, axis=(1, 2), keepdims=True)
    act = (u - mean) * lax.rsqrt(var + EPS) * block0["gamma2"] + block0["beta2"]
    for p in extra:
        v = _temporal_res_ref(act, p)
        h = jnp.maximum(v @ p["w1"] + p["b1"], 0.0)
        z = h @ p["w2"] + p["b2"]
        u = v + z                                  # res_linear is None (in==out)
        mean = jnp.mean(u, axis=(1, 2), keepdims=True)
        var = jnp.mean((u - mean) ** 2, axis=(1, 2), keepdims=True)
        act = (u - mean) * lax.rsqrt(var + EPS) * p["gamma2"] + p["beta2"]
    return act


def init_block_params(key, L, C, H, O, *, with_res_linear):
    ks = jax.random.split(key, 12)
    s = 0.1
    p = {
        "wt": s * jax.random.normal(ks[0], (L, L), jnp.float32),
        "bt": s * jax.random.normal(ks[1], (L, 1), jnp.float32),
        "gamma1": 1.0 + s * jax.random.normal(ks[2], (L, C), jnp.float32),
        "beta1": s * jax.random.normal(ks[3], (L, C), jnp.float32),
        "w1": s * jax.random.normal(ks[4], (C, H), jnp.float32),
        "b1": s * jax.random.normal(ks[5], (1, H), jnp.float32),
        "w2": s * jax.random.normal(ks[6], (H, O), jnp.float32),
        "b2": s * jax.random.normal(ks[7], (1, O), jnp.float32),
        "gamma2": 1.0 + s * jax.random.normal(ks[8], (L, O), jnp.float32),
        "beta2": s * jax.random.normal(ks[9], (L, O), jnp.float32),
    }
    if with_res_linear:
        p["wr"] = s * jax.random.normal(ks[10], (C, O), jnp.float32)
        p["br"] = s * jax.random.normal(ks[11], (1, O), jnp.float32)
    return p


if __name__ == "__main__":
    # TSMixer mixer-block stack at the module's default widths:
    #   prediction_length L = 8, hidden_size = 128, n_block = 2
    #   (block 0 input = 2*hidden = 256 from the past|future concat,
    #    block 1 input = hidden = 128).
    # batch = 64 with block_b = 16 -> Bt*L = 128 GEMM rows, grid = 4.
    B, L, H = 64, 8, 128
    C0, O = 2 * H, H
    n_block = 2
    key = jax.random.PRNGKey(0)
    kx, k0, k1 = jax.random.split(key, 3)
    x = jax.random.normal(kx, (B, L, C0), jnp.float32)
    block0 = init_block_params(k0, L, C0, H, O, with_res_linear=True)
    extra = [init_block_params(k, L, H, H, H, with_res_linear=False)
             for k in jax.random.split(k1, n_block - 1)]

    ref = mixer_stack_ref(x, block0, extra)

    # f32-operand path: strict check against the pure-JAX reference.
    prep32 = prepare_mixer_stack_params(block0, extra, matmul_dtype=jnp.float32)
    out32 = jax.block_until_ready(mixer_stack(x, prep32, block_b=16))
    assert out32.shape == (B, L, O)
    err32 = float(jnp.max(jnp.abs(out32 - ref)))
    assert jnp.allclose(out32, ref, atol=1e-3, rtol=1e-3), err32

    # bf16-operand path (perf default): looser tolerance for bf16 MXU inputs.
    prep16 = prepare_mixer_stack_params(block0, extra, matmul_dtype=jnp.bfloat16)
    out16 = jax.block_until_ready(mixer_stack(x, prep16, block_b=16))
    err16 = float(jnp.max(jnp.abs(out16 - ref)))
    assert jnp.allclose(out16, ref, atol=5e-2, rtol=5e-2), err16

    print("KERNEL_OK")
</pallas_src>

<mosaic_0001>
module attributes {stable_mosaic.version = 11 : i64} {
  func.func @mixer_stack_kernel(%arg0: i32, %arg1: memref<128x256xf32, #tpu.memory_space<vmem>>, %arg2: memref<8x8xf32, #tpu.memory_space<vmem>>, %arg3: memref<256x256xf32, #tpu.memory_space<vmem>>, %arg4: memref<1x256xf32, #tpu.memory_space<vmem>>, %arg5: memref<128x128xf32, #tpu.memory_space<vmem>>, %arg6: memref<3x8x256xf32, #tpu.memory_space<vmem>>, %arg7: memref<3x8x128xf32, #tpu.memory_space<vmem>>, %arg8: memref<1x8x8xf32, #tpu.memory_space<vmem>>, %arg9: memref<1x128x128xf32, #tpu.memory_space<vmem>>, %arg10: memref<1x128x128xf32, #tpu.memory_space<vmem>>, %arg11: memref<1x7x8x128xf32, #tpu.memory_space<vmem>>, %arg12: memref<128x128xf32, #tpu.memory_space<vmem>>) attributes {dimension_semantics = [#tpu.dimension_semantics<parallel>], iteration_bounds = array<i64: 4>, scalar_prefetch = 0 : i64, scratch_operands = 0 : i64, tpu.core_type = #tpu.core_type<tc>, window_params = [{transform_indices = @transform_0, window_bounds = array<i64: 128, 256>}, {pipeline_mode = #tpu.pipeline_mode<synchronous>, transform_indices = @transform_1, window_bounds = array<i64: 8, 8>}, {pipeline_mode = #tpu.pipeline_mode<synchronous>, transform_indices = @transform_2, window_bounds = array<i64: 256, 256>}, {pipeline_mode = #tpu.pipeline_mode<synchronous>, transform_indices = @transform_3, window_bounds = array<i64: 1, 256>}, {pipeline_mode = #tpu.pipeline_mode<synchronous>, transform_indices = @transform_4, window_bounds = array<i64: 128, 128>}, {pipeline_mode = #tpu.pipeline_mode<synchronous>, transform_indices = @transform_5, window_bounds = array<i64: 3, 8, 256>}, {pipeline_mode = #tpu.pipeline_mode<synchronous>, transform_indices = @transform_6, window_bounds = array<i64: 3, 8, 128>}, {pipeline_mode = #tpu.pipeline_mode<synchronous>, transform_indices = @transform_7, window_bounds = array<i64: 1, 8, 8>}, {pipeline_mode = #tpu.pipeline_mode<synchronous>, transform_indices = @transform_8, window_bounds = array<i64: 1, 128, 128>}, {pipeline_mode = #tpu.pipeline_mode<synchronous>, transform_indices = @transform_9, window_bounds = array<i64: 1, 128, 128>}, {pipeline_mode = #tpu.pipeline_mode<synchronous>, transform_indices = @transform_10, window_bounds = array<i64: 1, 7, 8, 128>}, {transform_indices = @transform_11, window_bounds = array<i64: 128, 128>}]} {
    %c0 = arith.constant 0 : index
    %c0_0 = arith.constant 0 : index
    %0 = vector.load %arg1[%c0, %c0_0] : memref<128x256xf32, #tpu.memory_space<vmem>>, vector<128x256xf32>
    %c0_1 = arith.constant 0 : index
    %c0_2 = arith.constant 0 : index
    %c0_3 = arith.constant 0 : index
    %1 = vector.load %arg6[%c0_1, %c0_2, %c0_3] : memref<3x8x256xf32, #tpu.memory_space<vmem>>, vector<3x8x256xf32>
    %c0_4 = arith.constant 0 : index
    %c0_5 = arith.constant 0 : index
    %c0_6 = arith.constant 0 : index
    %2 = vector.load %arg7[%c0_4, %c0_5, %c0_6] : memref<3x8x128xf32, #tpu.memory_space<vmem>>, vector<3x8x128xf32>
    %c0_7 = arith.constant 0 : index
    %c0_8 = arith.constant 0 : index
    %3 = vector.load %arg2[%c0_7, %c0_8] : memref<8x8xf32, #tpu.memory_space<vmem>>, vector<8x8xf32>
    %4 = vector.shape_cast %0 : vector<128x256xf32> to vector<16x8x256xf32>
    %cst = arith.constant 0.000000e+00 : f32
    %5 = vector.broadcast %cst : f32 to vector<16x8x256xf32>
    %6 = vector.extract_strided_slice %3 {offsets = [0, 0], sizes = [8, 1], strides = [1, 1]} : vector<8x8xf32> to vector<8x1xf32>
    %7 = vector.shape_cast %6 : vector<8x1xf32> to vector<1x8x1xf32>
    %8 = vector.extract_strided_slice %4 {offsets = [0, 0, 0], sizes = [16, 1, 256], strides = [1, 1, 1]} : vector<16x8x256xf32> to vector<16x1x256xf32>
    %9 = vector.broadcast %7 : vector<1x8x1xf32> to vector<16x8x256xf32>
    %10 = vector.broadcast %8 : vector<16x1x256xf32> to vector<16x8x256xf32>
    %11 = arith.mulf %9, %10 : vector<16x8x256xf32>
    %12 = arith.addf %5, %11 : vector<16x8x256xf32>
    %13 = vector.extract_strided_slice %3 {offsets = [0, 1], sizes = [8, 1], strides = [1, 1]} : vector<8x8xf32> to vector<8x1xf32>
    %14 = vector.shape_cast %13 : vector<8x1xf32> to vector<1x8x1xf32>
    %15 = vector.extract_strided_slice %4 {offsets = [0, 1, 0], sizes = [16, 1, 256], strides = [1, 1, 1]} : vector<16x8x256xf32> to vector<16x1x256xf32>
    %16 = vector.broadcast %14 : vector<1x8x1xf32> to vector<16x8x256xf32>
    %17 = vector.broadcast %15 : vector<16x1x256xf32> to vector<16x8x256xf32>
    %18 = arith.mulf %16, %17 : vector<16x8x256xf32>
    %19 = arith.addf %12, %18 : vector<16x8x256xf32>
    %20 = vector.extract_strided_slice %3 {offsets = [0, 2], sizes = [8, 1], strides = [1, 1]} : vector<8x8xf32> to vector<8x1xf32>
    %21 = vector.shape_cast %20 : vector<8x1xf32> to vector<1x8x1xf32>
    %22 = vector.extract_strided_slice %4 {offsets = [0, 2, 0], sizes = [16, 1, 256], strides = [1, 1, 1]} : vector<16x8x256xf32> to vector<16x1x256xf32>
    %23 = vector.broadcast %21 : vector<1x8x1xf32> to vector<16x8x256xf32>
    %24 = vector.broadcast %22 : vector<16x1x256xf32> to vector<16x8x256xf32>
    %25 = arith.mulf %23, %24 : vector<16x8x256xf32>
    %26 = arith.addf %19, %25 : vector<16x8x256xf32>
    %27 = vector.extract_strided_slice %3 {offsets = [0, 3], sizes = [8, 1], strides = [1, 1]} : vector<8x8xf32> to vector<8x1xf32>
    %28 = vector.shape_cast %27 : vector<8x1xf32> to vector<1x8x1xf32>
    %29 = vector.extract_strided_slice %4 {offsets = [0, 3, 0], sizes = [16, 1, 256], strides = [1, 1, 1]} : vector<16x8x256xf32> to vector<16x1x256xf32>
    %30 = vector.broadcast %28 : vector<1x8x1xf32> to vector<16x8x256xf32>
    %31 = vector.broadcast %29 : vector<16x1x256xf32> to vector<16x8x256xf32>
    %32 = arith.mulf %30, %31 : vector<16x8x256xf32>
    %33 = arith.addf %26, %32 : vector<16x8x256xf32>
    %34 = vector.extract_strided_slice %3 {offsets = [0, 4], sizes = [8, 1], strides = [1, 1]} : vector<8x8xf32> to vector<8x1xf32>
    %35 = vector.shape_cast %34 : vector<8x1xf32> to vector<1x8x1xf32>
    %36 = vector.extract_strided_slice %4 {offsets = [0, 4, 0], sizes = [16, 1, 256], strides = [1, 1, 1]} : vector<16x8x256xf32> to vector<16x1x256xf32>
    %37 = vector.broadcast %35 : vector<1x8x1xf32> to vector<16x8x256xf32>
    %38 = vector.broadcast %36 : vector<16x1x256xf32> to vector<16x8x256xf32>
    %39 = arith.mulf %37, %38 : vector<16x8x256xf32>
    %40 = arith.addf %33, %39 : vector<16x8x256xf32>
    %41 = vector.extract_strided_slice %3 {offsets = [0, 5], sizes = [8, 1], strides = [1, 1]} : vector<8x8xf32> to vector<8x1xf32>
    %42 = vector.shape_cast %41 : vector<8x1xf32> to vector<1x8x1xf32>
    %43 = vector.extract_strided_slice %4 {offsets = [0, 5, 0], sizes = [16, 1, 256], strides = [1, 1, 1]} : vector<16x8x256xf32> to vector<16x1x256xf32>
    %44 = vector.broadcast %42 : vector<1x8x1xf32> to vector<16x8x256xf32>
    %45 = vector.broadcast %43 : vector<16x1x256xf32> to vector<16x8x256xf32>
    %46 = arith.mulf %44, %45 : vector<16x8x256xf32>
    %47 = arith.addf %40, %46 : vector<16x8x256xf32>
    %48 = vector.extract_strided_slice %3 {offsets = [0, 6], sizes = [8, 1], strides = [1, 1]} : vector<8x8xf32> to vector<8x1xf32>
    %49 = vector.shape_cast %48 : vector<8x1xf32> to vector<1x8x1xf32>
    %50 = vector.extract_strided_slice %4 {offsets = [0, 6, 0], sizes = [16, 1, 256], strides = [1, 1, 1]} : vector<16x8x256xf32> to vector<16x1x256xf32>
    %51 = vector.broadcast %49 : vector<1x8x1xf32> to vector<16x8x256xf32>
    %52 = vector.broadcast %50 : vector<16x1x256xf32> to vector<16x8x256xf32>
    %53 = arith.mulf %51, %52 : vector<16x8x256xf32>
    %54 = arith.addf %47, %53 : vector<16x8x256xf32>
    %55 = vector.extract_strided_slice %3 {offsets = [0, 7], sizes = [8, 1], strides = [1, 1]} : vector<8x8xf32> to vector<8x1xf32>
    %56 = vector.shape_cast %55 : vector<8x1xf32> to vector<1x8x1xf32>
    %57 = vector.extract_strided_slice %4 {offsets = [0, 7, 0], sizes = [16, 1, 256], strides = [1, 1, 1]} : vector<16x8x256xf32> to vector<16x1x256xf32>
    %58 = vector.broadcast %56 : vector<1x8x1xf32> to vector<16x8x256xf32>
    %59 = vector.broadcast %57 : vector<16x1x256xf32> to vector<16x8x256xf32>
    %60 = arith.mulf %58, %59 : vector<16x8x256xf32>
    %61 = arith.addf %54, %60 : vector<16x8x256xf32>
    %62 = vector.extract_strided_slice %1 {offsets = [0, 0, 0], sizes = [1, 8, 256], strides = [1, 1, 1]} : vector<3x8x256xf32> to vector<1x8x256xf32>
    %63 = vector.shape_cast %62 : vector<1x8x256xf32> to vector<8x256xf32>
    %64 = vector.shape_cast %63 : vector<8x256xf32> to vector<1x8x256xf32>
    %65 = vector.broadcast %64 : vector<1x8x256xf32> to vector<16x8x256xf32>
    %66 = arith.addf %61, %65 : vector<16x8x256xf32>
    %cst_9 = arith.constant 0.000000e+00 : f32
    %67 = vector.broadcast %cst_9 : f32 to vector<16x8x256xf32>
    %68 = arith.maximumf %66, %67 : vector<16x8x256xf32>
    %69 = arith.addf %4, %68 : vector<16x8x256xf32>
    %70 = vector.extract_strided_slice %1 {offsets = [1, 0, 0], sizes = [1, 8, 256], strides = [1, 1, 1]} : vector<3x8x256xf32> to vector<1x8x256xf32>
    %71 = vector.shape_cast %70 : vector<1x8x256xf32> to vector<8x256xf32>
    %72 = vector.extract_strided_slice %1 {offsets = [2, 0, 0], sizes = [1, 8, 256], strides = [1, 1, 1]} : vector<3x8x256xf32> to vector<1x8x256xf32>
    %73 = vector.shape_cast %72 : vector<1x8x256xf32> to vector<8x256xf32>
    %cst_10 = arith.constant dense<0.000000e+00> : vector<16x8xf32>
    %74 = vector.multi_reduction <add>, %69, %cst_10 [2] : vector<16x8x256xf32> to vector<16x8xf32>
    %75 = vector.shape_cast %74 : vector<16x8xf32> to vector<16x8x1xf32>
    %cst_11 = arith.constant dense<0.000000e+00> : vector<16x1xf32>
    %76 = vector.multi_reduction <add>, %75, %cst_11 [1] : vector<16x8x1xf32> to vector<16x1xf32>
    %77 = vector.shape_cast %76 : vector<16x1xf32> to vector<16x1x1xf32>
    %cst_12 = arith.constant 2.048000e+03 : f32
    %78 = vector.broadcast %cst_12 : f32 to vector<16x1x1xf32>
    %79 = arith.divf %77, %78 : vector<16x1x1xf32>
    %80 = vector.broadcast %79 : vector<16x1x1xf32> to vector<16x8x256xf32>
    %81 = arith.subf %69, %80 : vector<16x8x256xf32>
    %82 = arith.mulf %81, %81 : vector<16x8x256xf32>
    %cst_13 = arith.constant dense<0.000000e+00> : vector<16x8xf32>
    %83 = vector.multi_reduction <add>, %82, %cst_13 [2] : vector<16x8x256xf32> to vector<16x8xf32>
    %84 = vector.shape_cast %83 : vector<16x8xf32> to vector<16x8x1xf32>
    %cst_14 = arith.constant dense<0.000000e+00> : vector<16x1xf32>
    %85 = vector.multi_reduction <add>, %84, %cst_14 [1] : vector<16x8x1xf32> to vector<16x1xf32>
    %86 = vector.shape_cast %85 : vector<16x1xf32> to vector<16x1x1xf32>
    %cst_15 = arith.constant 2.048000e+03 : f32
    %87 = vector.broadcast %cst_15 : f32 to vector<16x1x1xf32>
    %88 = arith.divf %86, %87 : vector<16x1x1xf32>
    %cst_16 = arith.constant 9.99999974E-6 : f32
    %89 = vector.broadcast %cst_16 : f32 to vector<16x1x1xf32>
    %90 = arith.addf %88, %89 : vector<16x1x1xf32>
    %91 = math.rsqrt %90 : vector<16x1x1xf32>
    %92 = vector.broadcast %91 : vector<16x1x1xf32> to vector<16x8x256xf32>
    %93 = arith.mulf %81, %92 : vector<16x8x256xf32>
    %94 = vector.shape_cast %71 : vector<8x256xf32> to vector<1x8x256xf32>
    %95 = vector.broadcast %94 : vector<1x8x256xf32> to vector<16x8x256xf32>
    %96 = arith.mulf %93, %95 : vector<16x8x256xf32>
    %97 = vector.shape_cast %73 : vector<8x256xf32> to vector<1x8x256xf32>
    %98 = vector.broadcast %97 : vector<1x8x256xf32> to vector<16x8x256xf32>
    %99 = arith.addf %96, %98 : vector<16x8x256xf32>
    %100 = vector.shape_cast %99 : vector<16x8x256xf32> to vector<128x256xf32>
    %c0_17 = arith.constant 0 : index
    %c0_18 = arith.constant 0 : index
    %101 = vector.load %arg3[%c0_17, %c0_18] : memref<256x256xf32, #tpu.memory_space<vmem>>, vector<256x256xf32>
    %cst_19 = arith.constant dense<0.000000e+00> : vector<128x256xf32>
    %102 = tpu.matmul %100, %101, %cst_19 {dimension_numbers = #tpu.dot_dimension_numbers<[1], [0], [0], [1], [0, 0, 1, 1], [], []>} : vector<128x256xf32>, vector<256x256xf32>, vector<128x256xf32> -> vector<128x256xf32>
    %c0_20 = arith.constant 0 : index
    %c0_21 = arith.constant 0 : index
    %103 = vector.load %arg4[%c0_20, %c0_21] : memref<1x256xf32, #tpu.memory_space<vmem>>, vector<1x256xf32>
    %104 = vector.broadcast %103 : vector<1x256xf32> to vector<128x256xf32>
    %105 = arith.addf %102, %104 : vector<128x256xf32>
    %106 = vector.extract_strided_slice %105 {offsets = [0, 0], sizes = [128, 128], strides = [1, 1]} : vector<128x256xf32> to vector<128x128xf32>
    %cst_22 = arith.constant 0.000000e+00 : f32
    %107 = vector.broadcast %cst_22 : f32 to vector<128x128xf32>
    %108 = arith.maximumf %106, %107 : vector<128x128xf32>
    %109 = vector.extract_strided_slice %105 {offsets = [0, 128], sizes = [128, 128], strides = [1, 1]} : vector<128x256xf32> to vector<128x128xf32>
    %c0_23 = arith.constant 0 : index
    %c0_24 = arith.constant 0 : index
    %110 = vector.load %arg5[%c0_23, %c0_24] : memref<128x128xf32, #tpu.memory_space<vmem>>, vector<128x128xf32>
    %cst_25 = arith.constant dense<0.000000e+00> : vector<128x128xf32>
    %111 = tpu.matmul %108, %110, %cst_25 {dimension_numbers = #tpu.dot_dimension_numbers<[1], [0], [0], [1], [0, 0, 1, 1], [], []>} : vector<128x128xf32>, vector<128x128xf32>, vector<128x128xf32> -> vector<128x128xf32>
    %112 = arith.addf %109, %111 : vector<128x128xf32>
    %113 = vector.shape_cast %112 : vector<128x128xf32> to vector<16x8x128xf32>
    %114 = vector.extract_strided_slice %2 {offsets = [2, 0, 0], sizes = [1, 8, 128], strides = [1, 1, 1]} : vector<3x8x128xf32> to vector<1x8x128xf32>
    %115 = vector.shape_cast %114 : vector<1x8x128xf32> to vector<8x128xf32>
    %116 = vector.shape_cast %115 : vector<8x128xf32> to vector<1x8x128xf32>
    %117 = vector.broadcast %116 : vector<1x8x128xf32> to vector<16x8x128xf32>
    %118 = arith.addf %113, %117 : vector<16x8x128xf32>
    %119 = vector.extract_strided_slice %2 {offsets = [0, 0, 0], sizes = [1, 8, 128], strides = [1, 1, 1]} : vector<3x8x128xf32> to vector<1x8x128xf32>
    %120 = vector.shape_cast %119 : vector<1x8x128xf32> to vector<8x128xf32>
    %121 = vector.extract_strided_slice %2 {offsets = [1, 0, 0], sizes = [1, 8, 128], strides = [1, 1, 1]} : vector<3x8x128xf32> to vector<1x8x128xf32>
    %122 = vector.shape_cast %121 : vector<1x8x128xf32> to vector<8x128xf32>
    %cst_26 = arith.constant dense<0.000000e+00> : vector<16x8xf32>
    %123 = vector.multi_reduction <add>, %118, %cst_26 [2] : vector<16x8x128xf32> to vector<16x8xf32>
    %124 = vector.shape_cast %123 : vector<16x8xf32> to vector<16x8x1xf32>
    %cst_27 = arith.constant dense<0.000000e+00> : vector<16x1xf32>
    %125 = vector.multi_reduction <add>, %124, %cst_27 [1] : vector<16x8x1xf32> to vector<16x1xf32>
    %126 = vector.shape_cast %125 : vector<16x1xf32> to vector<16x1x1xf32>
    %cst_28 = arith.constant 1.024000e+03 : f32
    %127 = vector.broadcast %cst_28 : f32 to vector<16x1x1xf32>
    %128 = arith.divf %126, %127 : vector<16x1x1xf32>
    %129 = vector.broadcast %128 : vector<16x1x1xf32> to vector<16x8x128xf32>
    %130 = arith.subf %118, %129 : vector<16x8x128xf32>
    %131 = arith.mulf %130, %130 : vector<16x8x128xf32>
    %cst_29 = arith.constant dense<0.000000e+00> : vector<16x8xf32>
    %132 = vector.multi_reduction <add>, %131, %cst_29 [2] : vector<16x8x128xf32> to vector<16x8xf32>
    %133 = vector.shape_cast %132 : vector<16x8xf32> to vector<16x8x1xf32>
    %cst_30 = arith.constant dense<0.000000e+00> : vector<16x1xf32>
    %134 = vector.multi_reduction <add>, %133, %cst_30 [1] : vector<16x8x1xf32> to vector<16x1xf32>
    %135 = vector.shape_cast %134 : vector<16x1xf32> to vector<16x1x1xf32>
    %cst_31 = arith.constant 1.024000e+03 : f32
    %136 = vector.broadcast %cst_31 : f32 to vector<16x1x1xf32>
    %137 = arith.divf %135, %136 : vector<16x1x1xf32>
    %cst_32 = arith.constant 9.99999974E-6 : f32
    %138 = vector.broadcast %cst_32 : f32 to vector<16x1x1xf32>
    %139 = arith.addf %137, %138 : vector<16x1x1xf32>
    %140 = math.rsqrt %139 : vector<16x1x1xf32>
    %141 = vector.broadcast %140 : vector<16x1x1xf32> to vector<16x8x128xf32>
    %142 = arith.mulf %130, %141 : vector<16x8x128xf32>
    %143 = vector.shape_cast %120 : vector<8x128xf32> to vector<1x8x128xf32>
    %144 = vector.broadcast %143 : vector<1x8x128xf32> to vector<16x8x128xf32>
    %145 = arith.mulf %142, %144 : vector<16x8x128xf32>
    %146 = vector.shape_cast %122 : vector<8x128xf32> to vector<1x8x128xf32>
    %147 = vector.broadcast %146 : vector<1x8x128xf32> to vector<16x8x128xf32>
    %148 = arith.addf %145, %147 : vector<16x8x128xf32>
    %149 = vector.shape_cast %148 : vector<16x8x128xf32> to vector<128x128xf32>
    %c0_33 = arith.constant 0 : index
    %c0_34 = arith.constant 0 : index
    %c0_35 = arith.constant 0 : index
    %c0_36 = arith.constant 0 : index
    %150 = vector.load %arg11[%c0_33, %c0_34, %c0_35, %c0_36] : memref<1x7x8x128xf32, #tpu.memory_space<vmem>>, vector<1x7x8x128xf32>
    %151 = vector.shape_cast %150 : vector<1x7x8x128xf32> to vector<7x8x128xf32>
    %c0_37 = arith.constant 0 : index
    %c0_38 = arith.constant 0 : index
    %c0_39 = arith.constant 0 : index
    %152 = vector.load %arg8[%c0_37, %c0_38, %c0_39] : memref<1x8x8xf32, #tpu.memory_space<vmem>>, vector<1x8x8xf32>
    %153 = vector.shape_cast %152 : vector<1x8x8xf32> to vector<8x8xf32>
    %154 = vector.shape_cast %149 : vector<128x128xf32> to vector<16x8x128xf32>
    %cst_40 = arith.constant 0.000000e+00 : f32
    %155 = vector.broadcast %cst_40 : f32 to vector<16x8x128xf32>
    %156 = vector.extract_strided_slice %153 {offsets = [0, 0], sizes = [8, 1], strides = [1, 1]} : vector<8x8xf32> to vector<8x1xf32>
    %157 = vector.shape_cast %156 : vector<8x1xf32> to vector<1x8x1xf32>
    %158 = vector.extract_strided_slice %154 {offsets = [0, 0, 0], sizes = [16, 1, 128], strides = [1, 1, 1]} : vector<16x8x128xf32> to vector<16x1x128xf32>
    %159 = vector.broadcast %157 : vector<1x8x1xf32> to vector<16x8x128xf32>
    %160 = vector.broadcast %158 : vector<16x1x128xf32> to vector<16x8x128xf32>
    %161 = arith.mulf %159, %160 : vector<16x8x128xf32>
    %162 = arith.addf %155, %161 : vector<16x8x128xf32>
    %163 = vector.extract_strided_slice %153 {offsets = [0, 1], sizes = [8, 1], strides = [1, 1]} : vector<8x8xf32> to vector<8x1xf32>
    %164 = vector.shape_cast %163 : vector<8x1xf32> to vector<1x8x1xf32>
    %165 = vector.extract_strided_slice %154 {offsets = [0, 1, 0], sizes = [16, 1, 128], strides = [1, 1, 1]} : vector<16x8x128xf32> to vector<16x1x128xf32>
    %166 = vector.broadcast %164 : vector<1x8x1xf32> to vector<16x8x128xf32>
    %167 = vector.broadcast %165 : vector<16x1x128xf32> to vector<16x8x128xf32>
    %168 = arith.mulf %166, %167 : vector<16x8x128xf32>
    %169 = arith.addf %162, %168 : vector<16x8x128xf32>
    %170 = vector.extract_strided_slice %153 {offsets = [0, 2], sizes = [8, 1], strides = [1, 1]} : vector<8x8xf32> to vector<8x1xf32>
    %171 = vector.shape_cast %170 : vector<8x1xf32> to vector<1x8x1xf32>
    %172 = vector.extract_strided_slice %154 {offsets = [0, 2, 0], sizes = [16, 1, 128], strides = [1, 1, 1]} : vector<16x8x128xf32> to vector<16x1x128xf32>
    %173 = vector.broadcast %171 : vector<1x8x1xf32> to vector<16x8x128xf32>
    %174 = vector.broadcast %172 : vector<16x1x128xf32> to vector<16x8x128xf32>
    %175 = arith.mulf %173, %174 : vector<16x8x128xf32>
    %176 = arith.addf %169, %175 : vector<16x8x128xf32>
    %177 = vector.extract_strided_slice %153 {offsets = [0, 3], sizes = [8, 1], strides = [1, 1]} : vector<8x8xf32> to vector<8x1xf32>
    %178 = vector.shape_cast %177 : vector<8x1xf32> to vector<1x8x1xf32>
    %179 = vector.extract_strided_slice %154 {offsets = [0, 3, 0], sizes = [16, 1, 128], strides = [1, 1, 1]} : vector<16x8x128xf32> to vector<16x1x128xf32>
    %180 = vector.broadcast %178 : vector<1x8x1xf32> to vector<16x8x128xf32>
    %181 = vector.broadcast %179 : vector<16x1x128xf32> to vector<16x8x128xf32>
    %182 = arith.mulf %180, %181 : vector<16x8x128xf32>
    %183 = arith.addf %176, %182 : vector<16x8x128xf32>
    %184 = vector.extract_strided_slice %153 {offsets = [0, 4], sizes = [8, 1], strides = [1, 1]} : vector<8x8xf32> to vector<8x1xf32>
    %185 = vector.shape_cast %184 : vector<8x1xf32> to vector<1x8x1xf32>
    %186 = vector.extract_strided_slice %154 {offsets = [0, 4, 0], sizes = [16, 1, 128], strides = [1, 1, 1]} : vector<16x8x128xf32> to vector<16x1x128xf32>
    %187 = vector.broadcast %185 : vector<1x8x1xf32> to vector<16x8x128xf32>
    %188 = vector.broadcast %186 : vector<16x1x128xf32> to vector<16x8x128xf32>
    %189 = arith.mulf %187, %188 : vector<16x8x128xf32>
    %190 = arith.addf %183, %189 : vector<16x8x128xf32>
    %191 = vector.extract_strided_slice %153 {offsets = [0, 5], sizes = [8, 1], strides = [1, 1]} : vector<8x8xf32> to vector<8x1xf32>
    %192 = vector.shape_cast %191 : vector<8x1xf32> to vector<1x8x1xf32>
    %193 = vector.extract_strided_slice %154 {offsets = [0, 5, 0], sizes = [16, 1, 128], strides = [1, 1, 1]} : vector<16x8x128xf32> to vector<16x1x128xf32>
    %194 = vector.broadcast %192 : vector<1x8x1xf32> to vector<16x8x128xf32>
    %195 = vector.broadcast %193 : vector<16x1x128xf32> to vector<16x8x128xf32>
    %196 = arith.mulf %194, %195 : vector<16x8x128xf32>
    %197 = arith.addf %190, %196 : vector<16x8x128xf32>
    %198 = vector.extract_strided_slice %153 {offsets = [0, 6], sizes = [8, 1], strides = [1, 1]} : vector<8x8xf32> to vector<8x1xf32>
    %199 = vector.shape_cast %198 : vector<8x1xf32> to vector<1x8x1xf32>
    %200 = vector.extract_strided_slice %154 {offsets = [0, 6, 0], sizes = [16, 1, 128], strides = [1, 1, 1]} : vector<16x8x128xf32> to vector<16x1x128xf32>
    %201 = vector.broadcast %199 : vector<1x8x1xf32> to vector<16x8x128xf32>
    %202 = vector.broadcast %200 : vector<16x1x128xf32> to vector<16x8x128xf32>
    %203 = arith.mulf %201, %202 : vector<16x8x128xf32>
    %204 = arith.addf %197, %203 : vector<16x8x128xf32>
    %205 = vector.extract_strided_slice %153 {offsets = [0, 7], sizes = [8, 1], strides = [1, 1]} : vector<8x8xf32> to vector<8x1xf32>
    %206 = vector.shape_cast %205 : vector<8x1xf32> to vector<1x8x1xf32>
    %207 = vector.extract_strided_slice %154 {offsets = [0, 7, 0], sizes = [16, 1, 128], strides = [1, 1, 1]} : vector<16x8x128xf32> to vector<16x1x128xf32>
    %208 = vector.broadcast %206 : vector<1x8x1xf32> to vector<16x8x128xf32>
    %209 = vector.broadcast %207 : vector<16x1x128xf32> to vector<16x8x128xf32>
    %210 = arith.mulf %208, %209 : vector<16x8x128xf32>
    %211 = arith.addf %204, %210 : vector<16x8x128xf32>
    %212 = vector.extract_strided_slice %151 {offsets = [0, 0, 0], sizes = [1, 8, 128], strides = [1, 1, 1]} : vector<7x8x128xf32> to vector<1x8x128xf32>
    %213 = vector.shape_cast %212 : vector<1x8x128xf32> to vector<8x128xf32>
    %214 = vector.shape_cast %213 : vector<8x128xf32> to vector<1x8x128xf32>
    %215 = vector.broadcast %214 : vector<1x8x128xf32> to vector<16x8x128xf32>
    %216 = arith.addf %211, %215 : vector<16x8x128xf32>
    %cst_41 = arith.constant 0.000000e+00 : f32
    %217 = vector.broadcast %cst_41 : f32 to vector<16x8x128xf32>
    %218 = arith.maximumf %216, %217 : vector<16x8x128xf32>
    %219 = arith.addf %154, %218 : vector<16x8x128xf32>
    %220 = vector.extract_strided_slice %151 {offsets = [1, 0, 0], sizes = [1, 8, 128], strides = [1, 1, 1]} : vector<7x8x128xf32> to vector<1x8x128xf32>
    %221 = vector.shape_cast %220 : vector<1x8x128xf32> to vector<8x128xf32>
    %222 = vector.extract_strided_slice %151 {offsets = [2, 0, 0], sizes = [1, 8, 128], strides = [1, 1, 1]} : vector<7x8x128xf32> to vector<1x8x128xf32>
    %223 = vector.shape_cast %222 : vector<1x8x128xf32> to vector<8x128xf32>
    %cst_42 = arith.constant dense<0.000000e+00> : vector<16x8xf32>
    %224 = vector.multi_reduction <add>, %219, %cst_42 [2] : vector<16x8x128xf32> to vector<16x8xf32>
    %225 = vector.shape_cast %224 : vector<16x8xf32> to vector<16x8x1xf32>
    %cst_43 = arith.constant dense<0.000000e+00> : vector<16x1xf32>
    %226 = vector.multi_reduction <add>, %225, %cst_43 [1] : vector<16x8x1xf32> to vector<16x1xf32>
    %227 = vector.shape_cast %226 : vector<16x1xf32> to vector<16x1x1xf32>
    %cst_44 = arith.constant 1.024000e+03 : f32
    %228 = vector.broadcast %cst_44 : f32 to vector<16x1x1xf32>
    %229 = arith.divf %227, %228 : vector<16x1x1xf32>
    %230 = vector.broadcast %229 : vector<16x1x1xf32> to vector<16x8x128xf32>
    %231 = arith.subf %219, %230 : vector<16x8x128xf32>
    %232 = arith.mulf %231, %231 : vector<16x8x128xf32>
    %cst_45 = arith.constant dense<0.000000e+00> : vector<16x8xf32>
    %233 = vector.multi_reduction <add>, %232, %cst_45 [2] : vector<16x8x128xf32> to vector<16x8xf32>
    %234 = vector.shape_cast %233 : vector<16x8xf32> to vector<16x8x1xf32>
    %cst_46 = arith.constant dense<0.000000e+00> : vector<16x1xf32>
    %235 = vector.multi_reduction <add>, %234, %cst_46 [1] : vector<16x8x1xf32> to vector<16x1xf32>
    %236 = vector.shape_cast %235 : vector<16x1xf32> to vector<16x1x1xf32>
    %cst_47 = arith.constant 1.024000e+03 : f32
    %237 = vector.broadcast %cst_47 : f32 to vector<16x1x1xf32>
    %238 = arith.divf %236, %237 : vector<16x1x1xf32>
    %cst_48 = arith.constant 9.99999974E-6 : f32
    %239 = vector.broadcast %cst_48 : f32 to vector<16x1x1xf32>
    %240 = arith.addf %238, %239 : vector<16x1x1xf32>
    %241 = math.rsqrt %240 : vector<16x1x1xf32>
    %242 = vector.broadcast %241 : vector<16x1x1xf32> to vector<16x8x128xf32>
    %243 = arith.mulf %231, %242 : vector<16x8x128xf32>
    %244 = vector.shape_cast %221 : vector<8x128xf32> to vector<1x8x128xf32>
    %245 = vector.broadcast %244 : vector<1x8x128xf32> to vector<16x8x128xf32>
    %246 = arith.mulf %243, %245 : vector<16x8x128xf32>
    %247 = vector.shape_cast %223 : vector<8x128xf32> to vector<1x8x128xf32>
    %248 = vector.broadcast %247 : vector<1x8x128xf32> to vector<16x8x128xf32>
    %249 = arith.addf %246, %248 : vector<16x8x128xf32>
    %250 = vector.shape_cast %249 : vector<16x8x128xf32> to vector<128x128xf32>
    %c0_49 = arith.constant 0 : index
    %c0_50 = arith.constant 0 : index
    %c0_51 = arith.constant 0 : index
    %251 = vector.load %arg9[%c0_49, %c0_50, %c0_51] : memref<1x128x128xf32, #tpu.memory_space<vmem>>, vector<1x128x128xf32>
    %252 = vector.shape_cast %251 : vector<1x128x128xf32> to vector<128x128xf32>
    %cst_52 = arith.constant dense<0.000000e+00> : vector<128x128xf32>
    %253 = tpu.matmul %250, %252, %cst_52 {dimension_numbers = #tpu.dot_dimension_numbers<[1], [0], [0], [1], [0, 0, 1, 1], [], []>} : vector<128x128xf32>, vector<128x128xf32>, vector<128x128xf32> -> vector<128x128xf32>
    %254 = vector.extract_strided_slice %151 {offsets = [3, 0, 0], sizes = [1, 8, 128], strides = [1, 1, 1]} : vector<7x8x128xf32> to vector<1x8x128xf32>
    %255 = vector.shape_cast %254 : vector<1x8x128xf32> to vector<8x128xf32>
    %256 = vector.extract_strided_slice %255 {offsets = [0, 0], sizes = [1, 128], strides = [1, 1]} : vector<8x128xf32> to vector<1x128xf32>
    %257 = vector.broadcast %256 : vector<1x128xf32> to vector<128x128xf32>
    %258 = arith.addf %253, %257 : vector<128x128xf32>
    %cst_53 = arith.constant 0.000000e+00 : f32
    %259 = vector.broadcast %cst_53 : f32 to vector<128x128xf32>
    %260 = arith.maximumf %258, %259 : vector<128x128xf32>
    %c0_54 = arith.constant 0 : index
    %c0_55 = arith.constant 0 : index
    %c0_56 = arith.constant 0 : index
    %261 = vector.load %arg10[%c0_54, %c0_55, %c0_56] : memref<1x128x128xf32, #tpu.memory_space<vmem>>, vector<1x128x128xf32>
    %262 = vector.shape_cast %261 : vector<1x128x128xf32> to vector<128x128xf32>
    %cst_57 = arith.constant dense<0.000000e+00> : vector<128x128xf32>
    %263 = tpu.matmul %260, %262, %cst_57 {dimension_numbers = #tpu.dot_dimension_numbers<[1], [0], [0], [1], [0, 0, 1, 1], [], []>} : vector<128x128xf32>, vector<128x128xf32>, vector<128x128xf32> -> vector<128x128xf32>
    %264 = arith.addf %250, %263 : vector<128x128xf32>
    %265 = vector.shape_cast %264 : vector<128x128xf32> to vector<16x8x128xf32>
    %266 = vector.extract_strided_slice %151 {offsets = [4, 0, 0], sizes = [1, 8, 128], strides = [1, 1, 1]} : vector<7x8x128xf32> to vector<1x8x128xf32>
    %267 = vector.shape_cast %266 : vector<1x8x128xf32> to vector<8x128xf32>
    %268 = vector.shape_cast %267 : vector<8x128xf32> to vector<1x8x128xf32>
    %269 = vector.broadcast %268 : vector<1x8x128xf32> to vector<16x8x128xf32>
    %270 = arith.addf %265, %269 : vector<16x8x128xf32>
    %271 = vector.extract_strided_slice %151 {offsets = [5, 0, 0], sizes = [1, 8, 128], strides = [1, 1, 1]} : vector<7x8x128xf32> to vector<1x8x128xf32>
    %272 = vector.shape_cast %271 : vector<1x8x128xf32> to vector<8x128xf32>
    %273 = vector.extract_strided_slice %151 {offsets = [6, 0, 0], sizes = [1, 8, 128], strides = [1, 1, 1]} : vector<7x8x128xf32> to vector<1x8x128xf32>
    %274 = vector.shape_cast %273 : vector<1x8x128xf32> to vector<8x128xf32>
    %cst_58 = arith.constant dense<0.000000e+00> : vector<16x8xf32>
    %275 = vector.multi_reduction <add>, %270, %cst_58 [2] : vector<16x8x128xf32> to vector<16x8xf32>
    %276 = vector.shape_cast %275 : vector<16x8xf32> to vector<16x8x1xf32>
    %cst_59 = arith.constant dense<0.000000e+00> : vector<16x1xf32>
    %277 = vector.multi_reduction <add>, %276, %cst_59 [1] : vector<16x8x1xf32> to vector<16x1xf32>
    %278 = vector.shape_cast %277 : vector<16x1xf32> to vector<16x1x1xf32>
    %cst_60 = arith.constant 1.024000e+03 : f32
    %279 = vector.broadcast %cst_60 : f32 to vector<16x1x1xf32>
    %280 = arith.divf %278, %279 : vector<16x1x1xf32>
    %281 = vector.broadcast %280 : vector<16x1x1xf32> to vector<16x8x128xf32>
    %282 = arith.subf %270, %281 : vector<16x8x128xf32>
    %283 = arith.mulf %282, %282 : vector<16x8x128xf32>
    %cst_61 = arith.constant dense<0.000000e+00> : vector<16x8xf32>
    %284 = vector.multi_reduction <add>, %283, %cst_61 [2] : vector<16x8x128xf32> to vector<16x8xf32>
    %285 = vector.shape_cast %284 : vector<16x8xf32> to vector<16x8x1xf32>
    %cst_62 = arith.constant dense<0.000000e+00> : vector<16x1xf32>
    %286 = vector.multi_reduction <add>, %285, %cst_62 [1] : vector<16x8x1xf32> to vector<16x1xf32>
    %287 = vector.shape_cast %286 : vector<16x1xf32> to vector<16x1x1xf32>
    %cst_63 = arith.constant 1.024000e+03 : f32
    %288 = vector.broadcast %cst_63 : f32 to vector<16x1x1xf32>
    %289 = arith.divf %287, %288 : vector<16x1x1xf32>
    %cst_64 = arith.constant 9.99999974E-6 : f32
    %290 = vector.broadcast %cst_64 : f32 to vector<16x1x1xf32>
    %291 = arith.addf %289, %290 : vector<16x1x1xf32>
    %292 = math.rsqrt %291 : vector<16x1x1xf32>
    %293 = vector.broadcast %292 : vector<16x1x1xf32> to vector<16x8x128xf32>
    %294 = arith.mulf %282, %293 : vector<16x8x128xf32>
    %295 = vector.shape_cast %272 : vector<8x128xf32> to vector<1x8x128xf32>
    %296 = vector.broadcast %295 : vector<1x8x128xf32> to vector<16x8x128xf32>
    %297 = arith.mulf %294, %296 : vector<16x8x128xf32>
    %298 = vector.shape_cast %274 : vector<8x128xf32> to vector<1x8x128xf32>
    %299 = vector.broadcast %298 : vector<1x8x128xf32> to vector<16x8x128xf32>
    %300 = arith.addf %297, %299 : vector<16x8x128xf32>
    %301 = vector.shape_cast %300 : vector<16x8x128xf32> to vector<128x128xf32>
    %c0_65 = arith.constant 0 : index
    %c0_66 = arith.constant 0 : index
    %302 = vector.load %arg12[%c0_65, %c0_66] : memref<128x128xf32, #tpu.memory_space<vmem>>, vector<128x128xf32>
    tpu.vector_store %arg12[%c0_65, %c0_66], %301 {strides = array<i32>} : memref<128x128xf32, #tpu.memory_space<vmem>>, vector<128x128xf32>,
    return
  }
  func.func @transform_0(%arg0: i32) -> (i32, i32) {
    %c0_i32 = arith.constant 0 : i32
    %c0_i32_0 = arith.constant 0 : i32
    return %arg0, %c0_i32 : i32, i32
  }
  func.func @transform_1(%arg0: i32) -> (i32, i32) {
    %c0_i32 = arith.constant 0 : i32
    %c0_i32_0 = arith.constant 0 : i32
    %c0_i32_1 = arith.constant 0 : i32
    return %c0_i32, %c0_i32_0 : i32, i32
  }
  func.func @transform_2(%arg0: i32) -> (i32, i32) {
    %c0_i32 = arith.constant 0 : i32
    %c0_i32_0 = arith.constant 0 : i32
    %c0_i32_1 = arith.constant 0 : i32
    return %c0_i32, %c0_i32_0 : i32, i32
  }
  func.func @transform_3(%arg0: i32) -> (i32, i32) {
    %c0_i32 = arith.constant 0 : i32
    %c0_i32_0 = arith.constant 0 : i32
    %c0_i32_1 = arith.constant 0 : i32
    return %c0_i32, %c0_i32_0 : i32, i32
  }
  func.func @transform_4(%arg0: i32) -> (i32, i32) {
    %c0_i32 = arith.constant 0 : i32
    %c0_i32_0 = arith.constant 0 : i32
    %c0_i32_1 = arith.constant 0 : i32
    return %c0_i32, %c0_i32_0 : i32, i32
  }
  func.func @transform_5(%arg0: i32) -> (i32, i32, i32) {
    %c0_i32 = arith.constant 0 : i32
    %c0_i32_0 = arith.constant 0 : i32
    %c0_i32_1 = arith.constant 0 : i32
    %c0_i32_2 = arith.constant 0 : i32
    return %c0_i32, %c0_i32_0, %c0_i32_1 : i32, i32, i32
  }
  func.func @transform_6(%arg0: i32) -> (i32, i32, i32) {
    %c0_i32 = arith.constant 0 : i32
    %c0_i32_0 = arith.constant 0 : i32
    %c0_i32_1 = arith.constant 0 : i32
    %c0_i32_2 = arith.constant 0 : i32
    return %c0_i32, %c0_i32_0, %c0_i32_1 : i32, i32, i32
  }
  func.func @transform_7(%arg0: i32) -> (i32, i32, i32) {
    %c0_i32 = arith.constant 0 : i32
    %c0_i32_0 = arith.constant 0 : i32
    %c0_i32_1 = arith.constant 0 : i32
    %c0_i32_2 = arith.constant 0 : i32
    return %c0_i32, %c0_i32_0, %c0_i32_1 : i32, i32, i32
  }
  func.func @transform_8(%arg0: i32) -> (i32, i32, i32) {
    %c0_i32 = arith.constant 0 : i32
    %c0_i32_0 = arith.constant 0 : i32
    %c0_i32_1 = arith.constant 0 : i32
    %c0_i32_2 = arith.constant 0 : i32
    return %c0_i32, %c0_i32_0, %c0_i32_1 : i32, i32, i32
  }
  func.func @transform_9(%arg0: i32) -> (i32, i32, i32) {
    %c0_i32 = arith.constant 0 : i32
    %c0_i32_0 = arith.constant 0 : i32
    %c0_i32_1 = arith.constant 0 : i32
    %c0_i32_2 = arith.constant 0 : i32
    return %c0_i32, %c0_i32_0, %c0_i32_1 : i32, i32, i32
  }
  func.func @transform_10(%arg0: i32) -> (i32, i32, i32, i32) {
    %c0_i32 = arith.constant 0 : i32
    %c0_i32_0 = arith.constant 0 : i32
    %c0_i32_1 = arith.constant 0 : i32
    %c0_i32_2 = arith.constant 0 : i32
    %c0_i32_3 = arith.constant 0 : i32
    return %c0_i32, %c0_i32_0, %c0_i32_1, %c0_i32_2 : i32, i32, i32, i32
  }
  func.func @transform_11(%arg0: i32) -> (i32, i32) {
    %c0_i32 = arith.constant 0 : i32
    %c0_i32_0 = arith.constant 0 : i32
    return %arg0, %c0_i32 : i32, i32
  }
}

</mosaic_0001>

<llo_original>
// kernel: tpu_custom_call.1
$region0: #{tpu_custom_call.1}
  #allocation0 [shape = 'u32[]', space=smem, size = 0x4, offset = 0x4, fixed_abs, tag = 'smem constant byte address 0x4 - core index']
  #allocation1 [shape = 'u32[144,128]{1,0:T(1,128)}', space=vmem, size = 0x12000, scoped, tag = 'internal scratch']
  %s0 = inlined_call_operand.hbm [shape: f32[512,256], index: 0, kind: input, shape index: {}]
  %s1 = inlined_call_operand.hbm [shape: f32[8,8], index: 1, kind: input, shape index: {}]
  %s2 = inlined_call_operand.hbm [shape: f32[256,256], index: 2, kind: input, shape index: {}]
  %s3 = inlined_call_operand.vmem [shape: f32[1,256], index: 3, kind: input, shape index: {}]
  %s4 = inlined_call_operand.hbm [shape: f32[128,128], index: 4, kind: input, shape index: {}]
  %s5 = inlined_call_operand.hbm [shape: f32[3,8,256], index: 5, kind: input, shape index: {}]
  %s6 = inlined_call_operand.hbm [shape: f32[3,8,128], index: 6, kind: input, shape index: {}]
  %s7 = inlined_call_operand.vmem [shape: f32[1,8,8], index: 7, kind: input, shape index: {}]
  %s8 = inlined_call_operand.hbm [shape: f32[1,128,128], index: 8, kind: input, shape index: {}]
  %s9 = inlined_call_operand.hbm [shape: f32[1,128,128], index: 9, kind: input, shape index: {}]
  %s10 = inlined_call_operand.hbm [shape: f32[1,7,8,128], index: 10, kind: input, shape index: {}]
  %s11 = inlined_call_operand.hbm [shape: f32[512,128], index: 11, kind: output, shape index: {}]
  %s12 = sld [smem:[#allocation0]]
  $region113: #{tpu_custom_call.1} parent=0
    _
  %s14 = ssub.s32 1, %s12
  %s15 = scalar_select 0, %s14, %s12
  $region1: #{tpu_custom_call.1} parent=0
    #allocation2 [shape = 'u8[262144]{0}', space=vmem, size = 0x40000, scoped, tag = 'input window, operand 0']
    #allocation3 [shape = 's32[2]{0}', space=sflag, size = 0x8, scoped, tag = 'scoped memory for tpu_custom_call.1']
    #allocation4 [shape = 's32[2]{0}', space=sflag, size = 0x8, scoped, tag = 'scoped memory for tpu_custom_call.1']
    #allocation5 [shape = 'u8[4096]{0}', space=vmem, size = 0x1000, scoped, tag = 'input window, operand 1, single buffered']
    #allocation6 [shape = 's32[1]{0}', space=sflag, size = 0x4, scoped, tag = 'scoped memory for tpu_custom_call.1']
    #allocation7 [shape = 'u8[262144]{0}', space=vmem, size = 0x40000, scoped, tag = 'input window, operand 2, single buffered']
    #allocation8 [shape = 'u8[65536]{0}', space=vmem, size = 0x10000, scoped, tag = 'input window, operand 4, single buffered']
    #allocation9 [shape = 's32[1]{0}', space=sflag, size = 0x4, scoped, tag = 'scoped memory for tpu_custom_call.1']
    #allocation10 [shape = 'u8[24576]{0}', space=vmem, size = 0x6000, scoped, tag = 'input window, operand 5, single buffered']
    #allocation11 [shape = 'u8[12288]{0}', space=vmem, size = 0x3000, scoped, tag = 'input window, operand 6, single buffered']
    #allocation12 [shape = 's32[1]{0}', space=sflag, size = 0x4, scoped, tag = 'scoped memory for tpu_custom_call.1']
    #allocation13 [shape = 'u8[65536]{0}', space=vmem, size = 0x10000, scoped, tag = 'input window, operand 8, single buffered']
    #allocation14 [shape = 'u8[65536]{0}', space=vmem, size = 0x10000, scoped, tag = 'input window, operand 9, single buffered']
    #allocation15 [shape = 's32[1]{0}', space=sflag, size = 0x4, scoped, tag = 'scoped memory for tpu_custom_call.1']
    #allocation16 [shape = 'u8[28672]{0}', space=vmem, size = 0x7000, scoped, tag = 'input window, operand 10, single buffered']
    #allocation17 [shape = 'u8[131072]{0}', space=vmem, size = 0x20000, scoped, tag = 'output window, operand 0']
    %16 = vsyncpa [#allocation3], 0
    %s17 = scalar_lea.sflag [#allocation3], 1
    %18 = vsyncpa %s17, 0
    %19 = vsyncpa [#allocation6], 0
    %20 = vsyncpa [#allocation9], 0
    %21 = vsyncpa [#allocation12], 0
    %22 = vsyncpa [#allocation15], 0
    %23 = vsyncpa [#allocation4], 0
    %s24 = scalar_lea.sflag [#allocation4], 1
    %25 = vsyncpa %s24, 0
    loop: start=0, step=1, limit=6
    $region2: #{tpu_custom_call.1} parent=1 // loop_pre_header
      _
    $region3: #{tpu_custom_call.1} parent=1 // loop_header
      %s27 = sphi 0, %s31
      %p28 = scmp.ge.s32.totalorder %s27, 6
      %s37 = sphi 0, %s39
      %s40 = sphi 0, %s37
      %s41 = sphi 0, %s40
      %s57 = sphi 0, %s41
      %s61 = sphi 0, %s61
      %s63 = sphi 0, %s61
      %s64 = sphi 0, %s63
      %s78 = sphi 0, %s64
      %s82 = sphi 0, %s82
      %s84 = sphi 0, %s82
      %s85 = sphi 0, %s84
      %s99 = sphi 0, %s85
      %s103 = sphi 0, %s103
      %s105 = sphi 0, %s103
      %s106 = sphi 0, %s105
      %s120 = sphi 0, %s106
      %s124 = sphi 0, %s124
      %s126 = sphi 0, %s124
      %s127 = sphi 0, %s126
      %s141 = sphi 0, %s127
      %s145 = sphi 0, %s145
      %s147 = sphi 0, %s145
      %s148 = sphi 0, %s147
      %s162 = sphi 0, %s148
      %s166 = sphi 0, %s166
      %s168 = sphi 0, %s166
      %s169 = sphi 0, %s168
      %s183 = sphi 0, %s169
      %s187 = sphi 0, %s187
      %s189 = sphi 0, %s187
      %s190 = sphi 0, %s189
      %s204 = sphi 0, %s190
      %s208 = sphi 0, %s208
      %s210 = sphi 0, %s208
      %s211 = sphi 0, %s210
      %s225 = sphi 0, %s211
      %s229 = sphi 0, %s229
      %s231 = sphi 0, %s229
      %s232 = sphi 0, %s231
      %s246 = sphi 0, %s232
      %s250 = sphi 0, %s250
      %s252 = sphi 0, %s250
      %s253 = sphi 0, %s252
      %s267 = sphi 0, %s253
      %s273 = sphi 0, %s275
      %s276 = sphi 0, %s273
      %s277 = sphi 0, %s276
      %s293 = sphi 0, %s277
    $region4: #{tpu_custom_call.1} parent=1 // loop_header_branch
      %30 = sbr.rel (%p28) target = $region8
    $region5: #{tpu_custom_call.1} parent=1 // loop_body
      %s32 = ssub.s32 %s27, 1
      %s33 = ssub.s32 %s27, 2
      %s34 = sadd.s32 %s27, 1
      %s35 = ssub.s32 %s27, %s34
      %p36 = scmp.eq.s32.totalorder %s35, 0
      %s38 = sadd.s32 %s37, 1
      %s39 = scalar_select %p36, %s37, %s38
      %p42 = pneg %p36
      %p43 = scmp.eq.s32.totalorder %s27, 3
      %p44 = por %p42, %p43
      %p45 = scmp.ne.s32.totalorder %s37, %s40
      %p46 = scmp.eq.s32.totalorder %s27, 0
      %p47 = por %p45, %p46
      %p48 = scmp.ne.s32.totalorder %s37, %s40
      %p49 = scmp.eq.s32.totalorder %s32, 3
      %p50 = por %p48, %p49
      %p51 = scmp.ne.s32.totalorder %s40, %s41
      %p52 = scmp.eq.s32.totalorder %s32, 0
      %p53 = por %p51, %p52
      %p54 = scmp.ne.s32.totalorder %s40, %s41
      %p55 = scmp.eq.s32.totalorder %s33, 3
      %p56 = por %p54, %p55
      %p58 = scmp.ne.s32.totalorder %s41, %s57
      %p59 = scmp.eq.s32.totalorder %s33, 0
      %p60 = por %p58, %p59
      %s62 = sadd.s32 %s61, 1
      %p65 = scmp.eq.s32.totalorder %s27, 3
      %p66 = scmp.ne.s32.totalorder %s61, %s63
      %p67 = scmp.eq.s32.totalorder %s27, 0
      %p68 = por %p66, %p67
      %p69 = scmp.ne.s32.totalorder %s61, %s63
      %p70 = scmp.eq.s32.totalorder %s32, 3
      %p71 = por %p69, %p70
      %p72 = scmp.ne.s32.totalorder %s63, %s64
      %p73 = scmp.eq.s32.totalorder %s32, 0
      %p74 = por %p72, %p73
      %p75 = scmp.ne.s32.totalorder %s63, %s64
      %p76 = scmp.eq.s32.totalorder %s33, 3
      %p77 = por %p75, %p76
      %p79 = scmp.ne.s32.totalorder %s64, %s78
      %p80 = scmp.eq.s32.totalorder %s33, 0
      %p81 = por %p79, %p80
      %s83 = sadd.s32 %s82, 1
      %p86 = scmp.eq.s32.totalorder %s27, 3
      %p87 = scmp.ne.s32.totalorder %s82, %s84
      %p88 = scmp.eq.s32.totalorder %s27, 0
      %p89 = por %p87, %p88
      %p90 = scmp.ne.s32.totalorder %s82, %s84
      %p91 = scmp.eq.s32.totalorder %s32, 3
      %p92 = por %p90, %p91
      %p93 = scmp.ne.s32.totalorder %s84, %s85
      %p94 = scmp.eq.s32.totalorder %s32, 0
      %p95 = por %p93, %p94
      %p96 = scmp.ne.s32.totalorder %s84, %s85
      %p97 = scmp.eq.s32.totalorder %s33, 3
      %p98 = por %p96, %p97
      %p100 = scmp.ne.s32.totalorder %s85, %s99
      %p101 = scmp.eq.s32.totalorder %s33, 0
      %p102 = por %p100, %p101
      %s104 = sadd.s32 %s103, 1
      %p107 = scmp.eq.s32.totalorder %s27, 3
      %p108 = scmp.ne.s32.totalorder %s103, %s105
      %p109 = scmp.eq.s32.totalorder %s27, 0
      %p110 = por %p108, %p109
      %p111 = scmp.ne.s32.totalorder %s103, %s105
      %p112 = scmp.eq.s32.totalorder %s32, 3
      %p113 = por %p111, %p112
      %p114 = scmp.ne.s32.totalorder %s105, %s106
      %p115 = scmp.eq.s32.totalorder %s32, 0
      %p116 = por %p114, %p115
      %p117 = scmp.ne.s32.totalorder %s105, %s106
      %p118 = scmp.eq.s32.totalorder %s33, 3
      %p119 = por %p117, %p118
      %p121 = scmp.ne.s32.totalorder %s106, %s120
      %p122 = scmp.eq.s32.totalorder %s33, 0
      %p123 = por %p121, %p122
      %s125 = sadd.s32 %s124, 1
      %p128 = scmp.eq.s32.totalorder %s27, 3
      %p129 = scmp.ne.s32.totalorder %s124, %s126
      %p130 = scmp.eq.s32.totalorder %s27, 0
      %p131 = por %p129, %p130
      %p132 = scmp.ne.s32.totalorder %s124, %s126
      %p133 = scmp.eq.s32.totalorder %s32, 3
      %p134 = por %p132, %p133
      %p135 = scmp.ne.s32.totalorder %s126, %s127
      %p136 = scmp.eq.s32.totalorder %s32, 0
      %p137 = por %p135, %p136
      %p138 = scmp.ne.s32.totalorder %s126, %s127
      %p139 = scmp.eq.s32.totalorder %s33, 3
      %p140 = por %p138, %p139
      %p142 = scmp.ne.s32.totalorder %s127, %s141
      %p143 = scmp.eq.s32.totalorder %s33, 0
      %p144 = por %p142, %p143
      %s146 = sadd.s32 %s145, 1
      %p149 = scmp.eq.s32.totalorder %s27, 3
      %p150 = scmp.ne.s32.totalorder %s145, %s147
      %p151 = scmp.eq.s32.totalorder %s27, 0
      %p152 = por %p150, %p151
      %p153 = scmp.ne.s32.totalorder %s145, %s147
      %p154 = scmp.eq.s32.totalorder %s32, 3
      %p155 = por %p153, %p154
      %p156 = scmp.ne.s32.totalorder %s147, %s148
      %p157 = scmp.eq.s32.totalorder %s32, 0
      %p158 = por %p156, %p157
      %p159 = scmp.ne.s32.totalorder %s147, %s148
      %p160 = scmp.eq.s32.totalorder %s33, 3
      %p161 = por %p159, %p160
      %p163 = scmp.ne.s32.totalorder %s148, %s162
      %p164 = scmp.eq.s32.totalorder %s33, 0
      %p165 = por %p163, %p164
      %s167 = sadd.s32 %s166, 1
      %p170 = scmp.eq.s32.totalorder %s27, 3
      %p171 = scmp.ne.s32.totalorder %s166, %s168
      %p172 = scmp.eq.s32.totalorder %s27, 0
      %p173 = por %p171, %p172
      %p174 = scmp.ne.s32.totalorder %s166, %s168
      %p175 = scmp.eq.s32.totalorder %s32, 3
      %p176 = por %p174, %p175
      %p177 = scmp.ne.s32.totalorder %s168, %s169
      %p178 = scmp.eq.s32.totalorder %s32, 0
      %p179 = por %p177, %p178
      %p180 = scmp.ne.s32.totalorder %s168, %s169
      %p181 = scmp.eq.s32.totalorder %s33, 3
      %p182 = por %p180, %p181
      %p184 = scmp.ne.s32.totalorder %s169, %s183
      %p185 = scmp.eq.s32.totalorder %s33, 0
      %p186 = por %p184, %p185
      %s188 = sadd.s32 %s187, 1
      %p191 = scmp.eq.s32.totalorder %s27, 3
      %p192 = scmp.ne.s32.totalorder %s187, %s189
      %p193 = scmp.eq.s32.totalorder %s27, 0
      %p194 = por %p192, %p193
      %p195 = scmp.ne.s32.totalorder %s187, %s189
      %p196 = scmp.eq.s32.totalorder %s32, 3
      %p197 = por %p195, %p196
      %p198 = scmp.ne.s32.totalorder %s189, %s190
      %p199 = scmp.eq.s32.totalorder %s32, 0
      %p200 = por %p198, %p199
      %p201 = scmp.ne.s32.totalorder %s189, %s190
      %p202 = scmp.eq.s32.totalorder %s33, 3
      %p203 = por %p201, %p202
      %p205 = scmp.ne.s32.totalorder %s190, %s204
      %p206 = scmp.eq.s32.totalorder %s33, 0
      %p207 = por %p205, %p206
      %s209 = sadd.s32 %s208, 1
      %p212 = scmp.eq.s32.totalorder %s27, 3
      %p213 = scmp.ne.s32.totalorder %s208, %s210
      %p214 = scmp.eq.s32.totalorder %s27, 0
      %p215 = por %p213, %p214
      %p216 = scmp.ne.s32.totalorder %s208, %s210
      %p217 = scmp.eq.s32.totalorder %s32, 3
      %p218 = por %p216, %p217
      %p219 = scmp.ne.s32.totalorder %s210, %s211
      %p220 = scmp.eq.s32.totalorder %s32, 0
      %p221 = por %p219, %p220
      %p222 = scmp.ne.s32.totalorder %s210, %s211
      %p223 = scmp.eq.s32.totalorder %s33, 3
      %p224 = por %p222, %p223
      %p226 = scmp.ne.s32.totalorder %s211, %s225
      %p227 = scmp.eq.s32.totalorder %s33, 0
      %p228 = por %p226, %p227
      %s230 = sadd.s32 %s229, 1
      %p233 = scmp.eq.s32.totalorder %s27, 3
      %p234 = scmp.ne.s32.totalorder %s229, %s231
      %p235 = scmp.eq.s32.totalorder %s27, 0
      %p236 = por %p234, %p235
      %p237 = scmp.ne.s32.totalorder %s229, %s231
      %p238 = scmp.eq.s32.totalorder %s32, 3
      %p239 = por %p237, %p238
      %p240 = scmp.ne.s32.totalorder %s231, %s232
      %p241 = scmp.eq.s32.totalorder %s32, 0
      %p242 = por %p240, %p241
      %p243 = scmp.ne.s32.totalorder %s231, %s232
      %p244 = scmp.eq.s32.totalorder %s33, 3
      %p245 = por %p243, %p244
      %p247 = scmp.ne.s32.totalorder %s232, %s246
      %p248 = scmp.eq.s32.totalorder %s33, 0
      %p249 = por %p247, %p248
      %s251 = sadd.s32 %s250, 1
      %p254 = scmp.eq.s32.totalorder %s27, 3
      %p255 = scmp.ne.s32.totalorder %s250, %s252
      %p256 = scmp.eq.s32.totalorder %s27, 0
      %p257 = por %p255, %p256
      %p258 = scmp.ne.s32.totalorder %s250, %s252
      %p259 = scmp.eq.s32.totalorder %s32, 3
      %p260 = por %p258, %p259
      %p261 = scmp.ne.s32.totalorder %s252, %s253
      %p262 = scmp.eq.s32.totalorder %s32, 0
      %p263 = por %p261, %p262
      %p264 = scmp.ne.s32.totalorder %s252, %s253
      %p265 = scmp.eq.s32.totalorder %s33, 3
      %p266 = por %p264, %p265
      %p268 = scmp.ne.s32.totalorder %s253, %s267
      %p269 = scmp.eq.s32.totalorder %s33, 0
      %p270 = por %p268, %p269
      %s271 = ssub.s32 %s27, %s34
      %p272 = scmp.eq.s32.totalorder %s271, 0
      %s274 = sadd.s32 %s273, 1
      %s275 = scalar_select %p272, %s273, %s274
      %p278 = pneg %p272
      %p279 = scmp.eq.s32.totalorder %s27, 3
      %p280 = por %p278, %p279
      %p281 = scmp.ne.s32.totalorder %s273, %s276
      %p282 = scmp.eq.s32.totalorder %s27, 0
      %p283 = por %p281, %p282
      %p284 = scmp.ne.s32.totalorder %s273, %s276
      %p285 = scmp.eq.s32.totalorder %s32, 3
      %p286 = por %p284, %p285
      %p287 = scmp.ne.s32.totalorder %s276, %s277
      %p288 = scmp.eq.s32.totalorder %s32, 0
      %p289 = por %p287, %p288
      %p290 = scmp.ne.s32.totalorder %s276, %s277
      %p291 = scmp.eq.s32.totalorder %s33, 3
      %p292 = por %p290, %p291
      %p294 = scmp.ne.s32.totalorder %s277, %s293
      %p295 = scmp.eq.s32.totalorder %s33, 0
      %p296 = por %p294, %p295
      %p297 = scmp.le.s32.totalorder 1, %s27
      %p298 = scmp.lt.s32.totalorder %s27, 5
      %p299 = pnand %p297, %p298
      %p300 = pneg %p299
      // Predicated region
      $region9: #{tpu_custom_call.1} parent=5 // pred_check
        _
      $region10: #{tpu_custom_call.1} parent=5 // pred_check_branch
        %302 = sbr.rel (%p299) target = $region12
      $region11: #{tpu_custom_call.1} parent=5 // pred_region
        %s303 = ssub.s32 %s27, 1
        // Predicated region
        $region13: #{tpu_custom_call.1} parent=11 // pred_check
          %p304 = pneg %p74
        $region14: #{tpu_custom_call.1} parent=11 // pred_check_branch
          %306 = sbr.rel (%p304) target = $region16
        $region15: #{tpu_custom_call.1} parent=11 // pred_region
          %s308 = ssub.s32 128, 128
          %309 = vsyncadd [#allocation6], %s308
          %s311 = sshll.u32 [#allocation5], 4
          %s312 = int_to_ptr.vmem [resolvable:$true] %s311
          %314 = dma.hbm_to_vmem [thread:$0]  %s1, 128, %s312, [#allocation6]
        $region16: #{tpu_custom_call.1} parent=11 // pred_fallthru
          _
        // Predicated region
        $region17: #{tpu_custom_call.1} parent=11 // pred_check
          %p315 = pneg %p95
        $region18: #{tpu_custom_call.1} parent=11 // pred_check_branch
          %317 = sbr.rel (%p315) target = $region20
        $region19: #{tpu_custom_call.1} parent=11 // pred_region
          %s319 = ssub.s32 8192, 8192
          %320 = vsyncadd [#allocation6], %s319
          %s321 = sshll.u32 [#allocation7], 4
          %s322 = int_to_ptr.vmem [resolvable:$true] %s321
          %327 = dma.hbm_to_vmem [thread:$0]  %s2, 8192, %s322, [#allocation6], 256, 256, 16
        $region20: #{tpu_custom_call.1} parent=11 // pred_fallthru
          _
        // Predicated region
        $region21: #{tpu_custom_call.1} parent=11 // pred_check
          %p328 = pneg %p116
        $region22: #{tpu_custom_call.1} parent=11 // pred_check_branch
          %330 = sbr.rel (%p328) target = $region24
        $region23: #{tpu_custom_call.1} parent=11 // pred_region
          _
        $region24: #{tpu_custom_call.1} parent=11 // pred_fallthru
          _
        // Predicated region
        $region25: #{tpu_custom_call.1} parent=11 // pred_check
          %p331 = pneg %p137
        $region26: #{tpu_custom_call.1} parent=11 // pred_check_branch
          %333 = sbr.rel (%p331) target = $region28
        $region27: #{tpu_custom_call.1} parent=11 // pred_region
          %s335 = ssub.s32 2048, 2048
          %336 = vsyncadd [#allocation9], %s335
          %s337 = sshll.u32 [#allocation8], 4
          %s338 = int_to_ptr.vmem [resolvable:$true] %s337
          %343 = dma.hbm_to_vmem [thread:$0]  %s4, 2048, %s338, [#allocation9], 128, 128, 8
        $region28: #{tpu_custom_call.1} parent=11 // pred_fallthru
          _
        // Predicated region
        $region29: #{tpu_custom_call.1} parent=11 // pred_check
          %p344 = pneg %p158
        $region30: #{tpu_custom_call.1} parent=11 // pred_check_branch
          %346 = sbr.rel (%p344) target = $region32
        $region31: #{tpu_custom_call.1} parent=11 // pred_region
          %s348 = ssub.s32 768, 768
          %349 = vsyncadd [#allocation9], %s348
          %s350 = sshll.u32 [#allocation10], 4
          %s351 = int_to_ptr.vmem [resolvable:$true] %s350
          %356 = dma.hbm_to_vmem [thread:$0]  %s5, 768, %s351, [#allocation9], 256, 256, 16
        $region32: #{tpu_custom_call.1} parent=11 // pred_fallthru
          _
        // Predicated region
        $region33: #{tpu_custom_call.1} parent=11 // pred_check
          %p357 = pneg %p179
        $region34: #{tpu_custom_call.1} parent=11 // pred_check_branch
          %359 = sbr.rel (%p357) target = $region36
        $region35: #{tpu_custom_call.1} parent=11 // pred_region
          %s361 = ssub.s32 384, 384
          %362 = vsyncadd [#allocation12], %s361
          %s363 = sshll.u32 [#allocation11], 4
          %s364 = int_to_ptr.vmem [resolvable:$true] %s363
          %369 = dma.hbm_to_vmem [thread:$0]  %s6, 384, %s364, [#allocation12], 128, 128, 8
        $region36: #{tpu_custom_call.1} parent=11 // pred_fallthru
          _
        // Predicated region
        $region37: #{tpu_custom_call.1} parent=11 // pred_check
          %p370 = pneg %p200
        $region38: #{tpu_custom_call.1} parent=11 // pred_check_branch
          %372 = sbr.rel (%p370) target = $region40
        $region39: #{tpu_custom_call.1} parent=11 // pred_region
          _
        $region40: #{tpu_custom_call.1} parent=11 // pred_fallthru
          _
        // Predicated region
        $region41: #{tpu_custom_call.1} parent=11 // pred_check
          %p373 = pneg %p221
        $region42: #{tpu_custom_call.1} parent=11 // pred_check_branch
          %375 = sbr.rel (%p373) target = $region44
        $region43: #{tpu_custom_call.1} parent=11 // pred_region
          %s377 = ssub.s32 2048, 2048
          %378 = vsyncadd [#allocation12], %s377
          %s379 = sshll.u32 [#allocation13], 4
          %s380 = int_to_ptr.vmem [resolvable:$true] %s379
          %385 = dma.hbm_to_vmem [thread:$0]  %s8, 2048, %s380, [#allocation12], 128, 128, 8
        $region44: #{tpu_custom_call.1} parent=11 // pred_fallthru
          _
        // Predicated region
        $region45: #{tpu_custom_call.1} parent=11 // pred_check
          %p386 = pneg %p242
        $region46: #{tpu_custom_call.1} parent=11 // pred_check_branch
          %388 = sbr.rel (%p386) target = $region48
        $region47: #{tpu_custom_call.1} parent=11 // pred_region
          %s390 = ssub.s32 2048, 2048
          %391 = vsyncadd [#allocation15], %s390
          %s392 = sshll.u32 [#allocation14], 4
          %s393 = int_to_ptr.vmem [resolvable:$true] %s392
          %398 = dma.hbm_to_vmem [thread:$0]  %s9, 2048, %s393, [#allocation15], 128, 128, 8
        $region48: #{tpu_custom_call.1} parent=11 // pred_fallthru
          _
        // Predicated region
        $region49: #{tpu_custom_call.1} parent=11 // pred_check
          %p399 = pneg %p263
        $region50: #{tpu_custom_call.1} parent=11 // pred_check_branch
          %401 = sbr.rel (%p399) target = $region52
        $region51: #{tpu_custom_call.1} parent=11 // pred_region
          %s403 = ssub.s32 896, 896
          %404 = vsyncadd [#allocation15], %s403
          %s405 = sshll.u32 [#allocation16], 4
          %s406 = int_to_ptr.vmem [resolvable:$true] %s405
          %411 = dma.hbm_to_vmem [thread:$0]  %s10, 896, %s406, [#allocation15], 128, 128, 8
        $region52: #{tpu_custom_call.1} parent=11 // pred_fallthru
          _
      $region12: #{tpu_custom_call.1} parent=5 // pred_fallthru
        _
      %p412 = scmp.lt.s32.totalorder %s27, 4
      // Predicated region
      $region53: #{tpu_custom_call.1} parent=5 // pred_check
        %p413 = pneg %p412
      $region54: #{tpu_custom_call.1} parent=5 // pred_check_branch
        %415 = sbr.rel (%p413) target = $region56
      $region55: #{tpu_custom_call.1} parent=5 // pred_region
        // Predicated region
        $region57: #{tpu_custom_call.1} parent=55 // pred_check
          %p416 = pneg %p47
        $region58: #{tpu_custom_call.1} parent=55 // pred_check_branch
          %418 = sbr.rel (%p416) target = $region60
        $region59: #{tpu_custom_call.1} parent=55 // pred_region
          %s419 = sand.u32 %s37, 1
          %s420 = scalar_lea.sflag [#allocation3], %s419
          %s421 = sand.u32 %s37, 1
          %s422 = smul.addr %s421, 256
          %s423 = scalar_lea.vmem [#allocation2], %s422
          %s424 = smul.u32 16, %s27
          %s426 = ssub.s32 4096, 4096
          %427 = vsyncadd %s420, %s426
          %s428 = smul.addr %s424, 2
          %s429 = smul.addr %s428, 128
          %s430 = scalar_lea.hbm %s0, %s429
          %s431 = sshll.u32 %s423, 4
          %s432 = int_to_ptr.vmem [resolvable:$true] %s431
          %437 = dma.hbm_to_vmem [thread:$0]  %s430, 4096, %s432, %s420, 256, 256, 16
        $region60: #{tpu_custom_call.1} parent=55 // pred_fallthru
          _
      $region56: #{tpu_custom_call.1} parent=5 // pred_fallthru
        _
      %p438 = scmp.le.s32.totalorder 1, %s27
      %p439 = scmp.lt.s32.totalorder %s27, 5
      %p440 = pnand %p438, %p439
      %p441 = pneg %p440
      // Predicated region
      $region61: #{tpu_custom_call.1} parent=5 // pred_check
        _
      $region62: #{tpu_custom_call.1} parent=5 // pred_check_branch
        %443 = sbr.rel (%p440) target = $region64
      $region63: #{tpu_custom_call.1} parent=5 // pred_region
        %s444 = ssub.s32 %s27, 1
        %s445 = sand.u32 %s40, 1
        %s446 = scalar_lea.sflag [#allocation3], %s445
        %s447 = sand.u32 %s40, 1
        %s448 = smul.addr %s447, 256
        %s449 = scalar_lea.vmem [#allocation2], %s448
        // Predicated region
        $region65: #{tpu_custom_call.1} parent=63 // pred_check
          %p450 = pneg %p53
        $region66: #{tpu_custom_call.1} parent=63 // pred_check_branch
          %452 = sbr.rel (%p450) target = $region68
        $region67: #{tpu_custom_call.1} parent=63 // pred_region
          %453 = dma.done %s446, 4096
        $region68: #{tpu_custom_call.1} parent=63 // pred_fallthru
          _
        // Predicated region
        $region69: #{tpu_custom_call.1} parent=63 // pred_check
          %p454 = pneg %p74
        $region70: #{tpu_custom_call.1} parent=63 // pred_check_branch
          %456 = sbr.rel (%p454) target = $region72
        $region71: #{tpu_custom_call.1} parent=63 // pred_region
          %457 = dma.done [#allocation6], 128
        $region72: #{tpu_custom_call.1} parent=63 // pred_fallthru
          _
        // Predicated region
        $region73: #{tpu_custom_call.1} parent=63 // pred_check
          %p458 = pneg %p95
        $region74: #{tpu_custom_call.1} parent=63 // pred_check_branch
          %460 = sbr.rel (%p458) target = $region76
        $region75: #{tpu_custom_call.1} parent=63 // pred_region
          %461 = dma.done [#allocation6], 8192
        $region76: #{tpu_custom_call.1} parent=63 // pred_fallthru
          _
        // Predicated region
        $region77: #{tpu_custom_call.1} parent=63 // pred_check
          %p462 = pneg %p137
        $region78: #{tpu_custom_call.1} parent=63 // pred_check_branch
          %464 = sbr.rel (%p462) target = $region80
        $region79: #{tpu_custom_call.1} parent=63 // pred_region
          %465 = dma.done [#allocation9], 2048
        $region80: #{tpu_custom_call.1} parent=63 // pred_fallthru
          _
        // Predicated region
        $region81: #{tpu_custom_call.1} parent=63 // pred_check
          %p466 = pneg %p158
        $region82: #{tpu_custom_call.1} parent=63 // pred_check_branch
          %468 = sbr.rel (%p466) target = $region84
        $region83: #{tpu_custom_call.1} parent=63 // pred_region
          %469 = dma.done [#allocation9], 768
        $region84: #{tpu_custom_call.1} parent=63 // pred_fallthru
          _
        // Predicated region
        $region85: #{tpu_custom_call.1} parent=63 // pred_check
          %p470 = pneg %p179
        $region86: #{tpu_custom_call.1} parent=63 // pred_check_branch
          %472 = sbr.rel (%p470) target = $region88
        $region87: #{tpu_custom_call.1} parent=63 // pred_region
          %473 = dma.done [#allocation12], 384
        $region88: #{tpu_custom_call.1} parent=63 // pred_fallthru
          _
        // Predicated region
        $region89: #{tpu_custom_call.1} parent=63 // pred_check
          %p474 = pneg %p221
        $region90: #{tpu_custom_call.1} parent=63 // pred_check_branch
          %476 = sbr.rel (%p474) target = $region92
        $region91: #{tpu_custom_call.1} parent=63 // pred_region
          %477 = dma.done [#allocation12], 2048
        $region92: #{tpu_custom_call.1} parent=63 // pred_fallthru
          _
        // Predicated region
        $region93: #{tpu_custom_call.1} parent=63 // pred_check
          %p478 = pneg %p242
        $region94: #{tpu_custom_call.1} parent=63 // pred_check_branch
          %480 = sbr.rel (%p478) target = $region96
        $region95: #{tpu_custom_call.1} parent=63 // pred_region
          %481 = dma.done [#allocation15], 2048
        $region96: #{tpu_custom_call.1} parent=63 // pred_fallthru
          _
        // Predicated region
        $region97: #{tpu_custom_call.1} parent=63 // pred_check
          %p482 = pneg %p263
        $region98: #{tpu_custom_call.1} parent=63 // pred_check_branch
          %484 = sbr.rel (%p482) target = $region100
        $region99: #{tpu_custom_call.1} parent=63 // pred_region
          %485 = dma.done [#allocation15], 896
        $region100: #{tpu_custom_call.1} parent=63 // pred_fallthru
          _
        %s486 = sand.u32 %s40, 1
        %s487 = scalar_lea.sflag [#allocation3], %s486
        %s488 = sand.u32 %s40, 1
        %s489 = smul.addr %s488, 256
        %s490 = scalar_lea.vmem [#allocation2], %s489
        %p491 = pneg %p53
        %p492 = pneg %p50
        %p493 = pneg %p74
        %p494 = pneg %p71
        %p495 = pneg %p95
        %p496 = pneg %p92
        %p497 = pneg %p116
        %p498 = pneg %p113
        %p499 = pneg %p137
        %p500 = pneg %p134
        %p501 = pneg %p158
        %p502 = pneg %p155
        %p503 = pneg %p179
        %p504 = pneg %p176
        %p505 = pneg %p200
        %p506 = pneg %p197
        %p507 = pneg %p221
        %p508 = pneg %p218
        %p509 = pneg %p242
        %p510 = pneg %p239
        %p511 = pneg %p263
        %p512 = pneg %p260
        %p513 = pneg %p289
        %p514 = pneg %p286
        %s515 = sand.u32 %s276, 1
        %s516 = scalar_lea.sflag [#allocation4], %s515
        %s517 = sand.u32 %s276, 1
        %s518 = smul.addr %s517, 128
        %s519 = scalar_lea.vmem [#allocation17], %s518
        %s520 = smul.u32 16, %s32
        %s521 = smul.u32 16, %s32
        %v522 = vld [vmem:[%s449] sm:$0xff]
        %v523 = vld [vmem:[%s449 + $0x8] sm:$0xff]
        %v524 = vld [vmem:[%s449 + $0x10] sm:$0xff]
        %v525 = vld [vmem:[%s449 + $0x18] sm:$0xff]
        %v526 = vld [vmem:[%s449 + $0x20] sm:$0xff]
        %v527 = vld [vmem:[%s449 + $0x28] sm:$0xff]
        %v528 = vld [vmem:[%s449 + $0x30] sm:$0xff]
        %v529 = vld [vmem:[%s449 + $0x38] sm:$0xff]
        %v530 = vld [vmem:[%s449 + $0x40] sm:$0xff]
        %v531 = vld [vmem:[%s449 + $0x48] sm:$0xff]
        %v532 = vld [vmem:[%s449 + $0x50] sm:$0xff]
        %v533 = vld [vmem:[%s449 + $0x58] sm:$0xff]
        %v534 = vld [vmem:[%s449 + $0x60] sm:$0xff]
        %v535 = vld [vmem:[%s449 + $0x68] sm:$0xff]
        %v536 = vld [vmem:[%s449 + $0x70] sm:$0xff]
        %v537 = vld [vmem:[%s449 + $0x78] sm:$0xff]
        %v538 = vld [vmem:[%s449 + $0x80] sm:$0xff]
        %v539 = vld [vmem:[%s449 + $0x88] sm:$0xff]
        %v540 = vld [vmem:[%s449 + $0x90] sm:$0xff]
        %v541 = vld [vmem:[%s449 + $0x98] sm:$0xff]
        %v542 = vld [vmem:[%s449 + $0xa0] sm:$0xff]
        %v543 = vld [vmem:[%s449 + $0xa8] sm:$0xff]
        %v544 = vld [vmem:[%s449 + $0xb0] sm:$0xff]
        %v545 = vld [vmem:[%s449 + $0xb8] sm:$0xff]
        %v546 = vld [vmem:[%s449 + $0xc0] sm:$0xff]
        %v547 = vld [vmem:[%s449 + $0xc8] sm:$0xff]
        %v548 = vld [vmem:[%s449 + $0xd0] sm:$0xff]
        %v549 = vld [vmem:[%s449 + $0xd8] sm:$0xff]
        %v550 = vld [vmem:[%s449 + $0xe0] sm:$0xff]
        %v551 = vld [vmem:[%s449 + $0xe8] sm:$0xff]
        %v552 = vld [vmem:[%s449 + $0xf0] sm:$0xff]
        %v553 = vld [vmem:[%s449 + $0xf8] sm:$0xff]
        %v554 = vld [vmem:[#allocation10] sm:$0xff]
        %v555 = vld [vmem:[#allocation10 + $0x8] sm:$0xff]
        %v556 = vld [vmem:[#allocation10 + $0x10] sm:$0xff]
        %v557 = vld [vmem:[#allocation10 + $0x18] sm:$0xff]
        %v558 = vld [vmem:[#allocation10 + $0x20] sm:$0xff]
        %v559 = vld [vmem:[#allocation10 + $0x28] sm:$0xff]
        %v560 = vld [vmem:[#allocation11] sm:$0xff]
        %v561 = vld [vmem:[#allocation11 + $0x8] sm:$0xff]
        %v562 = vld [vmem:[#allocation11 + $0x10] sm:$0xff]
        %v563 = vld [vmem:[#allocation5] sm:$0xff]
        %565 = vset.pattern.permute.xlu0 0
        %566 = vperm.xlu0 %565, %v563
        %v567 = vpop.permute.xlu0 %566
        %v569 = vlaneseq
        %v570 = vshrl.u32 %v569, 7
        %v571 = vsub.s32 0, %v570
        %v572 = vrot.slane %v522, %v571
        %v573 = vlaneseq
        %v574 = vshrl.u32 %v573, 7
        %v575 = vsub.s32 0, %v574
        %v576 = vrot.slane %v523, %v575
        %v577 = vlaneseq
        %v578 = vshrl.u32 %v577, 7
        %v579 = vsub.s32 0, %v578
        %v580 = vrot.slane %v524, %v579
        %v581 = vlaneseq
        %v582 = vshrl.u32 %v581, 7
        %v583 = vsub.s32 0, %v582
        %v584 = vrot.slane %v525, %v583
        %v585 = vlaneseq
        %v586 = vshrl.u32 %v585, 7
        %v587 = vsub.s32 0, %v586
        %v588 = vrot.slane %v526, %v587
        %v589 = vlaneseq
        %v590 = vshrl.u32 %v589, 7
        %v591 = vsub.s32 0, %v590
        %v592 = vrot.slane %v527, %v591
        %v593 = vlaneseq
        %v594 = vshrl.u32 %v593, 7
        %v595 = vsub.s32 0, %v594
        %v596 = vrot.slane %v528, %v595
        %v597 = vlaneseq
        %v598 = vshrl.u32 %v597, 7
        %v599 = vsub.s32 0, %v598
        %v600 = vrot.slane %v529, %v599
        %v601 = vlaneseq
        %v602 = vshrl.u32 %v601, 7
        %v603 = vsub.s32 0, %v602
        %v604 = vrot.slane %v530, %v603
        %v605 = vlaneseq
        %v606 = vshrl.u32 %v605, 7
        %v607 = vsub.s32 0, %v606
        %v608 = vrot.slane %v531, %v607
        %v609 = vlaneseq
        %v610 = vshrl.u32 %v609, 7
        %v611 = vsub.s32 0, %v610
        %v612 = vrot.slane %v532, %v611
        %v613 = vlaneseq
        %v614 = vshrl.u32 %v613, 7
        %v615 = vsub.s32 0, %v614
        %v616 = vrot.slane %v533, %v615
        %v617 = vlaneseq
        %v618 = vshrl.u32 %v617, 7
        %v619 = vsub.s32 0, %v618
        %v620 = vrot.slane %v534, %v619
        %v621 = vlaneseq
        %v622 = vshrl.u32 %v621, 7
        %v623 = vsub.s32 0, %v622
        %v624 = vrot.slane %v535, %v623
        %v625 = vlaneseq
        %v626 = vshrl.u32 %v625, 7
        %v627 = vsub.s32 0, %v626
        %v628 = vrot.slane %v536, %v627
        %v629 = vlaneseq
        %v630 = vshrl.u32 %v629, 7
        %v631 = vsub.s32 0, %v630
        %v632 = vrot.slane %v537, %v631
        %v633 = vlaneseq
        %v634 = vshrl.u32 %v633, 7
        %v635 = vsub.s32 0, %v634
        %v636 = vrot.slane %v538, %v635
        %v637 = vlaneseq
        %v638 = vshrl.u32 %v637, 7
        %v639 = vsub.s32 0, %v638
        %v640 = vrot.slane %v539, %v639
        %v641 = vlaneseq
        %v642 = vshrl.u32 %v641, 7
        %v643 = vsub.s32 0, %v642
        %v644 = vrot.slane %v540, %v643
        %v645 = vlaneseq
        %v646 = vshrl.u32 %v645, 7
        %v647 = vsub.s32 0, %v646
        %v648 = vrot.slane %v541, %v647
        %v649 = vlaneseq
        %v650 = vshrl.u32 %v649, 7
        %v651 = vsub.s32 0, %v650
        %v652 = vrot.slane %v542, %v651
        %v653 = vlaneseq
        %v654 = vshrl.u32 %v653, 7
        %v655 = vsub.s32 0, %v654
        %v656 = vrot.slane %v543, %v655
        %v657 = vlaneseq
        %v658 = vshrl.u32 %v657, 7
        %v659 = vsub.s32 0, %v658
        %v660 = vrot.slane %v544, %v659
        %v661 = vlaneseq
        %v662 = vshrl.u32 %v661, 7
        %v663 = vsub.s32 0, %v662
        %v664 = vrot.slane %v545, %v663
        %v665 = vlaneseq
        %v666 = vshrl.u32 %v665, 7
        %v667 = vsub.s32 0, %v666
        %v668 = vrot.slane %v546, %v667
        %v669 = vlaneseq
        %v670 = vshrl.u32 %v669, 7
        %v671 = vsub.s32 0, %v670
        %v672 = vrot.slane %v547, %v671
        %v673 = vlaneseq
        %v674 = vshrl.u32 %v673, 7
        %v675 = vsub.s32 0, %v674
        %v676 = vrot.slane %v548, %v675
        %v677 = vlaneseq
        %v678 = vshrl.u32 %v677, 7
        %v679 = vsub.s32 0, %v678
        %v680 = vrot.slane %v549, %v679
        %v681 = vlaneseq
        %v682 = vshrl.u32 %v681, 7
        %v683 = vsub.s32 0, %v682
        %v684 = vrot.slane %v550, %v683
        %v685 = vlaneseq
        %v686 = vshrl.u32 %v685, 7
        %v687 = vsub.s32 0, %v686
        %v688 = vrot.slane %v551, %v687
        %v689 = vlaneseq
        %v690 = vshrl.u32 %v689, 7
        %v691 = vsub.s32 0, %v690
        %v692 = vrot.slane %v552, %v691
        %v693 = vlaneseq
        %v694 = vshrl.u32 %v693, 7
        %v695 = vsub.s32 0, %v694
        %v696 = vrot.slane %v553, %v695
        %v697 = vmul.f32 %v567, %v572
        %v698 = vmul.f32 %v567, %v576
        %v699 = vmul.f32 %v567, %v580
        %v700 = vmul.f32 %v567, %v584
        %v701 = vmul.f32 %v567, %v588
        %v702 = vmul.f32 %v567, %v592
        %v703 = vmul.f32 %v567, %v596
        %v704 = vmul.f32 %v567, %v600
        %v705 = vmul.f32 %v567, %v604
        %v706 = vmul.f32 %v567, %v608
        %v707 = vmul.f32 %v567, %v612
        %v708 = vmul.f32 %v567, %v616
        %v709 = vmul.f32 %v567, %v620
        %v710 = vmul.f32 %v567, %v624
        %v711 = vmul.f32 %v567, %v628
        %v712 = vmul.f32 %v567, %v632
        %v713 = vmul.f32 %v567, %v636
        %v714 = vmul.f32 %v567, %v640
        %v715 = vmul.f32 %v567, %v644
        %v716 = vmul.f32 %v567, %v648
        %v717 = vmul.f32 %v567, %v652
        %v718 = vmul.f32 %v567, %v656
        %v719 = vmul.f32 %v567, %v660
        %v720 = vmul.f32 %v567, %v664
        %v721 = vmul.f32 %v567, %v668
        %v722 = vmul.f32 %v567, %v672
        %v723 = vmul.f32 %v567, %v676
        %v724 = vmul.f32 %v567, %v680
        %v725 = vmul.f32 %v567, %v684
        %v726 = vmul.f32 %v567, %v688
        %v727 = vmul.f32 %v567, %v692
        %v728 = vmul.f32 %v567, %v696
        %v729 = vadd.f32 %v697, 0.0
        %v730 = vadd.f32 %v698, 0.0
        %v731 = vadd.f32 %v699, 0.0
        %v732 = vadd.f32 %v700, 0.0
        %v733 = vadd.f32 %v701, 0.0
        %v734 = vadd.f32 %v702, 0.0
        %v735 = vadd.f32 %v703, 0.0
        %v736 = vadd.f32 %v704, 0.0
        %v737 = vadd.f32 %v705, 0.0
        %v738 = vadd.f32 %v706, 0.0
        %v739 = vadd.f32 %v707, 0.0
        %v740 = vadd.f32 %v708, 0.0
        %v741 = vadd.f32 %v709, 0.0
        %v742 = vadd.f32 %v710, 0.0
        %v743 = vadd.f32 %v711, 0.0
        %v744 = vadd.f32 %v712, 0.0
        %v745 = vadd.f32 %v713, 0.0
        %v746 = vadd.f32 %v714, 0.0
        %v747 = vadd.f32 %v715, 0.0
        %v748 = vadd.f32 %v716, 0.0
        %v749 = vadd.f32 %v717, 0.0
        %v750 = vadd.f32 %v718, 0.0
        %v751 = vadd.f32 %v719, 0.0
        %v752 = vadd.f32 %v720, 0.0
        %v753 = vadd.f32 %v721, 0.0
        %v754 = vadd.f32 %v722, 0.0
        %v755 = vadd.f32 %v723, 0.0
        %v756 = vadd.f32 %v724, 0.0
        %v757 = vadd.f32 %v725, 0.0
        %v758 = vadd.f32 %v726, 0.0
        %v759 = vadd.f32 %v727, 0.0
        %v760 = vadd.f32 %v728, 0.0
        %761 = vset.pattern.permute.xlu0 1
        %762 = vperm.xlu0 %761, %v563
        %v763 = vpop.permute.xlu0 %762
        %v765 = vlaneseq
        %v766 = vshrl.u32 %v765, 7
        %v767 = vsub.s32 1, %v766
        %v768 = vrot.slane %v522, %v767
        %v769 = vlaneseq
        %v770 = vshrl.u32 %v769, 7
        %v771 = vsub.s32 1, %v770
        %v772 = vrot.slane %v523, %v771
        %v773 = vlaneseq
        %v774 = vshrl.u32 %v773, 7
        %v775 = vsub.s32 1, %v774
        %v776 = vrot.slane %v524, %v775
        %v777 = vlaneseq
        %v778 = vshrl.u32 %v777, 7
        %v779 = vsub.s32 1, %v778
        %v780 = vrot.slane %v525, %v779
        %v781 = vlaneseq
        %v782 = vshrl.u32 %v781, 7
        %v783 = vsub.s32 1, %v782
        %v784 = vrot.slane %v526, %v783
        %v785 = vlaneseq
        %v786 = vshrl.u32 %v785, 7
        %v787 = vsub.s32 1, %v786
        %v788 = vrot.slane %v527, %v787
        %v789 = vlaneseq
        %v790 = vshrl.u32 %v789, 7
        %v791 = vsub.s32 1, %v790
        %v792 = vrot.slane %v528, %v791
        %v793 = vlaneseq
        %v794 = vshrl.u32 %v793, 7
        %v795 = vsub.s32 1, %v794
        %v796 = vrot.slane %v529, %v795
        %v797 = vlaneseq
        %v798 = vshrl.u32 %v797, 7
        %v799 = vsub.s32 1, %v798
        %v800 = vrot.slane %v530, %v799
        %v801 = vlaneseq
        %v802 = vshrl.u32 %v801, 7
        %v803 = vsub.s32 1, %v802
        %v804 = vrot.slane %v531, %v803
        %v805 = vlaneseq
        %v806 = vshrl.u32 %v805, 7
        %v807 = vsub.s32 1, %v806
        %v808 = vrot.slane %v532, %v807
        %v809 = vlaneseq
        %v810 = vshrl.u32 %v809, 7
        %v811 = vsub.s32 1, %v810
        %v812 = vrot.slane %v533, %v811
        %v813 = vlaneseq
        %v814 = vshrl.u32 %v813, 7
        %v815 = vsub.s32 1, %v814
        %v816 = vrot.slane %v534, %v815
        %v817 = vlaneseq
        %v818 = vshrl.u32 %v817, 7
        %v819 = vsub.s32 1, %v818
        %v820 = vrot.slane %v535, %v819
        %v821 = vlaneseq
        %v822 = vshrl.u32 %v821, 7
        %v823 = vsub.s32 1, %v822
        %v824 = vrot.slane %v536, %v823
        %v825 = vlaneseq
        %v826 = vshrl.u32 %v825, 7
        %v827 = vsub.s32 1, %v826
        %v828 = vrot.slane %v537, %v827
        %v829 = vlaneseq
        %v830 = vshrl.u32 %v829, 7
        %v831 = vsub.s32 1, %v830
        %v832 = vrot.slane %v538, %v831
        %v833 = vlaneseq
        %v834 = vshrl.u32 %v833, 7
        %v835 = vsub.s32 1, %v834
        %v836 = vrot.slane %v539, %v835
        %v837 = vlaneseq
        %v838 = vshrl.u32 %v837, 7
        %v839 = vsub.s32 1, %v838
        %v840 = vrot.slane %v540, %v839
        %v841 = vlaneseq
        %v842 = vshrl.u32 %v841, 7
        %v843 = vsub.s32 1, %v842
        %v844 = vrot.slane %v541, %v843
        %v845 = vlaneseq
        %v846 = vshrl.u32 %v845, 7
        %v847 = vsub.s32 1, %v846
        %v848 = vrot.slane %v542, %v847
        %v849 = vlaneseq
        %v850 = vshrl.u32 %v849, 7
        %v851 = vsub.s32 1, %v850
        %v852 = vrot.slane %v543, %v851
        %v853 = vlaneseq
        %v854 = vshrl.u32 %v853, 7
        %v855 = vsub.s32 1, %v854
        %v856 = vrot.slane %v544, %v855
        %v857 = vlaneseq
        %v858 = vshrl.u32 %v857, 7
        %v859 = vsub.s32 1, %v858
        %v860 = vrot.slane %v545, %v859
        %v861 = vlaneseq
        %v862 = vshrl.u32 %v861, 7
        %v863 = vsub.s32 1, %v862
        %v864 = vrot.slane %v546, %v863
        %v865 = vlaneseq
        %v866 = vshrl.u32 %v865, 7
        %v867 = vsub.s32 1, %v866
        %v868 = vrot.slane %v547, %v867
        %v869 = vlaneseq
        %v870 = vshrl.u32 %v869, 7
        %v871 = vsub.s32 1, %v870
        %v872 = vrot.slane %v548, %v871
        %v873 = vlaneseq
        %v874 = vshrl.u32 %v873, 7
        %v875 = vsub.s32 1, %v874
        %v876 = vrot.slane %v549, %v875
        %v877 = vlaneseq
        %v878 = vshrl.u32 %v877, 7
        %v879 = vsub.s32 1, %v878
        %v880 = vrot.slane %v550, %v879
        %v881 = vlaneseq
        %v882 = vshrl.u32 %v881, 7
        %v883 = vsub.s32 1, %v882
        %v884 = vrot.slane %v551, %v883
        %v885 = vlaneseq
        %v886 = vshrl.u32 %v885, 7
        %v887 = vsub.s32 1, %v886
        %v888 = vrot.slane %v552, %v887
        %v889 = vlaneseq
        %v890 = vshrl.u32 %v889, 7
        %v891 = vsub.s32 1, %v890
        %v892 = vrot.slane %v553, %v891
        %v893 = vmul.f32 %v763, %v768
        %v894 = vmul.f32 %v763, %v772
        %v895 = vmul.f32 %v763, %v776
        %v896 = vmul.f32 %v763, %v780
        %v897 = vmul.f32 %v763, %v784
        %v898 = vmul.f32 %v763, %v788
        %v899 = vmul.f32 %v763, %v792
        %v900 = vmul.f32 %v763, %v796
        %v901 = vmul.f32 %v763, %v800
        %v902 = vmul.f32 %v763, %v804
        %v903 = vmul.f32 %v763, %v808
        %v904 = vmul.f32 %v763, %v812
        %v905 = vmul.f32 %v763, %v816
        %v906 = vmul.f32 %v763, %v820
        %v907 = vmul.f32 %v763, %v824
        %v908 = vmul.f32 %v763, %v828
        %v909 = vmul.f32 %v763, %v832
        %v910 = vmul.f32 %v763, %v836
        %v911 = vmul.f32 %v763, %v840
        %v912 = vmul.f32 %v763, %v844
        %v913 = vmul.f32 %v763, %v848
        %v914 = vmul.f32 %v763, %v852
        %v915 = vmul.f32 %v763, %v856
        %v916 = vmul.f32 %v763, %v860
        %v917 = vmul.f32 %v763, %v864
        %v918 = vmul.f32 %v763, %v868
        %v919 = vmul.f32 %v763, %v872
        %v920 = vmul.f32 %v763, %v876
        %v921 = vmul.f32 %v763, %v880
        %v922 = vmul.f32 %v763, %v884
        %v923 = vmul.f32 %v763, %v888
        %v924 = vmul.f32 %v763, %v892
        %v925 = vadd.f32 %v729, %v893
        %v926 = vadd.f32 %v730, %v894
        %v927 = vadd.f32 %v731, %v895
        %v928 = vadd.f32 %v732, %v896
        %v929 = vadd.f32 %v733, %v897
        %v930 = vadd.f32 %v734, %v898
        %v931 = vadd.f32 %v735, %v899
        %v932 = vadd.f32 %v736, %v900
        %v933 = vadd.f32 %v737, %v901
        %v934 = vadd.f32 %v738, %v902
        %v935 = vadd.f32 %v739, %v903
        %v936 = vadd.f32 %v740, %v904
        %v937 = vadd.f32 %v741, %v905
        %v938 = vadd.f32 %v742, %v906
        %v939 = vadd.f32 %v743, %v907
        %v940 = vadd.f32 %v744, %v908
        %v941 = vadd.f32 %v745, %v909
        %v942 = vadd.f32 %v746, %v910
        %v943 = vadd.f32 %v747, %v911
        %v944 = vadd.f32 %v748, %v912
        %v945 = vadd.f32 %v749, %v913
        %v946 = vadd.f32 %v750, %v914
        %v947 = vadd.f32 %v751, %v915
        %v948 = vadd.f32 %v752, %v916
        %v949 = vadd.f32 %v753, %v917
        %v950 = vadd.f32 %v754, %v918
        %v951 = vadd.f32 %v755, %v919
        %v952 = vadd.f32 %v756, %v920
        %v953 = vadd.f32 %v757, %v921
        %v954 = vadd.f32 %v758, %v922
        %v955 = vadd.f32 %v759, %v923
        %v956 = vadd.f32 %v760, %v924
        %957 = vset.pattern.permute.xlu0 2
        %958 = vperm.xlu0 %957, %v563
        %v959 = vpop.permute.xlu0 %958
        %v961 = vlaneseq
        %v962 = vshrl.u32 %v961, 7
        %v963 = vsub.s32 2, %v962
        %v964 = vrot.slane %v522, %v963
        %v965 = vlaneseq
        %v966 = vshrl.u32 %v965, 7
        %v967 = vsub.s32 2, %v966
        %v968 = vrot.slane %v523, %v967
        %v969 = vlaneseq
        %v970 = vshrl.u32 %v969, 7
        %v971 = vsub.s32 2, %v970
        %v972 = vrot.slane %v524, %v971
        %v973 = vlaneseq
        %v974 = vshrl.u32 %v973, 7
        %v975 = vsub.s32 2, %v974
        %v976 = vrot.slane %v525, %v975
        %v977 = vlaneseq
        %v978 = vshrl.u32 %v977, 7
        %v979 = vsub.s32 2, %v978
        %v980 = vrot.slane %v526, %v979
        %v981 = vlaneseq
        %v982 = vshrl.u32 %v981, 7
        %v983 = vsub.s32 2, %v982
        %v984 = vrot.slane %v527, %v983
        %v985 = vlaneseq
        %v986 = vshrl.u32 %v985, 7
        %v987 = vsub.s32 2, %v986
        %v988 = vrot.slane %v528, %v987
        %v989 = vlaneseq
        %v990 = vshrl.u32 %v989, 7
        %v991 = vsub.s32 2, %v990
        %v992 = vrot.slane %v529, %v991
        %v993 = vlaneseq
        %v994 = vshrl.u32 %v993, 7
        %v995 = vsub.s32 2, %v994
        %v996 = vrot.slane %v530, %v995
        %v997 = vlaneseq
        %v998 = vshrl.u32 %v997, 7
        %v999 = vsub.s32 2, %v998
        %v1000 = vrot.slane %v531, %v999
        %v1001 = vlaneseq
        %v1002 = vshrl.u32 %v1001, 7
        %v1003 = vsub.s32 2, %v1002
        %v1004 = vrot.slane %v532, %v1003
        %v1005 = vlaneseq
        %v1006 = vshrl.u32 %v1005, 7
        %v1007 = vsub.s32 2, %v1006
        %v1008 = vrot.slane %v533, %v1007
        %v1009 = vlaneseq
        %v1010 = vshrl.u32 %v1009, 7
        %v1011 = vsub.s32 2, %v1010
        %v1012 = vrot.slane %v534, %v1011
        %v1013 = vlaneseq
        %v1014 = vshrl.u32 %v1013, 7
        %v1015 = vsub.s32 2, %v1014
        %v1016 = vrot.slane %v535, %v1015
        %v1017 = vlaneseq
        %v1018 = vshrl.u32 %v1017, 7
        %v1019 = vsub.s32 2, %v1018
        %v1020 = vrot.slane %v536, %v1019
        %v1021 = vlaneseq
        %v1022 = vshrl.u32 %v1021, 7
        %v1023 = vsub.s32 2, %v1022
        %v1024 = vrot.slane %v537, %v1023
        %v1025 = vlaneseq
        %v1026 = vshrl.u32 %v1025, 7
        %v1027 = vsub.s32 2, %v1026
        %v1028 = vrot.slane %v538, %v1027
        %v1029 = vlaneseq
        %v1030 = vshrl.u32 %v1029, 7
        %v1031 = vsub.s32 2, %v1030
        %v1032 = vrot.slane %v539, %v1031
        %v1033 = vlaneseq
        %v1034 = vshrl.u32 %v1033, 7
        %v1035 = vsub.s32 2, %v1034
        %v1036 = vrot.slane %v540, %v1035
        %v1037 = vlaneseq
        %v1038 = vshrl.u32 %v1037, 7
        %v1039 = vsub.s32 2, %v1038
        %v1040 = vrot.slane %v541, %v1039
        %v1041 = vlaneseq
        %v1042 = vshrl.u32 %v1041, 7
        %v1043 = vsub.s32 2, %v1042
        %v1044 = vrot.slane %v542, %v1043
        %v1045 = vlaneseq
        %v1046 = vshrl.u32 %v1045, 7
        %v1047 = vsub.s32 2, %v1046
        %v1048 = vrot.slane %v543, %v1047
        %v1049 = vlaneseq
        %v1050 = vshrl.u32 %v1049, 7
        %v1051 = vsub.s32 2, %v1050
        %v1052 = vrot.slane %v544, %v1051
        %v1053 = vlaneseq
        %v1054 = vshrl.u32 %v1053, 7
        %v1055 = vsub.s32 2, %v1054
        %v1056 = vrot.slane %v545, %v1055
        %v1057 = vlaneseq
        %v1058 = vshrl.u32 %v1057, 7
        %v1059 = vsub.s32 2, %v1058
        %v1060 = vrot.slane %v546, %v1059
        %v1061 = vlaneseq
        %v1062 = vshrl.u32 %v1061, 7
        %v1063 = vsub.s32 2, %v1062
        %v1064 = vrot.slane %v547, %v1063
        %v1065 = vlaneseq
        %v1066 = vshrl.u32 %v1065, 7
        %v1067 = vsub.s32 2, %v1066
        %v1068 = vrot.slane %v548, %v1067
        %v1069 = vlaneseq
        %v1070 = vshrl.u32 %v1069, 7
        %v1071 = vsub.s32 2, %v1070
        %v1072 = vrot.slane %v549, %v1071
        %v1073 = vlaneseq
        %v1074 = vshrl.u32 %v1073, 7
        %v1075 = vsub.s32 2, %v1074
        %v1076 = vrot.slane %v550, %v1075
        %v1077 = vlaneseq
        %v1078 = vshrl.u32 %v1077, 7
        %v1079 = vsub.s32 2, %v1078
        %v1080 = vrot.slane %v551, %v1079
        %v1081 = vlaneseq
        %v1082 = vshrl.u32 %v1081, 7
        %v1083 = vsub.s32 2, %v1082
        %v1084 = vrot.slane %v552, %v1083
        %v1085 = vlaneseq
        %v1086 = vshrl.u32 %v1085, 7
        %v1087 = vsub.s32 2, %v1086
        %v1088 = vrot.slane %v553, %v1087
        %v1089 = vmul.f32 %v959, %v964
        %v1090 = vmul.f32 %v959, %v968
        %v1091 = vmul.f32 %v959, %v972
        %v1092 = vmul.f32 %v959, %v976
        %v1093 = vmul.f32 %v959, %v980
        %v1094 = vmul.f32 %v959, %v984
        %v1095 = vmul.f32 %v959, %v988
        %v1096 = vmul.f32 %v959, %v992
        %v1097 = vmul.f32 %v959, %v996
        %v1098 = vmul.f32 %v959, %v1000
        %v1099 = vmul.f32 %v959, %v1004
        %v1100 = vmul.f32 %v959, %v1008
        %v1101 = vmul.f32 %v959, %v1012
        %v1102 = vmul.f32 %v959, %v1016
        %v1103 = vmul.f32 %v959, %v1020
        %v1104 = vmul.f32 %v959, %v1024
        %v1105 = vmul.f32 %v959, %v1028
        %v1106 = vmul.f32 %v959, %v1032
        %v1107 = vmul.f32 %v959, %v1036
        %v1108 = vmul.f32 %v959, %v1040
        %v1109 = vmul.f32 %v959, %v1044
        %v1110 = vmul.f32 %v959, %v1048
        %v1111 = vmul.f32 %v959, %v1052
        %v1112 = vmul.f32 %v959, %v1056
        %v1113 = vmul.f32 %v959, %v1060
        %v1114 = vmul.f32 %v959, %v1064
        %v1115 = vmul.f32 %v959, %v1068
        %v1116 = vmul.f32 %v959, %v1072
        %v1117 = vmul.f32 %v959, %v1076
        %v1118 = vmul.f32 %v959, %v1080
        %v1119 = vmul.f32 %v959, %v1084
        %v1120 = vmul.f32 %v959, %v1088
        %v1121 = vadd.f32 %v925, %v1089
        %v1122 = vadd.f32 %v926, %v1090
        %v1123 = vadd.f32 %v927, %v1091
        %v1124 = vadd.f32 %v928, %v1092
        %v1125 = vadd.f32 %v929, %v1093
        %v1126 = vadd.f32 %v930, %v1094
        %v1127 = vadd.f32 %v931, %v1095
        %v1128 = vadd.f32 %v932, %v1096
        %v1129 = vadd.f32 %v933, %v1097
        %v1130 = vadd.f32 %v934, %v1098
        %v1131 = vadd.f32 %v935, %v1099
        %v1132 = vadd.f32 %v936, %v1100
        %v1133 = vadd.f32 %v937, %v1101
        %v1134 = vadd.f32 %v938, %v1102
        %v1135 = vadd.f32 %v939, %v1103
        %v1136 = vadd.f32 %v940, %v1104
        %v1137 = vadd.f32 %v941, %v1105
        %v1138 = vadd.f32 %v942, %v1106
        %v1139 = vadd.f32 %v943, %v1107
        %v1140 = vadd.f32 %v944, %v1108
        %v1141 = vadd.f32 %v945, %v1109
        %v1142 = vadd.f32 %v946, %v1110
        %v1143 = vadd.f32 %v947, %v1111
        %v1144 = vadd.f32 %v948, %v1112
        %v1145 = vadd.f32 %v949, %v1113
        %v1146 = vadd.f32 %v950, %v1114
        %v1147 = vadd.f32 %v951, %v1115
        %v1148 = vadd.f32 %v952, %v1116
        %v1149 = vadd.f32 %v953, %v1117
        %v1150 = vadd.f32 %v954, %v1118
        %v1151 = vadd.f32 %v955, %v1119
        %v1152 = vadd.f32 %v956, %v1120
        %1153 = vset.pattern.permute.xlu0 3
        %1154 = vperm.xlu0 %1153, %v563
        %v1155 = vpop.permute.xlu0 %1154
        %v1157 = vlaneseq
        %v1158 = vshrl.u32 %v1157, 7
        %v1159 = vsub.s32 3, %v1158
        %v1160 = vrot.slane %v522, %v1159
        %v1161 = vlaneseq
        %v1162 = vshrl.u32 %v1161, 7
        %v1163 = vsub.s32 3, %v1162
        %v1164 = vrot.slane %v523, %v1163
        %v1165 = vlaneseq
        %v1166 = vshrl.u32 %v1165, 7
        %v1167 = vsub.s32 3, %v1166
        %v1168 = vrot.slane %v524, %v1167
        %v1169 = vlaneseq
        %v1170 = vshrl.u32 %v1169, 7
        %v1171 = vsub.s32 3, %v1170
        %v1172 = vrot.slane %v525, %v1171
        %v1173 = vlaneseq
        %v1174 = vshrl.u32 %v1173, 7
        %v1175 = vsub.s32 3, %v1174
        %v1176 = vrot.slane %v526, %v1175
        %v1177 = vlaneseq
        %v1178 = vshrl.u32 %v1177, 7
        %v1179 = vsub.s32 3, %v1178
        %v1180 = vrot.slane %v527, %v1179
        %v1181 = vlaneseq
        %v1182 = vshrl.u32 %v1181, 7
        %v1183 = vsub.s32 3, %v1182
        %v1184 = vrot.slane %v528, %v1183
        %v1185 = vlaneseq
        %v1186 = vshrl.u32 %v1185, 7
        %v1187 = vsub.s32 3, %v1186
        %v1188 = vrot.slane %v529, %v1187
        %v1189 = vlaneseq
        %v1190 = vshrl.u32 %v1189, 7
        %v1191 = vsub.s32 3, %v1190
        %v1192 = vrot.slane %v530, %v1191
        %v1193 = vlaneseq
        %v1194 = vshrl.u32 %v1193, 7
        %v1195 = vsub.s32 3, %v1194
        %v1196 = vrot.slane %v531, %v1195
        %v1197 = vlaneseq
        %v1198 = vshrl.u32 %v1197, 7
        %v1199 = vsub.s32 3, %v1198
        %v1200 = vrot.slane %v532, %v1199
        %v1201 = vlaneseq
        %v1202 = vshrl.u32 %v1201, 7
        %v1203 = vsub.s32 3, %v1202
        %v1204 = vrot.slane %v533, %v1203
        %v1205 = vlaneseq
        %v1206 = vshrl.u32 %v1205, 7
        %v1207 = vsub.s32 3, %v1206
        %v1208 = vrot.slane %v534, %v1207
        %v1209 = vlaneseq
        %v1210 = vshrl.u32 %v1209, 7
        %v1211 = vsub.s32 3, %v1210
        %v1212 = vrot.slane %v535, %v1211
        %v1213 = vlaneseq
        %v1214 = vshrl.u32 %v1213, 7
        %v1215 = vsub.s32 3, %v1214
        %v1216 = vrot.slane %v536, %v1215
        %v1217 = vlaneseq
        %v1218 = vshrl.u32 %v1217, 7
        %v1219 = vsub.s32 3, %v1218
        %v1220 = vrot.slane %v537, %v1219
        %v1221 = vlaneseq
        %v1222 = vshrl.u32 %v1221, 7
        %v1223 = vsub.s32 3, %v1222
        %v1224 = vrot.slane %v538, %v1223
        %v1225 = vlaneseq
        %v1226 = vshrl.u32 %v1225, 7
        %v1227 = vsub.s32 3, %v1226
        %v1228 = vrot.slane %v539, %v1227
        %v1229 = vlaneseq
        %v1230 = vshrl.u32 %v1229, 7
        %v1231 = vsub.s32 3, %v1230
        %v1232 = vrot.slane %v540, %v1231
        %v1233 = vlaneseq
        %v1234 = vshrl.u32 %v1233, 7
        %v1235 = vsub.s32 3, %v1234
        %v1236 = vrot.slane %v541, %v1235
        %v1237 = vlaneseq
        %v1238 = vshrl.u32 %v1237, 7
        %v1239 = vsub.s32 3, %v1238
        %v1240 = vrot.slane %v542, %v1239
        %v1241 = vlaneseq
        %v1242 = vshrl.u32 %v1241, 7
        %v1243 = vsub.s32 3, %v1242
        %v1244 = vrot.slane %v543, %v1243
        %v1245 = vlaneseq
        %v1246 = vshrl.u32 %v1245, 7
        %v1247 = vsub.s32 3, %v1246
        %v1248 = vrot.slane %v544, %v1247
        %v1249 = vlaneseq
        %v1250 = vshrl.u32 %v1249, 7
        %v1251 = vsub.s32 3, %v1250
        %v1252 = vrot.slane %v545, %v1251
        %v1253 = vlaneseq
        %v1254 = vshrl.u32 %v1253, 7
        %v1255 = vsub.s32 3, %v1254
        %v1256 = vrot.slane %v546, %v1255
        %v1257 = vlaneseq
        %v1258 = vshrl.u32 %v1257, 7
        %v1259 = vsub.s32 3, %v1258
        %v1260 = vrot.slane %v547, %v1259
        %v1261 = vlaneseq
        %v1262 = vshrl.u32 %v1261, 7
        %v1263 = vsub.s32 3, %v1262
        %v1264 = vrot.slane %v548, %v1263
        %v1265 = vlaneseq
        %v1266 = vshrl.u32 %v1265, 7
        %v1267 = vsub.s32 3, %v1266
        %v1268 = vrot.slane %v549, %v1267
        %v1269 = vlaneseq
        %v1270 = vshrl.u32 %v1269, 7
        %v1271 = vsub.s32 3, %v1270
        %v1272 = vrot.slane %v550, %v1271
        %v1273 = vlaneseq
        %v1274 = vshrl.u32 %v1273, 7
        %v1275 = vsub.s32 3, %v1274
        %v1276 = vrot.slane %v551, %v1275
        %v1277 = vlaneseq
        %v1278 = vshrl.u32 %v1277, 7
        %v1279 = vsub.s32 3, %v1278
        %v1280 = vrot.slane %v552, %v1279
        %v1281 = vlaneseq
        %v1282 = vshrl.u32 %v1281, 7
        %v1283 = vsub.s32 3, %v1282
        %v1284 = vrot.slane %v553, %v1283
        %v1285 = vmul.f32 %v1155, %v1160
        %v1286 = vmul.f32 %v1155, %v1164
        %v1287 = vmul.f32 %v1155, %v1168
        %v1288 = vmul.f32 %v1155, %v1172
        %v1289 = vmul.f32 %v1155, %v1176
        %v1290 = vmul.f32 %v1155, %v1180
        %v1291 = vmul.f32 %v1155, %v1184
        %v1292 = vmul.f32 %v1155, %v1188
        %v1293 = vmul.f32 %v1155, %v1192
        %v1294 = vmul.f32 %v1155, %v1196
        %v1295 = vmul.f32 %v1155, %v1200
        %v1296 = vmul.f32 %v1155, %v1204
        %v1297 = vmul.f32 %v1155, %v1208
        %v1298 = vmul.f32 %v1155, %v1212
        %v1299 = vmul.f32 %v1155, %v1216
        %v1300 = vmul.f32 %v1155, %v1220
        %v1301 = vmul.f32 %v1155, %v1224
        %v1302 = vmul.f32 %v1155, %v1228
        %v1303 = vmul.f32 %v1155, %v1232
        %v1304 = vmul.f32 %v1155, %v1236
        %v1305 = vmul.f32 %v1155, %v1240
        %v1306 = vmul.f32 %v1155, %v1244
        %v1307 = vmul.f32 %v1155, %v1248
        %v1308 = vmul.f32 %v1155, %v1252
        %v1309 = vmul.f32 %v1155, %v1256
        %v1310 = vmul.f32 %v1155, %v1260
        %v1311 = vmul.f32 %v1155, %v1264
        %v1312 = vmul.f32 %v1155, %v1268
        %v1313 = vmul.f32 %v1155, %v1272
        %v1314 = vmul.f32 %v1155, %v1276
        %v1315 = vmul.f32 %v1155, %v1280
        %v1316 = vmul.f32 %v1155, %v1284
        %v1317 = vadd.f32 %v1121, %v1285
        %v1318 = vadd.f32 %v1122, %v1286
        %v1319 = vadd.f32 %v1123, %v1287
        %v1320 = vadd.f32 %v1124, %v1288
        %v1321 = vadd.f32 %v1125, %v1289
        %v1322 = vadd.f32 %v1126, %v1290
        %v1323 = vadd.f32 %v1127, %v1291
        %v1324 = vadd.f32 %v1128, %v1292
        %v1325 = vadd.f32 %v1129, %v1293
        %v1326 = vadd.f32 %v1130, %v1294
        %v1327 = vadd.f32 %v1131, %v1295
        %v1328 = vadd.f32 %v1132, %v1296
        %v1329 = vadd.f32 %v1133, %v1297
        %v1330 = vadd.f32 %v1134, %v1298
        %v1331 = vadd.f32 %v1135, %v1299
        %v1332 = vadd.f32 %v1136, %v1300
        %v1333 = vadd.f32 %v1137, %v1301
        %v1334 = vadd.f32 %v1138, %v1302
        %v1335 = vadd.f32 %v1139, %v1303
        %v1336 = vadd.f32 %v1140, %v1304
        %v1337 = vadd.f32 %v1141, %v1305
        %v1338 = vadd.f32 %v1142, %v1306
        %v1339 = vadd.f32 %v1143, %v1307
        %v1340 = vadd.f32 %v1144, %v1308
        %v1341 = vadd.f32 %v1145, %v1309
        %v1342 = vadd.f32 %v1146, %v1310
        %v1343 = vadd.f32 %v1147, %v1311
        %v1344 = vadd.f32 %v1148, %v1312
        %v1345 = vadd.f32 %v1149, %v1313
        %v1346 = vadd.f32 %v1150, %v1314
        %v1347 = vadd.f32 %v1151, %v1315
        %v1348 = vadd.f32 %v1152, %v1316
        %1349 = vset.pattern.permute.xlu0 4
        %1350 = vperm.xlu0 %1349, %v563
        %v1351 = vpop.permute.xlu0 %1350
        %v1353 = vlaneseq
        %v1354 = vshrl.u32 %v1353, 7
        %v1355 = vsub.s32 4, %v1354
        %v1356 = vrot.slane %v522, %v1355
        %v1357 = vlaneseq
        %v1358 = vshrl.u32 %v1357, 7
        %v1359 = vsub.s32 4, %v1358
        %v1360 = vrot.slane %v523, %v1359
        %v1361 = vlaneseq
        %v1362 = vshrl.u32 %v1361, 7
        %v1363 = vsub.s32 4, %v1362
        %v1364 = vrot.slane %v524, %v1363
        %v1365 = vlaneseq
        %v1366 = vshrl.u32 %v1365, 7
        %v1367 = vsub.s32 4, %v1366
        %v1368 = vrot.slane %v525, %v1367
        %v1369 = vlaneseq
        %v1370 = vshrl.u32 %v1369, 7
        %v1371 = vsub.s32 4, %v1370
        %v1372 = vrot.slane %v526, %v1371
        %v1373 = vlaneseq
        %v1374 = vshrl.u32 %v1373, 7
        %v1375 = vsub.s32 4, %v1374
        %v1376 = vrot.slane %v527, %v1375
        %v1377 = vlaneseq
        %v1378 = vshrl.u32 %v1377, 7
        %v1379 = vsub.s32 4, %v1378
        %v1380 = vrot.slane %v528, %v1379
        %v1381 = vlaneseq
        %v1382 = vshrl.u32 %v1381, 7
        %v1383 = vsub.s32 4, %v1382
        %v1384 = vrot.slane %v529, %v1383
        %v1385 = vlaneseq
        %v1386 = vshrl.u32 %v1385, 7
        %v1387 = vsub.s32 4, %v1386
        %v1388 = vrot.slane %v530, %v1387
        %v1389 = vlaneseq
        %v1390 = vshrl.u32 %v1389, 7
        %v1391 = vsub.s32 4, %v1390
        %v1392 = vrot.slane %v531, %v1391
        %v1393 = vlaneseq
        %v1394 = vshrl.u32 %v1393, 7
        %v1395 = vsub.s32 4, %v1394
        %v1396 = vrot.slane %v532, %v1395
        %v1397 = vlaneseq
        %v1398 = vshrl.u32 %v1397, 7
        %v1399 = vsub.s32 4, %v1398
        %v1400 = vrot.slane %v533, %v1399
        %v1401 = vlaneseq
        %v1402 = vshrl.u32 %v1401, 7
        %v1403 = vsub.s32 4, %v1402
        %v1404 = vrot.slane %v534, %v1403
        %v1405 = vlaneseq
        %v1406 = vshrl.u32 %v1405, 7
        %v1407 = vsub.s32 4, %v1406
        %v1408 = vrot.slane %v535, %v1407
        %v1409 = vlaneseq
        %v1410 = vshrl.u32 %v1409, 7
        %v1411 = vsub.s32 4, %v1410
        %v1412 = vrot.slane %v536, %v1411
        %v1413 = vlaneseq
        %v1414 = vshrl.u32 %v1413, 7
        %v1415 = vsub.s32 4, %v1414
        %v1416 = vrot.slane %v537, %v1415
        %v1417 = vlaneseq
        %v1418 = vshrl.u32 %v1417, 7
        %v1419 = vsub.s32 4, %v1418
        %v1420 = vrot.slane %v538, %v1419
        %v1421 = vlaneseq
        %v1422 = vshrl.u32 %v1421, 7
        %v1423 = vsub.s32 4, %v1422
        %v1424 = vrot.slane %v539, %v1423
        %v1425 = vlaneseq
        %v1426 = vshrl.u32 %v1425, 7
        %v1427 = vsub.s32 4, %v1426
        %v1428 = vrot.slane %v540, %v1427
        %v1429 = vlaneseq
        %v1430 = vshrl.u32 %v1429, 7
        %v1431 = vsub.s32 4, %v1430
        %v1432 = vrot.slane %v541, %v1431
        %v1433 = vlaneseq
        %v1434 = vshrl.u32 %v1433, 7
        %v1435 = vsub.s32 4, %v1434
        %v1436 = vrot.slane %v542, %v1435
        %v1437 = vlaneseq
        %v1438 = vshrl.u32 %v1437, 7
        %v1439 = vsub.s32 4, %v1438
        %v1440 = vrot.slane %v543, %v1439
        %v1441 = vlaneseq
        %v1442 = vshrl.u32 %v1441, 7
        %v1443 = vsub.s32 4, %v1442
        %v1444 = vrot.slane %v544, %v1443
        %v1445 = vlaneseq
        %v1446 = vshrl.u32 %v1445, 7
        %v1447 = vsub.s32 4, %v1446
        %v1448 = vrot.slane %v545, %v1447
        %v1449 = vlaneseq
        %v1450 = vshrl.u32 %v1449, 7
        %v1451 = vsub.s32 4, %v1450
        %v1452 = vrot.slane %v546, %v1451
        %v1453 = vlaneseq
        %v1454 = vshrl.u32 %v1453, 7
        %v1455 = vsub.s32 4, %v1454
        %v1456 = vrot.slane %v547, %v1455
        %v1457 = vlaneseq
        %v1458 = vshrl.u32 %v1457, 7
        %v1459 = vsub.s32 4, %v1458
        %v1460 = vrot.slane %v548, %v1459
        %v1461 = vlaneseq
        %v1462 = vshrl.u32 %v1461, 7
        %v1463 = vsub.s32 4, %v1462
        %v1464 = vrot.slane %v549, %v1463
        %v1465 = vlaneseq
        %v1466 = vshrl.u32 %v1465, 7
        %v1467 = vsub.s32 4, %v1466
        %v1468 = vrot.slane %v550, %v1467
        %v1469 = vlaneseq
        %v1470 = vshrl.u32 %v1469, 7
        %v1471 = vsub.s32 4, %v1470
        %v1472 = vrot.slane %v551, %v1471
        %v1473 = vlaneseq
        %v1474 = vshrl.u32 %v1473, 7
        %v1475 = vsub.s32 4, %v1474
        %v1476 = vrot.slane %v552, %v1475
        %v1477 = vlaneseq
        %v1478 = vshrl.u32 %v1477, 7
        %v1479 = vsub.s32 4, %v1478
        %v1480 = vrot.slane %v553, %v1479
        %v1481 = vmul.f32 %v1351, %v1356
        %v1482 = vmul.f32 %v1351, %v1360
        %v1483 = vmul.f32 %v1351, %v1364
        %v1484 = vmul.f32 %v1351, %v1368
        %v1485 = vmul.f32 %v1351, %v1372
        %v1486 = vmul.f32 %v1351, %v1376
        %v1487 = vmul.f32 %v1351, %v1380
        %v1488 = vmul.f32 %v1351, %v1384
        %v1489 = vmul.f32 %v1351, %v1388
        %v1490 = vmul.f32 %v1351, %v1392
        %v1491 = vmul.f32 %v1351, %v1396
        %v1492 = vmul.f32 %v1351, %v1400
        %v1493 = vmul.f32 %v1351, %v1404
        %v1494 = vmul.f32 %v1351, %v1408
        %v1495 = vmul.f32 %v1351, %v1412
        %v1496 = vmul.f32 %v1351, %v1416
        %v1497 = vmul.f32 %v1351, %v1420
        %v1498 = vmul.f32 %v1351, %v1424
        %v1499 = vmul.f32 %v1351, %v1428
        %v1500 = vmul.f32 %v1351, %v1432
        %v1501 = vmul.f32 %v1351, %v1436
        %v1502 = vmul.f32 %v1351, %v1440
        %v1503 = vmul.f32 %v1351, %v1444
        %v1504 = vmul.f32 %v1351, %v1448
        %v1505 = vmul.f32 %v1351, %v1452
        %v1506 = vmul.f32 %v1351, %v1456
        %v1507 = vmul.f32 %v1351, %v1460
        %v1508 = vmul.f32 %v1351, %v1464
        %v1509 = vmul.f32 %v1351, %v1468
        %v1510 = vmul.f32 %v1351, %v1472
        %v1511 = vmul.f32 %v1351, %v1476
        %v1512 = vmul.f32 %v1351, %v1480
        %v1513 = vadd.f32 %v1317, %v1481
        %v1514 = vadd.f32 %v1318, %v1482
        %v1515 = vadd.f32 %v1319, %v1483
        %v1516 = vadd.f32 %v1320, %v1484
        %v1517 = vadd.f32 %v1321, %v1485
        %v1518 = vadd.f32 %v1322, %v1486
        %v1519 = vadd.f32 %v1323, %v1487
        %v1520 = vadd.f32 %v1324, %v1488
        %v1521 = vadd.f32 %v1325, %v1489
        %v1522 = vadd.f32 %v1326, %v1490
        %v1523 = vadd.f32 %v1327, %v1491
        %v1524 = vadd.f32 %v1328, %v1492
        %v1525 = vadd.f32 %v1329, %v1493
        %v1526 = vadd.f32 %v1330, %v1494
        %v1527 = vadd.f32 %v1331, %v1495
        %v1528 = vadd.f32 %v1332, %v1496
        %v1529 = vadd.f32 %v1333, %v1497
        %v1530 = vadd.f32 %v1334, %v1498
        %v1531 = vadd.f32 %v1335, %v1499
        %v1532 = vadd.f32 %v1336, %v1500
        %v1533 = vadd.f32 %v1337, %v1501
        %v1534 = vadd.f32 %v1338, %v1502
        %v1535 = vadd.f32 %v1339, %v1503
        %v1536 = vadd.f32 %v1340, %v1504
        %v1537 = vadd.f32 %v1341, %v1505
        %v1538 = vadd.f32 %v1342, %v1506
        %v1539 = vadd.f32 %v1343, %v1507
        %v1540 = vadd.f32 %v1344, %v1508
        %v1541 = vadd.f32 %v1345, %v1509
        %v1542 = vadd.f32 %v1346, %v1510
        %v1543 = vadd.f32 %v1347, %v1511
        %v1544 = vadd.f32 %v1348, %v1512
        %1545 = vset.pattern.permute.xlu0 5
        %1546 = vperm.xlu0 %1545, %v563
        %v1547 = vpop.permute.xlu0 %1546
        %v1549 = vlaneseq
        %v1550 = vshrl.u32 %v1549, 7
        %v1551 = vsub.s32 5, %v1550
        %v1552 = vrot.slane %v522, %v1551
        %v1553 = vlaneseq
        %v1554 = vshrl.u32 %v1553, 7
        %v1555 = vsub.s32 5, %v1554
        %v1556 = vrot.slane %v523, %v1555
        %v1557 = vlaneseq
        %v1558 = vshrl.u32 %v1557, 7
        %v1559 = vsub.s32 5, %v1558
        %v1560 = vrot.slane %v524, %v1559
        %v1561 = vlaneseq
        %v1562 = vshrl.u32 %v1561, 7
        %v1563 = vsub.s32 5, %v1562
        %v1564 = vrot.slane %v525, %v1563
        %v1565 = vlaneseq
        %v1566 = vshrl.u32 %v1565, 7
        %v1567 = vsub.s32 5, %v1566
        %v1568 = vrot.slane %v526, %v1567
        %v1569 = vlaneseq
        %v1570 = vshrl.u32 %v1569, 7
        %v1571 = vsub.s32 5, %v1570
        %v1572 = vrot.slane %v527, %v1571
        %v1573 = vlaneseq
        %v1574 = vshrl.u32 %v1573, 7
        %v1575 = vsub.s32 5, %v1574
        %v1576 = vrot.slane %v528, %v1575
        %v1577 = vlaneseq
        %v1578 = vshrl.u32 %v1577, 7
        %v1579 = vsub.s32 5, %v1578
        %v1580 = vrot.slane %v529, %v1579
        %v1581 = vlaneseq
        %v1582 = vshrl.u32 %v1581, 7
        %v1583 = vsub.s32 5, %v1582
        %v1584 = vrot.slane %v530, %v1583
        %v1585 = vlaneseq
        %v1586 = vshrl.u32 %v1585, 7
        %v1587 = vsub.s32 5, %v1586
        %v1588 = vrot.slane %v531, %v1587
        %v1589 = vlaneseq
        %v1590 = vshrl.u32 %v1589, 7
        %v1591 = vsub.s32 5, %v1590
        %v1592 = vrot.slane %v532, %v1591
        %v1593 = vlaneseq
        %v1594 = vshrl.u32 %v1593, 7
        %v1595 = vsub.s32 5, %v1594
        %v1596 = vrot.slane %v533, %v1595
        %v1597 = vlaneseq
        %v1598 = vshrl.u32 %v1597, 7
        %v1599 = vsub.s32 5, %v1598
        %v1600 = vrot.slane %v534, %v1599
        %v1601 = vlaneseq
        %v1602 = vshrl.u32 %v1601, 7
        %v1603 = vsub.s32 5, %v1602
        %v1604 = vrot.slane %v535, %v1603
        %v1605 = vlaneseq
        %v1606 = vshrl.u32 %v1605, 7
        %v1607 = vsub.s32 5, %v1606
        %v1608 = vrot.slane %v536, %v1607
        %v1609 = vlaneseq
        %v1610 = vshrl.u32 %v1609, 7
        %v1611 = vsub.s32 5, %v1610
        %v1612 = vrot.slane %v537, %v1611
        %v1613 = vlaneseq
        %v1614 = vshrl.u32 %v1613, 7
        %v1615 = vsub.s32 5, %v1614
        %v1616 = vrot.slane %v538, %v1615
        %v1617 = vlaneseq
        %v1618 = vshrl.u32 %v1617, 7
        %v1619 = vsub.s32 5, %v1618
        %v1620 = vrot.slane %v539, %v1619
        %v1621 = vlaneseq
        %v1622 = vshrl.u32 %v1621, 7
        %v1623 = vsub.s32 5, %v1622
        %v1624 = vrot.slane %v540, %v1623
        %v1625 = vlaneseq
        %v1626 = vshrl.u32 %v1625, 7
        %v1627 = vsub.s32 5, %v1626
        %v1628 = vrot.slane %v541, %v1627
        %v1629 = vlaneseq
        %v1630 = vshrl.u32 %v1629, 7
        %v1631 = vsub.s32 5, %v1630
        %v1632 = vrot.slane %v542, %v1631
        %v1633 = vlaneseq
        %v1634 = vshrl.u32 %v1633, 7
        %v1635 = vsub.s32 5, %v1634
        %v1636 = vrot.slane %v543, %v1635
        %v1637 = vlaneseq
        %v1638 = vshrl.u32 %v1637, 7
        %v1639 = vsub.s32 5, %v1638
        %v1640 = vrot.slane %v544, %v1639
        %v1641 = vlaneseq
        %v1642 = vshrl.u32 %v1641, 7
        %v1643 = vsub.s32 5, %v1642
        %v1644 = vrot.slane %v545, %v1643
        %v1645 = vlaneseq
        %v1646 = vshrl.u32 %v1645, 7
        %v1647 = vsub.s32 5, %v1646
        %v1648 = vrot.slane %v546, %v1647
        %v1649 = vlaneseq
        %v1650 = vshrl.u32 %v1649, 7
        %v1651 = vsub.s32 5, %v1650
        %v1652 = vrot.slane %v547, %v1651
        %v1653 = vlaneseq
        %v1654 = vshrl.u32 %v1653, 7
        %v1655 = vsub.s32 5, %v1654
        %v1656 = vrot.slane %v548, %v1655
        %v1657 = vlaneseq
        %v1658 = vshrl.u32 %v1657, 7
        %v1659 = vsub.s32 5, %v1658
        %v1660 = vrot.slane %v549, %v1659
        %v1661 = vlaneseq
        %v1662 = vshrl.u32 %v1661, 7
        %v1663 = vsub.s32 5, %v1662
        %v1664 = vrot.slane %v550, %v1663
        %v1665 = vlaneseq
        %v1666 = vshrl.u32 %v1665, 7
        %v1667 = vsub.s32 5, %v1666
        %v1668 = vrot.slane %v551, %v1667
        %v1669 = vlaneseq
        %v1670 = vshrl.u32 %v1669, 7
        %v1671 = vsub.s32 5, %v1670
        %v1672 = vrot.slane %v552, %v1671
        %v1673 = vlaneseq
        %v1674 = vshrl.u32 %v1673, 7
        %v1675 = vsub.s32 5, %v1674
        %v1676 = vrot.slane %v553, %v1675
        %v1677 = vmul.f32 %v1547, %v1552
        %v1678 = vmul.f32 %v1547, %v1556
        %v1679 = vmul.f32 %v1547, %v1560
        %v1680 = vmul.f32 %v1547, %v1564
        %v1681 = vmul.f32 %v1547, %v1568
        %v1682 = vmul.f32 %v1547, %v1572
        %v1683 = vmul.f32 %v1547, %v1576
        %v1684 = vmul.f32 %v1547, %v1580
        %v1685 = vmul.f32 %v1547, %v1584
        %v1686 = vmul.f32 %v1547, %v1588
        %v1687 = vmul.f32 %v1547, %v1592
        %v1688 = vmul.f32 %v1547, %v1596
        %v1689 = vmul.f32 %v1547, %v1600
        %v1690 = vmul.f32 %v1547, %v1604
        %v1691 = vmul.f32 %v1547, %v1608
        %v1692 = vmul.f32 %v1547, %v1612
        %v1693 = vmul.f32 %v1547, %v1616
        %v1694 = vmul.f32 %v1547, %v1620
        %v1695 = vmul.f32 %v1547, %v1624
        %v1696 = vmul.f32 %v1547, %v1628
        %v1697 = vmul.f32 %v1547, %v1632
        %v1698 = vmul.f32 %v1547, %v1636
        %v1699 = vmul.f32 %v1547, %v1640
        %v1700 = vmul.f32 %v1547, %v1644
        %v1701 = vmul.f32 %v1547, %v1648
        %v1702 = vmul.f32 %v1547, %v1652
        %v1703 = vmul.f32 %v1547, %v1656
        %v1704 = vmul.f32 %v1547, %v1660
        %v1705 = vmul.f32 %v1547, %v1664
        %v1706 = vmul.f32 %v1547, %v1668
        %v1707 = vmul.f32 %v1547, %v1672
        %v1708 = vmul.f32 %v1547, %v1676
        %v1709 = vadd.f32 %v1513, %v1677
        %v1710 = vadd.f32 %v1514, %v1678
        %v1711 = vadd.f32 %v1515, %v1679
        %v1712 = vadd.f32 %v1516, %v1680
        %v1713 = vadd.f32 %v1517, %v1681
        %v1714 = vadd.f32 %v1518, %v1682
        %v1715 = vadd.f32 %v1519, %v1683
        %v1716 = vadd.f32 %v1520, %v1684
        %v1717 = vadd.f32 %v1521, %v1685
        %v1718 = vadd.f32 %v1522, %v1686
        %v1719 = vadd.f32 %v1523, %v1687
        %v1720 = vadd.f32 %v1524, %v1688
        %v1721 = vadd.f32 %v1525, %v1689
        %v1722 = vadd.f32 %v1526, %v1690
        %v1723 = vadd.f32 %v1527, %v1691
        %v1724 = vadd.f32 %v1528, %v1692
        %v1725 = vadd.f32 %v1529, %v1693
        %v1726 = vadd.f32 %v1530, %v1694
        %v1727 = vadd.f32 %v1531, %v1695
        %v1728 = vadd.f32 %v1532, %v1696
        %v1729 = vadd.f32 %v1533, %v1697
        %v1730 = vadd.f32 %v1534, %v1698
        %v1731 = vadd.f32 %v1535, %v1699
        %v1732 = vadd.f32 %v1536, %v1700
        %v1733 = vadd.f32 %v1537, %v1701
        %v1734 = vadd.f32 %v1538, %v1702
        %v1735 = vadd.f32 %v1539, %v1703
        %v1736 = vadd.f32 %v1540, %v1704
        %v1737 = vadd.f32 %v1541, %v1705
        %v1738 = vadd.f32 %v1542, %v1706
        %v1739 = vadd.f32 %v1543, %v1707
        %v1740 = vadd.f32 %v1544, %v1708
        %1741 = vset.pattern.permute.xlu0 6
        %1742 = vperm.xlu0 %1741, %v563
        %v1743 = vpop.permute.xlu0 %1742
        %v1745 = vlaneseq
        %v1746 = vshrl.u32 %v1745, 7
        %v1747 = vsub.s32 6, %v1746
        %v1748 = vrot.slane %v522, %v1747
        %v1749 = vlaneseq
        %v1750 = vshrl.u32 %v1749, 7
        %v1751 = vsub.s32 6, %v1750
        %v1752 = vrot.slane %v523, %v1751
        %v1753 = vlaneseq
        %v1754 = vshrl.u32 %v1753, 7
        %v1755 = vsub.s32 6, %v1754
        %v1756 = vrot.slane %v524, %v1755
        %v1757 = vlaneseq
        %v1758 = vshrl.u32 %v1757, 7
        %v1759 = vsub.s32 6, %v1758
        %v1760 = vrot.slane %v525, %v1759
        %v1761 = vlaneseq
        %v1762 = vshrl.u32 %v1761, 7
        %v1763 = vsub.s32 6, %v1762
        %v1764 = vrot.slane %v526, %v1763
        %v1765 = vlaneseq
        %v1766 = vshrl.u32 %v1765, 7
        %v1767 = vsub.s32 6, %v1766
        %v1768 = vrot.slane %v527, %v1767
        %v1769 = vlaneseq
        %v1770 = vshrl.u32 %v1769, 7
        %v1771 = vsub.s32 6, %v1770
        %v1772 = vrot.slane %v528, %v1771
        %v1773 = vlaneseq
        %v1774 = vshrl.u32 %v1773, 7
        %v1775 = vsub.s32 6, %v1774
        %v1776 = vrot.slane %v529, %v1775
        %v1777 = vlaneseq
        %v1778 = vshrl.u32 %v1777, 7
        %v1779 = vsub.s32 6, %v1778
        %v1780 = vrot.slane %v530, %v1779
        %v1781 = vlaneseq
        %v1782 = vshrl.u32 %v1781, 7
        %v1783 = vsub.s32 6, %v1782
        %v1784 = vrot.slane %v531, %v1783
        %v1785 = vlaneseq
        %v1786 = vshrl.u32 %v1785, 7
        %v1787 = vsub.s32 6, %v1786
        %v1788 = vrot.slane %v532, %v1787
        %v1789 = vlaneseq
        %v1790 = vshrl.u32 %v1789, 7
        %v1791 = vsub.s32 6, %v1790
        %v1792 = vrot.slane %v533, %v1791
        %v1793 = vlaneseq
        %v1794 = vshrl.u32 %v1793, 7
        %v1795 = vsub.s32 6, %v1794
        %v1796 = vrot.slane %v534, %v1795
        %v1797 = vlaneseq
        %v1798 = vshrl.u32 %v1797, 7
        %v1799 = vsub.s32 6, %v1798
        %v1800 = vrot.slane %v535, %v1799
        %v1801 = vlaneseq
        %v1802 = vshrl.u32 %v1801, 7
        %v1803 = vsub.s32 6, %v1802
        %v1804 = vrot.slane %v536, %v1803
        %v1805 = vlaneseq
        %v1806 = vshrl.u32 %v1805, 7
        %v1807 = vsub.s32 6, %v1806
        %v1808 = vrot.slane %v537, %v1807
        %v1809 = vlaneseq
        %v1810 = vshrl.u32 %v1809, 7
        %v1811 = vsub.s32 6, %v1810
        %v1812 = vrot.slane %v538, %v1811
        %v1813 = vlaneseq
        %v1814 = vshrl.u32 %v1813, 7
        %v1815 = vsub.s32 6, %v1814
        %v1816 = vrot.slane %v539, %v1815
        %v1817 = vlaneseq
        %v1818 = vshrl.u32 %v1817, 7
        %v1819 = vsub.s32 6, %v1818
        %v1820 = vrot.slane %v540, %v1819
        %v1821 = vlaneseq
        %v1822 = vshrl.u32 %v1821, 7
        %v1823 = vsub.s32 6, %v1822
        %v1824 = vrot.slane %v541, %v1823
        %v1825 = vlaneseq
        %v1826 = vshrl.u32 %v1825, 7
        %v1827 = vsub.s32 6, %v1826
        %v1828 = vrot.slane %v542, %v1827
        %v1829 = vlaneseq
        %v1830 = vshrl.u32 %v1829, 7
        %v1831 = vsub.s32 6, %v1830
        %v1832 = vrot.slane %v543, %v1831
        %v1833 = vlaneseq
        %v1834 = vshrl.u32 %v1833, 7
        %v1835 = vsub.s32 6, %v1834
        %v1836 = vrot.slane %v544, %v1835
        %v1837 = vlaneseq
        %v1838 = vshrl.u32 %v1837, 7
        %v1839 = vsub.s32 6, %v1838
        %v1840 = vrot.slane %v545, %v1839
        %v1841 = vlaneseq
        %v1842 = vshrl.u32 %v1841, 7
        %v1843 = vsub.s32 6, %v1842
        %v1844 = vrot.slane %v546, %v1843
        %v1845 = vlaneseq
        %v1846 = vshrl.u32 %v1845, 7
        %v1847 = vsub.s32 6, %v1846
        %v1848 = vrot.slane %v547, %v1847
        %v1849 = vlaneseq
        %v1850 = vshrl.u32 %v1849, 7
        %v1851 = vsub.s32 6, %v1850
        %v1852 = vrot.slane %v548, %v1851
        %v1853 = vlaneseq
        %v1854 = vshrl.u32 %v1853, 7
        %v1855 = vsub.s32 6, %v1854
        %v1856 = vrot.slane %v549, %v1855
        %v1857 = vlaneseq
        %v1858 = vshrl.u32 %v1857, 7
        %v1859 = vsub.s32 6, %v1858
        %v1860 = vrot.slane %v550, %v1859
        %v1861 = vlaneseq
        %v1862 = vshrl.u32 %v1861, 7
        %v1863 = vsub.s32 6, %v1862
        %v1864 = vrot.slane %v551, %v1863
        %v1865 = vlaneseq
        %v1866 = vshrl.u32 %v1865, 7
        %v1867 = vsub.s32 6, %v1866
        %v1868 = vrot.slane %v552, %v1867
        %v1869 = vlaneseq
        %v1870 = vshrl.u32 %v1869, 7
        %v1871 = vsub.s32 6, %v1870
        %v1872 = vrot.slane %v553, %v1871
        %v1873 = vmul.f32 %v1743, %v1748
        %v1874 = vmul.f32 %v1743, %v1752
        %v1875 = vmul.f32 %v1743, %v1756
        %v1876 = vmul.f32 %v1743, %v1760
        %v1877 = vmul.f32 %v1743, %v1764
        %v1878 = vmul.f32 %v1743, %v1768
        %v1879 = vmul.f32 %v1743, %v1772
        %v1880 = vmul.f32 %v1743, %v1776
        %v1881 = vmul.f32 %v1743, %v1780
        %v1882 = vmul.f32 %v1743, %v1784
        %v1883 = vmul.f32 %v1743, %v1788
        %v1884 = vmul.f32 %v1743, %v1792
        %v1885 = vmul.f32 %v1743, %v1796
        %v1886 = vmul.f32 %v1743, %v1800
        %v1887 = vmul.f32 %v1743, %v1804
        %v1888 = vmul.f32 %v1743, %v1808
        %v1889 = vmul.f32 %v1743, %v1812
        %v1890 = vmul.f32 %v1743, %v1816
        %v1891 = vmul.f32 %v1743, %v1820
        %v1892 = vmul.f32 %v1743, %v1824
        %v1893 = vmul.f32 %v1743, %v1828
        %v1894 = vmul.f32 %v1743, %v1832
        %v1895 = vmul.f32 %v1743, %v1836
        %v1896 = vmul.f32 %v1743, %v1840
        %v1897 = vmul.f32 %v1743, %v1844
        %v1898 = vmul.f32 %v1743, %v1848
        %v1899 = vmul.f32 %v1743, %v1852
        %v1900 = vmul.f32 %v1743, %v1856
        %v1901 = vmul.f32 %v1743, %v1860
        %v1902 = vmul.f32 %v1743, %v1864
        %v1903 = vmul.f32 %v1743, %v1868
        %v1904 = vmul.f32 %v1743, %v1872
        %v1905 = vadd.f32 %v1709, %v1873
        %v1906 = vadd.f32 %v1710, %v1874
        %v1907 = vadd.f32 %v1711, %v1875
        %v1908 = vadd.f32 %v1712, %v1876
        %v1909 = vadd.f32 %v1713, %v1877
        %v1910 = vadd.f32 %v1714, %v1878
        %v1911 = vadd.f32 %v1715, %v1879
        %v1912 = vadd.f32 %v1716, %v1880
        %v1913 = vadd.f32 %v1717, %v1881
        %v1914 = vadd.f32 %v1718, %v1882
        %v1915 = vadd.f32 %v1719, %v1883
        %v1916 = vadd.f32 %v1720, %v1884
        %v1917 = vadd.f32 %v1721, %v1885
        %v1918 = vadd.f32 %v1722, %v1886
        %v1919 = vadd.f32 %v1723, %v1887
        %v1920 = vadd.f32 %v1724, %v1888
        %v1921 = vadd.f32 %v1725, %v1889
        %v1922 = vadd.f32 %v1726, %v1890
        %v1923 = vadd.f32 %v1727, %v1891
        %v1924 = vadd.f32 %v1728, %v1892
        %v1925 = vadd.f32 %v1729, %v1893
        %v1926 = vadd.f32 %v1730, %v1894
        %v1927 = vadd.f32 %v1731, %v1895
        %v1928 = vadd.f32 %v1732, %v1896
        %v1929 = vadd.f32 %v1733, %v1897
        %v1930 = vadd.f32 %v1734, %v1898
        %v1931 = vadd.f32 %v1735, %v1899
        %v1932 = vadd.f32 %v1736, %v1900
        %v1933 = vadd.f32 %v1737, %v1901
        %v1934 = vadd.f32 %v1738, %v1902
        %v1935 = vadd.f32 %v1739, %v1903
        %v1936 = vadd.f32 %v1740, %v1904
        %1937 = vset.pattern.permute.xlu0 7
        %1938 = vperm.xlu0 %1937, %v563
        %v1939 = vpop.permute.xlu0 %1938
        %v1941 = vlaneseq
        %v1942 = vshrl.u32 %v1941, 7
        %v1943 = vsub.s32 7, %v1942
        %v1944 = vrot.slane %v522, %v1943
        %v1945 = vlaneseq
        %v1946 = vshrl.u32 %v1945, 7
        %v1947 = vsub.s32 7, %v1946
        %v1948 = vrot.slane %v523, %v1947
        %v1949 = vlaneseq
        %v1950 = vshrl.u32 %v1949, 7
        %v1951 = vsub.s32 7, %v1950
        %v1952 = vrot.slane %v524, %v1951
        %v1953 = vlaneseq
        %v1954 = vshrl.u32 %v1953, 7
        %v1955 = vsub.s32 7, %v1954
        %v1956 = vrot.slane %v525, %v1955
        %v1957 = vlaneseq
        %v1958 = vshrl.u32 %v1957, 7
        %v1959 = vsub.s32 7, %v1958
        %v1960 = vrot.slane %v526, %v1959
        %v1961 = vlaneseq
        %v1962 = vshrl.u32 %v1961, 7
        %v1963 = vsub.s32 7, %v1962
        %v1964 = vrot.slane %v527, %v1963
        %v1965 = vlaneseq
        %v1966 = vshrl.u32 %v1965, 7
        %v1967 = vsub.s32 7, %v1966
        %v1968 = vrot.slane %v528, %v1967
        %v1969 = vlaneseq
        %v1970 = vshrl.u32 %v1969, 7
        %v1971 = vsub.s32 7, %v1970
        %v1972 = vrot.slane %v529, %v1971
        %v1973 = vlaneseq
        %v1974 = vshrl.u32 %v1973, 7
        %v1975 = vsub.s32 7, %v1974
        %v1976 = vrot.slane %v530, %v1975
        %v1977 = vlaneseq
        %v1978 = vshrl.u32 %v1977, 7
        %v1979 = vsub.s32 7, %v1978
        %v1980 = vrot.slane %v531, %v1979
        %v1981 = vlaneseq
        %v1982 = vshrl.u32 %v1981, 7
        %v1983 = vsub.s32 7, %v1982
        %v1984 = vrot.slane %v532, %v1983
        %v1985 = vlaneseq
        %v1986 = vshrl.u32 %v1985, 7
        %v1987 = vsub.s32 7, %v1986
        %v1988 = vrot.slane %v533, %v1987
        %v1989 = vlaneseq
        %v1990 = vshrl.u32 %v1989, 7
        %v1991 = vsub.s32 7, %v1990
        %v1992 = vrot.slane %v534, %v1991
        %v1993 = vlaneseq
        %v1994 = vshrl.u32 %v1993, 7
        %v1995 = vsub.s32 7, %v1994
        %v1996 = vrot.slane %v535, %v1995
        %v1997 = vlaneseq
        %v1998 = vshrl.u32 %v1997, 7
        %v1999 = vsub.s32 7, %v1998
        %v2000 = vrot.slane %v536, %v1999
        %v2001 = vlaneseq
        %v2002 = vshrl.u32 %v2001, 7
        %v2003 = vsub.s32 7, %v2002
        %v2004 = vrot.slane %v537, %v2003
        %v2005 = vlaneseq
        %v2006 = vshrl.u32 %v2005, 7
        %v2007 = vsub.s32 7, %v2006
        %v2008 = vrot.slane %v538, %v2007
        %v2009 = vlaneseq
        %v2010 = vshrl.u32 %v2009, 7
        %v2011 = vsub.s32 7, %v2010
        %v2012 = vrot.slane %v539, %v2011
        %v2013 = vlaneseq
        %v2014 = vshrl.u32 %v2013, 7
        %v2015 = vsub.s32 7, %v2014
        %v2016 = vrot.slane %v540, %v2015
        %v2017 = vlaneseq
        %v2018 = vshrl.u32 %v2017, 7
        %v2019 = vsub.s32 7, %v2018
        %v2020 = vrot.slane %v541, %v2019
        %v2021 = vlaneseq
        %v2022 = vshrl.u32 %v2021, 7
        %v2023 = vsub.s32 7, %v2022
        %v2024 = vrot.slane %v542, %v2023
        %v2025 = vlaneseq
        %v2026 = vshrl.u32 %v2025, 7
        %v2027 = vsub.s32 7, %v2026
        %v2028 = vrot.slane %v543, %v2027
        %v2029 = vlaneseq
        %v2030 = vshrl.u32 %v2029, 7
        %v2031 = vsub.s32 7, %v2030
        %v2032 = vrot.slane %v544, %v2031
        %v2033 = vlaneseq
        %v2034 = vshrl.u32 %v2033, 7
        %v2035 = vsub.s32 7, %v2034
        %v2036 = vrot.slane %v545, %v2035
        %v2037 = vlaneseq
        %v2038 = vshrl.u32 %v2037, 7
        %v2039 = vsub.s32 7, %v2038
        %v2040 = vrot.slane %v546, %v2039
        %v2041 = vlaneseq
        %v2042 = vshrl.u32 %v2041, 7
        %v2043 = vsub.s32 7, %v2042
        %v2044 = vrot.slane %v547, %v2043
        %v2045 = vlaneseq
        %v2046 = vshrl.u32 %v2045, 7
        %v2047 = vsub.s32 7, %v2046
        %v2048 = vrot.slane %v548, %v2047
        %v2049 = vlaneseq
        %v2050 = vshrl.u32 %v2049, 7
        %v2051 = vsub.s32 7, %v2050
        %v2052 = vrot.slane %v549, %v2051
        %v2053 = vlaneseq
        %v2054 = vshrl.u32 %v2053, 7
        %v2055 = vsub.s32 7, %v2054
        %v2056 = vrot.slane %v550, %v2055
        %v2057 = vlaneseq
        %v2058 = vshrl.u32 %v2057, 7
        %v2059 = vsub.s32 7, %v2058
        %v2060 = vrot.slane %v551, %v2059
        %v2061 = vlaneseq
        %v2062 = vshrl.u32 %v2061, 7
        %v2063 = vsub.s32 7, %v2062
        %v2064 = vrot.slane %v552, %v2063
        %v2065 = vlaneseq
        %v2066 = vshrl.u32 %v2065, 7
        %v2067 = vsub.s32 7, %v2066
        %v2068 = vrot.slane %v553, %v2067
        %v2069 = vmul.f32 %v1939, %v1944
        %v2070 = vmul.f32 %v1939, %v1948
        %v2071 = vmul.f32 %v1939, %v1952
        %v2072 = vmul.f32 %v1939, %v1956
        %v2073 = vmul.f32 %v1939, %v1960
        %v2074 = vmul.f32 %v1939, %v1964
        %v2075 = vmul.f32 %v1939, %v1968
        %v2076 = vmul.f32 %v1939, %v1972
        %v2077 = vmul.f32 %v1939, %v1976
        %v2078 = vmul.f32 %v1939, %v1980
        %v2079 = vmul.f32 %v1939, %v1984
        %v2080 = vmul.f32 %v1939, %v1988
        %v2081 = vmul.f32 %v1939, %v1992
        %v2082 = vmul.f32 %v1939, %v1996
        %v2083 = vmul.f32 %v1939, %v2000
        %v2084 = vmul.f32 %v1939, %v2004
        %v2085 = vmul.f32 %v1939, %v2008
        %v2086 = vmul.f32 %v1939, %v2012
        %v2087 = vmul.f32 %v1939, %v2016
        %v2088 = vmul.f32 %v1939, %v2020
        %v2089 = vmul.f32 %v1939, %v2024
        %v2090 = vmul.f32 %v1939, %v2028
        %v2091 = vmul.f32 %v1939, %v2032
        %v2092 = vmul.f32 %v1939, %v2036
        %v2093 = vmul.f32 %v1939, %v2040
        %v2094 = vmul.f32 %v1939, %v2044
        %v2095 = vmul.f32 %v1939, %v2048
        %v2096 = vmul.f32 %v1939, %v2052
        %v2097 = vmul.f32 %v1939, %v2056
        %v2098 = vmul.f32 %v1939, %v2060
        %v2099 = vmul.f32 %v1939, %v2064
        %v2100 = vmul.f32 %v1939, %v2068
        %v2101 = vadd.f32 %v1905, %v2069
        %v2102 = vadd.f32 %v1906, %v2070
        %v2103 = vadd.f32 %v1907, %v2071
        %v2104 = vadd.f32 %v1908, %v2072
        %v2105 = vadd.f32 %v1909, %v2073
        %v2106 = vadd.f32 %v1910, %v2074
        %v2107 = vadd.f32 %v1911, %v2075
        %v2108 = vadd.f32 %v1912, %v2076
        %v2109 = vadd.f32 %v1913, %v2077
        %v2110 = vadd.f32 %v1914, %v2078
        %v2111 = vadd.f32 %v1915, %v2079
        %v2112 = vadd.f32 %v1916, %v2080
        %v2113 = vadd.f32 %v1917, %v2081
        %v2114 = vadd.f32 %v1918, %v2082
        %v2115 = vadd.f32 %v1919, %v2083
        %v2116 = vadd.f32 %v1920, %v2084
        %v2117 = vadd.f32 %v1921, %v2085
        %v2118 = vadd.f32 %v1922, %v2086
        %v2119 = vadd.f32 %v1923, %v2087
        %v2120 = vadd.f32 %v1924, %v2088
        %v2121 = vadd.f32 %v1925, %v2089
        %v2122 = vadd.f32 %v1926, %v2090
        %v2123 = vadd.f32 %v1927, %v2091
        %v2124 = vadd.f32 %v1928, %v2092
        %v2125 = vadd.f32 %v1929, %v2093
        %v2126 = vadd.f32 %v1930, %v2094
        %v2127 = vadd.f32 %v1931, %v2095
        %v2128 = vadd.f32 %v1932, %v2096
        %v2129 = vadd.f32 %v1933, %v2097
        %v2130 = vadd.f32 %v1934, %v2098
        %v2131 = vadd.f32 %v1935, %v2099
        %v2132 = vadd.f32 %v1936, %v2100
        %v2133 = vadd.f32 %v2101, %v554
        %v2134 = vadd.f32 %v2102, %v555
        %v2135 = vadd.f32 %v2103, %v554
        %v2136 = vadd.f32 %v2104, %v555
        %v2137 = vadd.f32 %v2105, %v554
        %v2138 = vadd.f32 %v2106, %v555
        %v2139 = vadd.f32 %v2107, %v554
        %v2140 = vadd.f32 %v2108, %v555
        %v2141 = vadd.f32 %v2109, %v554
        %v2142 = vadd.f32 %v2110, %v555
        %v2143 = vadd.f32 %v2111, %v554
        %v2144 = vadd.f32 %v2112, %v555
        %v2145 = vadd.f32 %v2113, %v554
        %v2146 = vadd.f32 %v2114, %v555
        %v2147 = vadd.f32 %v2115, %v554
        %v2148 = vadd.f32 %v2116, %v555
        %v2149 = vadd.f32 %v2117, %v554
        %v2150 = vadd.f32 %v2118, %v555
        %v2151 = vadd.f32 %v2119, %v554
        %v2152 = vadd.f32 %v2120, %v555
        %v2153 = vadd.f32 %v2121, %v554
        %v2154 = vadd.f32 %v2122, %v555
        %v2155 = vadd.f32 %v2123, %v554
        %v2156 = vadd.f32 %v2124, %v555
        %v2157 = vadd.f32 %v2125, %v554
        %v2158 = vadd.f32 %v2126, %v555
        %v2159 = vadd.f32 %v2127, %v554
        %v2160 = vadd.f32 %v2128, %v555
        %v2161 = vadd.f32 %v2129, %v554
        %v2162 = vadd.f32 %v2130, %v555
        %v2163 = vadd.f32 %v2131, %v554
        %v2164 = vadd.f32 %v2132, %v555
        %v2165 = vmax.f32 %v2133, 0.0
        %v2166 = vmax.f32 %v2134, 0.0
        %v2167 = vmax.f32 %v2135, 0.0
        %v2168 = vmax.f32 %v2136, 0.0
        %v2169 = vmax.f32 %v2137, 0.0
        %v2170 = vmax.f32 %v2138, 0.0
        %v2171 = vmax.f32 %v2139, 0.0
        %v2172 = vmax.f32 %v2140, 0.0
        %v2173 = vmax.f32 %v2141, 0.0
        %v2174 = vmax.f32 %v2142, 0.0
        %v2175 = vmax.f32 %v2143, 0.0
        %v2176 = vmax.f32 %v2144, 0.0
        %v2177 = vmax.f32 %v2145, 0.0
        %v2178 = vmax.f32 %v2146, 0.0
        %v2179 = vmax.f32 %v2147, 0.0
        %v2180 = vmax.f32 %v2148, 0.0
        %v2181 = vmax.f32 %v2149, 0.0
        %v2182 = vmax.f32 %v2150, 0.0
        %v2183 = vmax.f32 %v2151, 0.0
        %v2184 = vmax.f32 %v2152, 0.0
        %v2185 = vmax.f32 %v2153, 0.0
        %v2186 = vmax.f32 %v2154, 0.0
        %v2187 = vmax.f32 %v2155, 0.0
        %v2188 = vmax.f32 %v2156, 0.0
        %v2189 = vmax.f32 %v2157, 0.0
        %v2190 = vmax.f32 %v2158, 0.0
        %v2191 = vmax.f32 %v2159, 0.0
        %v2192 = vmax.f32 %v2160, 0.0
        %v2193 = vmax.f32 %v2161, 0.0
        %v2194 = vmax.f32 %v2162, 0.0
        %v2195 = vmax.f32 %v2163, 0.0
        %v2196 = vmax.f32 %v2164, 0.0
        %v2197 = vadd.f32 %v522, %v2165
        %v2198 = vadd.f32 %v523, %v2166
        %v2199 = vadd.f32 %v524, %v2167
        %v2200 = vadd.f32 %v525, %v2168
        %v2201 = vadd.f32 %v526, %v2169
        %v2202 = vadd.f32 %v527, %v2170
        %v2203 = vadd.f32 %v528, %v2171
        %v2204 = vadd.f32 %v529, %v2172
        %v2205 = vadd.f32 %v530, %v2173
        %v2206 = vadd.f32 %v531, %v2174
        %v2207 = vadd.f32 %v532, %v2175
        %v2208 = vadd.f32 %v533, %v2176
        %v2209 = vadd.f32 %v534, %v2177
        %v2210 = vadd.f32 %v535, %v2178
        %v2211 = vadd.f32 %v536, %v2179
        %v2212 = vadd.f32 %v537, %v2180
        %v2213 = vadd.f32 %v538, %v2181
        %v2214 = vadd.f32 %v539, %v2182
        %v2215 = vadd.f32 %v540, %v2183
        %v2216 = vadd.f32 %v541, %v2184
        %v2217 = vadd.f32 %v542, %v2185
        %v2218 = vadd.f32 %v543, %v2186
        %v2219 = vadd.f32 %v544, %v2187
        %v2220 = vadd.f32 %v545, %v2188
        %v2221 = vadd.f32 %v546, %v2189
        %v2222 = vadd.f32 %v547, %v2190
        %v2223 = vadd.f32 %v548, %v2191
        %v2224 = vadd.f32 %v549, %v2192
        %v2225 = vadd.f32 %v550, %v2193
        %v2226 = vadd.f32 %v551, %v2194
        %v2227 = vadd.f32 %v552, %v2195
        %v2228 = vadd.f32 %v553, %v2196
        %v2229 = vadd.f32 %v2197, %v2198
        %2230 = vadd.xlane.f32.xlu0 %v2229
        %v2231 = vpop.xlane.xlu0 %2230
        %v2232 = vadd.f32 %v2199, %v2200
        %2233 = vadd.xlane.f32.xlu0 %v2232
        %v2234 = vpop.xlane.xlu0 %2233
        %v2235 = vadd.f32 %v2201, %v2202
        %2236 = vadd.xlane.f32.xlu0 %v2235
        %v2237 = vpop.xlane.xlu0 %2236
        %v2238 = vadd.f32 %v2203, %v2204
        %2239 = vadd.xlane.f32.xlu0 %v2238
        %v2240 = vpop.xlane.xlu0 %2239
        %v2241 = vadd.f32 %v2205, %v2206
        %2242 = vadd.xlane.f32.xlu0 %v2241
        %v2243 = vpop.xlane.xlu0 %2242
        %v2244 = vadd.f32 %v2207, %v2208
        %2245 = vadd.xlane.f32.xlu0 %v2244
        %v2246 = vpop.xlane.xlu0 %2245
        %v2247 = vadd.f32 %v2209, %v2210
        %2248 = vadd.xlane.f32.xlu0 %v2247
        %v2249 = vpop.xlane.xlu0 %2248
        %v2250 = vadd.f32 %v2211, %v2212
        %2251 = vadd.xlane.f32.xlu0 %v2250
        %v2252 = vpop.xlane.xlu0 %2251
        %v2253 = vadd.f32 %v2213, %v2214
        %2254 = vadd.xlane.f32.xlu0 %v2253
        %v2255 = vpop.xlane.xlu0 %2254
        %v2256 = vadd.f32 %v2215, %v2216
        %2257 = vadd.xlane.f32.xlu0 %v2256
        %v2258 = vpop.xlane.xlu0 %2257
        %v2259 = vadd.f32 %v2217, %v2218
        %2260 = vadd.xlane.f32.xlu0 %v2259
        %v2261 = vpop.xlane.xlu0 %2260
        %v2262 = vadd.f32 %v2219, %v2220
        %2263 = vadd.xlane.f32.xlu0 %v2262
        %v2264 = vpop.xlane.xlu0 %2263
        %v2265 = vadd.f32 %v2221, %v2222
        %2266 = vadd.xlane.f32.xlu0 %v2265
        %v2267 = vpop.xlane.xlu0 %2266
        %v2268 = vadd.f32 %v2223, %v2224
        %2269 = vadd.xlane.f32.xlu0 %v2268
        %v2270 = vpop.xlane.xlu0 %2269
        %v2271 = vadd.f32 %v2225, %v2226
        %2272 = vadd.xlane.f32.xlu0 %v2271
        %v2273 = vpop.xlane.xlu0 %2272
        %v2274 = vadd.f32 %v2227, %v2228
        %2275 = vadd.xlane.f32.xlu0 %v2274
        %v2276 = vpop.xlane.xlu0 %2275
        %v2277 = vrot.slane %v2231, 4
        %v2278 = vadd.f32 %v2231, %v2277
        %v2279 = vrot.slane %v2278, 2
        %v2280 = vadd.f32 %v2278, %v2279
        %v2281 = vrot.slane %v2280, 1
        %v2282 = vadd.f32 %v2280, %v2281
        %v2283 = vrot.slane %v2234, 4
        %v2284 = vadd.f32 %v2234, %v2283
        %v2285 = vrot.slane %v2284, 2
        %v2286 = vadd.f32 %v2284, %v2285
        %v2287 = vrot.slane %v2286, 1
        %v2288 = vadd.f32 %v2286, %v2287
        %v2289 = vrot.slane %v2237, 4
        %v2290 = vadd.f32 %v2237, %v2289
        %v2291 = vrot.slane %v2290, 2
        %v2292 = vadd.f32 %v2290, %v2291
        %v2293 = vrot.slane %v2292, 1
        %v2294 = vadd.f32 %v2292, %v2293
        %v2295 = vrot.slane %v2240, 4
        %v2296 = vadd.f32 %v2240, %v2295
        %v2297 = vrot.slane %v2296, 2
        %v2298 = vadd.f32 %v2296, %v2297
        %v2299 = vrot.slane %v2298, 1
        %v2300 = vadd.f32 %v2298, %v2299
        %v2301 = vrot.slane %v2243, 4
        %v2302 = vadd.f32 %v2243, %v2301
        %v2303 = vrot.slane %v2302, 2
        %v2304 = vadd.f32 %v2302, %v2303
        %v2305 = vrot.slane %v2304, 1
        %v2306 = vadd.f32 %v2304, %v2305
        %v2307 = vrot.slane %v2246, 4
        %v2308 = vadd.f32 %v2246, %v2307
        %v2309 = vrot.slane %v2308, 2
        %v2310 = vadd.f32 %v2308, %v2309
        %v2311 = vrot.slane %v2310, 1
        %v2312 = vadd.f32 %v2310, %v2311
        %v2313 = vrot.slane %v2249, 4
        %v2314 = vadd.f32 %v2249, %v2313
        %v2315 = vrot.slane %v2314, 2
        %v2316 = vadd.f32 %v2314, %v2315
        %v2317 = vrot.slane %v2316, 1
        %v2318 = vadd.f32 %v2316, %v2317
        %v2319 = vrot.slane %v2252, 4
        %v2320 = vadd.f32 %v2252, %v2319
        %v2321 = vrot.slane %v2320, 2
        %v2322 = vadd.f32 %v2320, %v2321
        %v2323 = vrot.slane %v2322, 1
        %v2324 = vadd.f32 %v2322, %v2323
        %v2325 = vrot.slane %v2255, 4
        %v2326 = vadd.f32 %v2255, %v2325
        %v2327 = vrot.slane %v2326, 2
        %v2328 = vadd.f32 %v2326, %v2327
        %v2329 = vrot.slane %v2328, 1
        %v2330 = vadd.f32 %v2328, %v2329
        %v2331 = vrot.slane %v2258, 4
        %v2332 = vadd.f32 %v2258, %v2331
        %v2333 = vrot.slane %v2332, 2
        %v2334 = vadd.f32 %v2332, %v2333
        %v2335 = vrot.slane %v2334, 1
        %v2336 = vadd.f32 %v2334, %v2335
        %v2337 = vrot.slane %v2261, 4
        %v2338 = vadd.f32 %v2261, %v2337
        %v2339 = vrot.slane %v2338, 2
        %v2340 = vadd.f32 %v2338, %v2339
        %v2341 = vrot.slane %v2340, 1
        %v2342 = vadd.f32 %v2340, %v2341
        %v2343 = vrot.slane %v2264, 4
        %v2344 = vadd.f32 %v2264, %v2343
        %v2345 = vrot.slane %v2344, 2
        %v2346 = vadd.f32 %v2344, %v2345
        %v2347 = vrot.slane %v2346, 1
        %v2348 = vadd.f32 %v2346, %v2347
        %v2349 = vrot.slane %v2267, 4
        %v2350 = vadd.f32 %v2267, %v2349
        %v2351 = vrot.slane %v2350, 2
        %v2352 = vadd.f32 %v2350, %v2351
        %v2353 = vrot.slane %v2352, 1
        %v2354 = vadd.f32 %v2352, %v2353
        %v2355 = vrot.slane %v2270, 4
        %v2356 = vadd.f32 %v2270, %v2355
        %v2357 = vrot.slane %v2356, 2
        %v2358 = vadd.f32 %v2356, %v2357
        %v2359 = vrot.slane %v2358, 1
        %v2360 = vadd.f32 %v2358, %v2359
        %v2361 = vrot.slane %v2273, 4
        %v2362 = vadd.f32 %v2273, %v2361
        %v2363 = vrot.slane %v2362, 2
        %v2364 = vadd.f32 %v2362, %v2363
        %v2365 = vrot.slane %v2364, 1
        %v2366 = vadd.f32 %v2364, %v2365
        %v2367 = vrot.slane %v2276, 4
        %v2368 = vadd.f32 %v2276, %v2367
        %v2369 = vrot.slane %v2368, 2
        %v2370 = vadd.f32 %v2368, %v2369
        %v2371 = vrot.slane %v2370, 1
        %v2372 = vadd.f32 %v2370, %v2371
        %v2373 = vrcp.pop 2048.0
        %v2374 = vmul.f32 %v2282, %v2373
        %v2375 = vmul.f32 %v2288, %v2373
        %v2376 = vmul.f32 %v2294, %v2373
        %v2377 = vmul.f32 %v2300, %v2373
        %v2378 = vmul.f32 %v2306, %v2373
        %v2379 = vmul.f32 %v2312, %v2373
        %v2380 = vmul.f32 %v2318, %v2373
        %v2381 = vmul.f32 %v2324, %v2373
        %v2382 = vmul.f32 %v2330, %v2373
        %v2383 = vmul.f32 %v2336, %v2373
        %v2384 = vmul.f32 %v2342, %v2373
        %v2385 = vmul.f32 %v2348, %v2373
        %v2386 = vmul.f32 %v2354, %v2373
        %v2387 = vmul.f32 %v2360, %v2373
        %v2388 = vmul.f32 %v2366, %v2373
        %v2389 = vmul.f32 %v2372, %v2373
        %v2390 = vsub.f32 %v2197, %v2374
        %v2391 = vsub.f32 %v2198, %v2374
        %v2392 = vsub.f32 %v2199, %v2375
        %v2393 = vsub.f32 %v2200, %v2375
        %v2394 = vsub.f32 %v2201, %v2376
        %v2395 = vsub.f32 %v2202, %v2376
        %v2396 = vsub.f32 %v2203, %v2377
        %v2397 = vsub.f32 %v2204, %v2377
        %v2398 = vsub.f32 %v2205, %v2378
        %v2399 = vsub.f32 %v2206, %v2378
        %v2400 = vsub.f32 %v2207, %v2379
        %v2401 = vsub.f32 %v2208, %v2379
        %v2402 = vsub.f32 %v2209, %v2380
        %v2403 = vsub.f32 %v2210, %v2380
        %v2404 = vsub.f32 %v2211, %v2381
        %v2405 = vsub.f32 %v2212, %v2381
        %v2406 = vsub.f32 %v2213, %v2382
        %v2407 = vsub.f32 %v2214, %v2382
        %v2408 = vsub.f32 %v2215, %v2383
        %v2409 = vsub.f32 %v2216, %v2383
        %v2410 = vsub.f32 %v2217, %v2384
        %v2411 = vsub.f32 %v2218, %v2384
        %v2412 = vsub.f32 %v2219, %v2385
        %v2413 = vsub.f32 %v2220, %v2385
        %v2414 = vsub.f32 %v2221, %v2386
        %v2415 = vsub.f32 %v2222, %v2386
        %v2416 = vsub.f32 %v2223, %v2387
        %v2417 = vsub.f32 %v2224, %v2387
        %v2418 = vsub.f32 %v2225, %v2388
        %v2419 = vsub.f32 %v2226, %v2388
        %v2420 = vsub.f32 %v2227, %v2389
        %v2421 = vsub.f32 %v2228, %v2389
        %v2422 = vmul.f32 %v2390, %v2390
        %v2423 = vmul.f32 %v2391, %v2391
        %v2424 = vmul.f32 %v2392, %v2392
        %v2425 = vmul.f32 %v2393, %v2393
        %v2426 = vmul.f32 %v2394, %v2394
        %v2427 = vmul.f32 %v2395, %v2395
        %v2428 = vmul.f32 %v2396, %v2396
        %v2429 = vmul.f32 %v2397, %v2397
        %v2430 = vmul.f32 %v2398, %v2398
        %v2431 = vmul.f32 %v2399, %v2399
        %v2432 = vmul.f32 %v2400, %v2400
        %v2433 = vmul.f32 %v2401, %v2401
        %v2434 = vmul.f32 %v2402, %v2402
        %v2435 = vmul.f32 %v2403, %v2403
        %v2436 = vmul.f32 %v2404, %v2404
        %v2437 = vmul.f32 %v2405, %v2405
        %v2438 = vmul.f32 %v2406, %v2406
        %v2439 = vmul.f32 %v2407, %v2407
        %v2440 = vmul.f32 %v2408, %v2408
        %v2441 = vmul.f32 %v2409, %v2409
        %v2442 = vmul.f32 %v2410, %v2410
        %v2443 = vmul.f32 %v2411, %v2411
        %v2444 = vmul.f32 %v2412, %v2412
        %v2445 = vmul.f32 %v2413, %v2413
        %v2446 = vmul.f32 %v2414, %v2414
        %v2447 = vmul.f32 %v2415, %v2415
        %v2448 = vmul.f32 %v2416, %v2416
        %v2449 = vmul.f32 %v2417, %v2417
        %v2450 = vmul.f32 %v2418, %v2418
        %v2451 = vmul.f32 %v2419, %v2419
        %v2452 = vmul.f32 %v2420, %v2420
        %v2453 = vmul.f32 %v2421, %v2421
        %v2454 = vadd.f32 %v2422, %v2423
        %2455 = vadd.xlane.f32.xlu0 %v2454
        %v2456 = vpop.xlane.xlu0 %2455
        %v2457 = vadd.f32 %v2424, %v2425
        %2458 = vadd.xlane.f32.xlu0 %v2457
        %v2459 = vpop.xlane.xlu0 %2458
        %v2460 = vadd.f32 %v2426, %v2427
        %2461 = vadd.xlane.f32.xlu0 %v2460
        %v2462 = vpop.xlane.xlu0 %2461
        %v2463 = vadd.f32 %v2428, %v2429
        %2464 = vadd.xlane.f32.xlu0 %v2463
        %v2465 = vpop.xlane.xlu0 %2464
        %v2466 = vadd.f32 %v2430, %v2431
        %2467 = vadd.xlane.f32.xlu0 %v2466
        %v2468 = vpop.xlane.xlu0 %2467
        %v2469 = vadd.f32 %v2432, %v2433
        %2470 = vadd.xlane.f32.xlu0 %v2469
        %v2471 = vpop.xlane.xlu0 %2470
        %v2472 = vadd.f32 %v2434, %v2435
        %2473 = vadd.xlane.f32.xlu0 %v2472
        %v2474 = vpop.xlane.xlu0 %2473
        %v2475 = vadd.f32 %v2436, %v2437
        %2476 = vadd.xlane.f32.xlu0 %v2475
        %v2477 = vpop.xlane.xlu0 %2476
        %v2478 = vadd.f32 %v2438, %v2439
        %2479 = vadd.xlane.f32.xlu0 %v2478
        %v2480 = vpop.xlane.xlu0 %2479
        %v2481 = vadd.f32 %v2440, %v2441
        %2482 = vadd.xlane.f32.xlu0 %v2481
        %v2483 = vpop.xlane.xlu0 %2482
        %v2484 = vadd.f32 %v2442, %v2443
        %2485 = vadd.xlane.f32.xlu0 %v2484
        %v2486 = vpop.xlane.xlu0 %2485
        %v2487 = vadd.f32 %v2444, %v2445
        %2488 = vadd.xlane.f32.xlu0 %v2487
        %v2489 = vpop.xlane.xlu0 %2488
        %v2490 = vadd.f32 %v2446, %v2447
        %2491 = vadd.xlane.f32.xlu0 %v2490
        %v2492 = vpop.xlane.xlu0 %2491
        %v2493 = vadd.f32 %v2448, %v2449
        %2494 = vadd.xlane.f32.xlu0 %v2493
        %v2495 = vpop.xlane.xlu0 %2494
        %v2496 = vadd.f32 %v2450, %v2451
        %2497 = vadd.xlane.f32.xlu0 %v2496
        %v2498 = vpop.xlane.xlu0 %2497
        %v2499 = vadd.f32 %v2452, %v2453
        %2500 = vadd.xlane.f32.xlu0 %v2499
        %v2501 = vpop.xlane.xlu0 %2500
        %v2502 = vrot.slane %v2456, 4
        %v2503 = vadd.f32 %v2456, %v2502
        %v2504 = vrot.slane %v2503, 2
        %v2505 = vadd.f32 %v2503, %v2504
        %v2506 = vrot.slane %v2505, 1
        %v2507 = vadd.f32 %v2505, %v2506
        %v2508 = vrot.slane %v2459, 4
        %v2509 = vadd.f32 %v2459, %v2508
        %v2510 = vrot.slane %v2509, 2
        %v2511 = vadd.f32 %v2509, %v2510
        %v2512 = vrot.slane %v2511, 1
        %v2513 = vadd.f32 %v2511, %v2512
        %v2514 = vrot.slane %v2462, 4
        %v2515 = vadd.f32 %v2462, %v2514
        %v2516 = vrot.slane %v2515, 2
        %v2517 = vadd.f32 %v2515, %v2516
        %v2518 = vrot.slane %v2517, 1
        %v2519 = vadd.f32 %v2517, %v2518
        %v2520 = vrot.slane %v2465, 4
        %v2521 = vadd.f32 %v2465, %v2520
        %v2522 = vrot.slane %v2521, 2
        %v2523 = vadd.f32 %v2521, %v2522
        %v2524 = vrot.slane %v2523, 1
        %v2525 = vadd.f32 %v2523, %v2524
        %v2526 = vrot.slane %v2468, 4
        %v2527 = vadd.f32 %v2468, %v2526
        %v2528 = vrot.slane %v2527, 2
        %v2529 = vadd.f32 %v2527, %v2528
        %v2530 = vrot.slane %v2529, 1
        %v2531 = vadd.f32 %v2529, %v2530
        %v2532 = vrot.slane %v2471, 4
        %v2533 = vadd.f32 %v2471, %v2532
        %v2534 = vrot.slane %v2533, 2
        %v2535 = vadd.f32 %v2533, %v2534
        %v2536 = vrot.slane %v2535, 1
        %v2537 = vadd.f32 %v2535, %v2536
        %v2538 = vrot.slane %v2474, 4
        %v2539 = vadd.f32 %v2474, %v2538
        %v2540 = vrot.slane %v2539, 2
        %v2541 = vadd.f32 %v2539, %v2540
        %v2542 = vrot.slane %v2541, 1
        %v2543 = vadd.f32 %v2541, %v2542
        %v2544 = vrot.slane %v2477, 4
        %v2545 = vadd.f32 %v2477, %v2544
        %v2546 = vrot.slane %v2545, 2
        %v2547 = vadd.f32 %v2545, %v2546
        %v2548 = vrot.slane %v2547, 1
        %v2549 = vadd.f32 %v2547, %v2548
        %v2550 = vrot.slane %v2480, 4
        %v2551 = vadd.f32 %v2480, %v2550
        %v2552 = vrot.slane %v2551, 2
        %v2553 = vadd.f32 %v2551, %v2552
        %v2554 = vrot.slane %v2553, 1
        %v2555 = vadd.f32 %v2553, %v2554
        %v2556 = vrot.slane %v2483, 4
        %v2557 = vadd.f32 %v2483, %v2556
        %v2558 = vrot.slane %v2557, 2
        %v2559 = vadd.f32 %v2557, %v2558
        %v2560 = vrot.slane %v2559, 1
        %v2561 = vadd.f32 %v2559, %v2560
        %v2562 = vrot.slane %v2486, 4
        %v2563 = vadd.f32 %v2486, %v2562
        %v2564 = vrot.slane %v2563, 2
        %v2565 = vadd.f32 %v2563, %v2564
        %v2566 = vrot.slane %v2565, 1
        %v2567 = vadd.f32 %v2565, %v2566
        %v2568 = vrot.slane %v2489, 4
        %v2569 = vadd.f32 %v2489, %v2568
        %v2570 = vrot.slane %v2569, 2
        %v2571 = vadd.f32 %v2569, %v2570
        %v2572 = vrot.slane %v2571, 1
        %v2573 = vadd.f32 %v2571, %v2572
        %v2574 = vrot.slane %v2492, 4
        %v2575 = vadd.f32 %v2492, %v2574
        %v2576 = vrot.slane %v2575, 2
        %v2577 = vadd.f32 %v2575, %v2576
        %v2578 = vrot.slane %v2577, 1
        %v2579 = vadd.f32 %v2577, %v2578
        %v2580 = vrot.slane %v2495, 4
        %v2581 = vadd.f32 %v2495, %v2580
        %v2582 = vrot.slane %v2581, 2
        %v2583 = vadd.f32 %v2581, %v2582
        %v2584 = vrot.slane %v2583, 1
        %v2585 = vadd.f32 %v2583, %v2584
        %v2586 = vrot.slane %v2498, 4
        %v2587 = vadd.f32 %v2498, %v2586
        %v2588 = vrot.slane %v2587, 2
        %v2589 = vadd.f32 %v2587, %v2588
        %v2590 = vrot.slane %v2589, 1
        %v2591 = vadd.f32 %v2589, %v2590
        %v2592 = vrot.slane %v2501, 4
        %v2593 = vadd.f32 %v2501, %v2592
        %v2594 = vrot.slane %v2593, 2
        %v2595 = vadd.f32 %v2593, %v2594
        %v2596 = vrot.slane %v2595, 1
        %v2597 = vadd.f32 %v2595, %v2596
        %v2598 = vmul.f32 %v2507, %v2373
        %v2599 = vmul.f32 %v2513, %v2373
        %v2600 = vmul.f32 %v2519, %v2373
        %v2601 = vmul.f32 %v2525, %v2373
        %v2602 = vmul.f32 %v2531, %v2373
        %v2603 = vmul.f32 %v2537, %v2373
        %v2604 = vmul.f32 %v2543, %v2373
        %v2605 = vmul.f32 %v2549, %v2373
        %v2606 = vmul.f32 %v2555, %v2373
        %v2607 = vmul.f32 %v2561, %v2373
        %v2608 = vmul.f32 %v2567, %v2373
        %v2609 = vmul.f32 %v2573, %v2373
        %v2610 = vmul.f32 %v2579, %v2373
        %v2611 = vmul.f32 %v2585, %v2373
        %v2612 = vmul.f32 %v2591, %v2373
        %v2613 = vmul.f32 %v2597, %v2373
        %v2614 = vadd.f32 %v2598, 1e-05
        %v2615 = vadd.f32 %v2599, 1e-05
        %v2616 = vadd.f32 %v2600, 1e-05
        %v2617 = vadd.f32 %v2601, 1e-05
        %v2618 = vadd.f32 %v2602, 1e-05
        %v2619 = vadd.f32 %v2603, 1e-05
        %v2620 = vadd.f32 %v2604, 1e-05
        %v2621 = vadd.f32 %v2605, 1e-05
        %v2622 = vadd.f32 %v2606, 1e-05
        %v2623 = vadd.f32 %v2607, 1e-05
        %v2624 = vadd.f32 %v2608, 1e-05
        %v2625 = vadd.f32 %v2609, 1e-05
        %v2626 = vadd.f32 %v2610, 1e-05
        %v2627 = vadd.f32 %v2611, 1e-05
        %v2628 = vadd.f32 %v2612, 1e-05
        %v2629 = vadd.f32 %v2613, 1e-05
        %v2630 = vrsqrt.pop %v2614
        %v2631 = vrsqrt.pop %v2615
        %v2632 = vrsqrt.pop %v2616
        %v2633 = vrsqrt.pop %v2617
        %v2634 = vrsqrt.pop %v2618
        %v2635 = vrsqrt.pop %v2619
        %v2636 = vrsqrt.pop %v2620
        %v2637 = vrsqrt.pop %v2621
        %v2638 = vrsqrt.pop %v2622
        %v2639 = vrsqrt.pop %v2623
        %v2640 = vrsqrt.pop %v2624
        %v2641 = vrsqrt.pop %v2625
        %v2642 = vrsqrt.pop %v2626
        %v2643 = vrsqrt.pop %v2627
        %v2644 = vrsqrt.pop %v2628
        %v2645 = vrsqrt.pop %v2629
        %v2646 = vmul.f32 %v2390, %v2630
        %v2647 = vmul.f32 %v2391, %v2630
        %v2648 = vmul.f32 %v2392, %v2631
        %v2649 = vmul.f32 %v2393, %v2631
        %v2650 = vmul.f32 %v2394, %v2632
        %v2651 = vmul.f32 %v2395, %v2632
        %v2652 = vmul.f32 %v2396, %v2633
        %v2653 = vmul.f32 %v2397, %v2633
        %v2654 = vmul.f32 %v2398, %v2634
        %v2655 = vmul.f32 %v2399, %v2634
        %v2656 = vmul.f32 %v2400, %v2635
        %v2657 = vmul.f32 %v2401, %v2635
        %v2658 = vmul.f32 %v2402, %v2636
        %v2659 = vmul.f32 %v2403, %v2636
        %v2660 = vmul.f32 %v2404, %v2637
        %v2661 = vmul.f32 %v2405, %v2637
        %v2662 = vmul.f32 %v2406, %v2638
        %v2663 = vmul.f32 %v2407, %v2638
        %v2664 = vmul.f32 %v2408, %v2639
        %v2665 = vmul.f32 %v2409, %v2639
        %v2666 = vmul.f32 %v2410, %v2640
        %v2667 = vmul.f32 %v2411, %v2640
        %v2668 = vmul.f32 %v2412, %v2641
        %v2669 = vmul.f32 %v2413, %v2641
        %v2670 = vmul.f32 %v2414, %v2642
        %v2671 = vmul.f32 %v2415, %v2642
        %v2672 = vmul.f32 %v2416, %v2643
        %v2673 = vmul.f32 %v2417, %v2643
        %v2674 = vmul.f32 %v2418, %v2644
        %v2675 = vmul.f32 %v2419, %v2644
        %v2676 = vmul.f32 %v2420, %v2645
        %v2677 = vmul.f32 %v2421, %v2645
        %v2678 = vmul.f32 %v2646, %v556
        %v2679 = vmul.f32 %v2647, %v557
        %v2680 = vmul.f32 %v2648, %v556
        %v2681 = vmul.f32 %v2649, %v557
        %v2682 = vmul.f32 %v2650, %v556
        %v2683 = vmul.f32 %v2651, %v557
        %v2684 = vmul.f32 %v2652, %v556
        %v2685 = vmul.f32 %v2653, %v557
        %v2686 = vmul.f32 %v2654, %v556
        %v2687 = vmul.f32 %v2655, %v557
        %v2688 = vmul.f32 %v2656, %v556
        %v2689 = vmul.f32 %v2657, %v557
        %v2690 = vmul.f32 %v2658, %v556
        %v2691 = vmul.f32 %v2659, %v557
        %v2692 = vmul.f32 %v2660, %v556
        %v2693 = vmul.f32 %v2661, %v557
        %v2694 = vmul.f32 %v2662, %v556
        %v2695 = vmul.f32 %v2663, %v557
        %v2696 = vmul.f32 %v2664, %v556
        %v2697 = vmul.f32 %v2665, %v557
        %v2698 = vmul.f32 %v2666, %v556
        %v2699 = vmul.f32 %v2667, %v557
        %v2700 = vmul.f32 %v2668, %v556
        %v2701 = vmul.f32 %v2669, %v557
        %v2702 = vmul.f32 %v2670, %v556
        %v2703 = vmul.f32 %v2671, %v557
        %v2704 = vmul.f32 %v2672, %v556
        %v2705 = vmul.f32 %v2673, %v557
        %v2706 = vmul.f32 %v2674, %v556
        %v2707 = vmul.f32 %v2675, %v557
        %v2708 = vmul.f32 %v2676, %v556
        %v2709 = vmul.f32 %v2677, %v557
        %v2710 = vadd.f32 %v2678, %v558
        %v2711 = vadd.f32 %v2679, %v559
        %v2712 = vadd.f32 %v2680, %v558
        %v2713 = vadd.f32 %v2681, %v559
        %v2714 = vadd.f32 %v2682, %v558
        %v2715 = vadd.f32 %v2683, %v559
        %v2716 = vadd.f32 %v2684, %v558
        %v2717 = vadd.f32 %v2685, %v559
        %v2718 = vadd.f32 %v2686, %v558
        %v2719 = vadd.f32 %v2687, %v559
        %v2720 = vadd.f32 %v2688, %v558
        %v2721 = vadd.f32 %v2689, %v559
        %v2722 = vadd.f32 %v2690, %v558
        %v2723 = vadd.f32 %v2691, %v559
        %v2724 = vadd.f32 %v2692, %v558
        %v2725 = vadd.f32 %v2693, %v559
        %v2726 = vadd.f32 %v2694, %v558
        %v2727 = vadd.f32 %v2695, %v559
        %v2728 = vadd.f32 %v2696, %v558
        %v2729 = vadd.f32 %v2697, %v559
        %v2730 = vadd.f32 %v2698, %v558
        %v2731 = vadd.f32 %v2699, %v559
        %v2732 = vadd.f32 %v2700, %v558
        %v2733 = vadd.f32 %v2701, %v559
        %v2734 = vadd.f32 %v2702, %v558
        %v2735 = vadd.f32 %v2703, %v559
        %v2736 = vadd.f32 %v2704, %v558
        %v2737 = vadd.f32 %v2705, %v559
        %v2738 = vadd.f32 %v2706, %v558
        %v2739 = vadd.f32 %v2707, %v559
        %v2740 = vadd.f32 %v2708, %v558
        %v2741 = vadd.f32 %v2709, %v559
        %v2742 = vld [vmem:[#allocation7] sm:$0xff]
        %v2743 = vld [vmem:[#allocation7 + $0x8] sm:$0xff]
        %v2744 = vld [vmem:[#allocation7 + $0x10] sm:$0xff]
        %v2745 = vld [vmem:[#allocation7 + $0x18] sm:$0xff]
        %v2746 = vld [vmem:[#allocation7 + $0x20] sm:$0xff]
        %v2747 = vld [vmem:[#allocation7 + $0x28] sm:$0xff]
        %v2748 = vld [vmem:[#allocation7 + $0x30] sm:$0xff]
        %v2749 = vld [vmem:[#allocation7 + $0x38] sm:$0xff]
        %v2750 = vld [vmem:[#allocation7 + $0x40] sm:$0xff]
        %v2751 = vld [vmem:[#allocation7 + $0x48] sm:$0xff]
        %v2752 = vld [vmem:[#allocation7 + $0x50] sm:$0xff]
        %v2753 = vld [vmem:[#allocation7 + $0x58] sm:$0xff]
        %v2754 = vld [vmem:[#allocation7 + $0x60] sm:$0xff]
        %v2755 = vld [vmem:[#allocation7 + $0x68] sm:$0xff]
        %v2756 = vld [vmem:[#allocation7 + $0x70] sm:$0xff]
        %v2757 = vld [vmem:[#allocation7 + $0x78] sm:$0xff]
        %v2758 = vld [vmem:[#allocation7 + $0x80] sm:$0xff]
        %v2759 = vld [vmem:[#allocation7 + $0x88] sm:$0xff]
        %v2760 = vld [vmem:[#allocation7 + $0x90] sm:$0xff]
        %v2761 = vld [vmem:[#allocation7 + $0x98] sm:$0xff]
        %v2762 = vld [vmem:[#allocation7 + $0xa0] sm:$0xff]
        %v2763 = vld [vmem:[#allocation7 + $0xa8] sm:$0xff]
        %v2764 = vld [vmem:[#allocation7 + $0xb0] sm:$0xff]
        %v2765 = vld [vmem:[#allocation7 + $0xb8] sm:$0xff]
        %v2766 = vld [vmem:[#allocation7 + $0xc0] sm:$0xff]
        %v2767 = vld [vmem:[#allocation7 + $0xc8] sm:$0xff]
        %v2768 = vld [vmem:[#allocation7 + $0xd0] sm:$0xff]
        %v2769 = vld [vmem:[#allocation7 + $0xd8] sm:$0xff]
        %v2770 = vld [vmem:[#allocation7 + $0xe0] sm:$0xff]
        %v2771 = vld [vmem:[#allocation7 + $0xe8] sm:$0xff]
        %v2772 = vld [vmem:[#allocation7 + $0xf0] sm:$0xff]
        %v2773 = vld [vmem:[#allocation7 + $0xf8] sm:$0xff]
        %v2774 = vld [vmem:[#allocation7 + $0x100] sm:$0xff]
        %v2775 = vld [vmem:[#allocation7 + $0x108] sm:$0xff]
        %v2776 = vld [vmem:[#allocation7 + $0x110] sm:$0xff]
        %v2777 = vld [vmem:[#allocation7 + $0x118] sm:$0xff]
        %v2778 = vld [vmem:[#allocation7 + $0x120] sm:$0xff]
        %v2779 = vld [vmem:[#allocation7 + $0x128] sm:$0xff]
        %v2780 = vld [vmem:[#allocation7 + $0x130] sm:$0xff]
        %v2781 = vld [vmem:[#allocation7 + $0x138] sm:$0xff]
        %v2782 = vld [vmem:[#allocation7 + $0x140] sm:$0xff]
        %v2783 = vld [vmem:[#allocation7 + $0x148] sm:$0xff]
        %v2784 = vld [vmem:[#allocation7 + $0x150] sm:$0xff]
        %v2785 = vld [vmem:[#allocation7 + $0x158] sm:$0xff]
        %v2786 = vld [vmem:[#allocation7 + $0x160] sm:$0xff]
        %v2787 = vld [vmem:[#allocation7 + $0x168] sm:$0xff]
        %v2788 = vld [vmem:[#allocation7 + $0x170] sm:$0xff]
        %v2789 = vld [vmem:[#allocation7 + $0x178] sm:$0xff]
        %v2790 = vld [vmem:[#allocation7 + $0x180] sm:$0xff]
        %v2791 = vld [vmem:[#allocation7 + $0x188] sm:$0xff]
        %v2792 = vld [vmem:[#allocation7 + $0x190] sm:$0xff]
        %v2793 = vld [vmem:[#allocation7 + $0x198] sm:$0xff]
        %v2794 = vld [vmem:[#allocation7 + $0x1a0] sm:$0xff]
        %v2795 = vld [vmem:[#allocation7 + $0x1a8] sm:$0xff]
        %v2796 = vld [vmem:[#allocation7 + $0x1b0] sm:$0xff]
        %v2797 = vld [vmem:[#allocation7 + $0x1b8] sm:$0xff]
        %v2798 = vld [vmem:[#allocation7 + $0x1c0] sm:$0xff]
        %v2799 = vld [vmem:[#allocation7 + $0x1c8] sm:$0xff]
        %v2800 = vld [vmem:[#allocation7 + $0x1d0] sm:$0xff]
        %v2801 = vld [vmem:[#allocation7 + $0x1d8] sm:$0xff]
        %v2802 = vld [vmem:[#allocation7 + $0x1e0] sm:$0xff]
        %v2803 = vld [vmem:[#allocation7 + $0x1e8] sm:$0xff]
        %v2804 = vld [vmem:[#allocation7 + $0x1f0] sm:$0xff]
        %v2805 = vld [vmem:[#allocation7 + $0x1f8] sm:$0xff]
        %v2806 = vld [vmem:[%s3] sm:$0x3]
        %v2808 = vlaneseq
        %v2809 = vshrl.u32 %v2808, 7
        %v2810 = vsub.s32 0, %v2809
        %v2811 = vrot.slane %v2806, %v2810
        %v2812 = vlaneseq
        %v2813 = vshrl.u32 %v2812, 7
        %v2814 = vsub.s32 1, %v2813
        %v2815 = vrot.slane %v2806, %v2814
        %2818 = vmatprep.subr.mxu0 %v2743
        %2819 = vmatpush1.msra.mxu0 %v2742
        %2820 = vmatprep.subr.mxu0 %v2745
        %2821 = vmatpush1.msra.mxu0 %v2744
        %2822 = vmatprep.subr.mxu0 %v2747
        %2823 = vmatpush1.msra.mxu0 %v2746
        %2824 = vmatprep.subr.mxu0 %v2749
        %2825 = vmatpush1.msra.mxu0 %v2748
        %2826 = vmatprep.subr.mxu0 %v2751
        %2827 = vmatpush1.msra.mxu0 %v2750
        %2828 = vmatprep.subr.mxu0 %v2753
        %2829 = vmatpush1.msra.mxu0 %v2752
        %2830 = vmatprep.subr.mxu0 %v2755
        %2831 = vmatpush1.msra.mxu0 %v2754
        %2832 = vmatprep.subr.mxu0 %v2757
        %2833 = vmatpush1.msra.mxu0 %v2756
        %2834 = vmatprep.subr.mxu0 %v2759
        %2835 = vmatpush1.msra.mxu0 %v2758
        %2836 = vmatprep.subr.mxu0 %v2761
        %2837 = vmatpush1.msra.mxu0 %v2760
        %2838 = vmatprep.subr.mxu0 %v2763
        %2839 = vmatpush1.msra.mxu0 %v2762
        %2840 = vmatprep.subr.mxu0 %v2765
        %2841 = vmatpush1.msra.mxu0 %v2764
        %2842 = vmatprep.subr.mxu0 %v2767
        %2843 = vmatpush1.msra.mxu0 %v2766
        %2844 = vmatprep.subr.mxu0 %v2769
        %2845 = vmatpush1.msra.mxu0 %v2768
        %2846 = vmatprep.subr.mxu0 %v2771
        %2847 = vmatpush1.msra.mxu0 %v2770
        %2848 = vmatprep.subr.mxu0 %v2773
        %2849 = vmatpush1.msra.mxu0 %v2772
        %2850 = vmatprep.subr.mxu0 %v2775
        %2851 = vmatpush1.msra.mxu0 %v2774
        %2852 = vmatprep.subr.mxu0 %v2777
        %2853 = vmatpush1.msra.mxu0 %v2776
        %2854 = vmatprep.subr.mxu0 %v2779
        %2855 = vmatpush1.msra.mxu0 %v2778
        %2856 = vmatprep.subr.mxu0 %v2781
        %2857 = vmatpush1.msra.mxu0 %v2780
        %2858 = vmatprep.subr.mxu0 %v2783
        %2859 = vmatpush1.msra.mxu0 %v2782
        %2860 = vmatprep.subr.mxu0 %v2785
        %2861 = vmatpush1.msra.mxu0 %v2784
        %2862 = vmatprep.subr.mxu0 %v2787
        %2863 = vmatpush1.msra.mxu0 %v2786
        %2864 = vmatprep.subr.mxu0 %v2789
        %2865 = vmatpush1.msra.mxu0 %v2788
        %2866 = vmatprep.subr.mxu0 %v2791
        %2867 = vmatpush1.msra.mxu0 %v2790
        %2868 = vmatprep.subr.mxu0 %v2793
        %2869 = vmatpush1.msra.mxu0 %v2792
        %2870 = vmatprep.subr.mxu0 %v2795
        %2871 = vmatpush1.msra.mxu0 %v2794
        %2872 = vmatprep.subr.mxu0 %v2797
        %2873 = vmatpush1.msra.mxu0 %v2796
        %2874 = vmatprep.subr.mxu0 %v2799
        %2875 = vmatpush1.msra.mxu0 %v2798
        %2876 = vmatprep.subr.mxu0 %v2801
        %2877 = vmatpush1.msra.mxu0 %v2800
        %2878 = vmatprep.subr.mxu0 %v2803
        %2879 = vmatpush1.msra.mxu0 %v2802
        %2880 = vmatprep.subr.mxu0 %v2805
        %2881 = vmatpush1.msra.mxu0 %v2804
        %2882 = vmatprep.mubr.f32.mxu0 %v2711
        %2883 = vmatmul.mubr.f32.gmra.mrb[0].mxu0 %v2710
        %v2884 = vpop.f32.mrb[0].mxu0
        %v2885 = vadd.f32 %v2811, %v2884
        %v2886 = vpop.f32.mrb[0].mxu0
        %v2887 = vadd.f32 %v2815, %v2886
        %2888 = vmatprep.mubr.f32.mxu0 %v2713
        %2889 = vmatmul.mubr.f32.gmra.mrb[0].mxu0 %v2712
        %v2890 = vpop.f32.mrb[0].mxu0
        %v2891 = vadd.f32 %v2811, %v2890
        %v2892 = vpop.f32.mrb[0].mxu0
        %v2893 = vadd.f32 %v2815, %v2892
        %2894 = vmatprep.mubr.f32.mxu0 %v2715
        %2895 = vmatmul.mubr.f32.gmra.mrb[0].mxu0 %v2714
        %v2896 = vpop.f32.mrb[0].mxu0
        %v2897 = vadd.f32 %v2811, %v2896
        %v2898 = vpop.f32.mrb[0].mxu0
        %v2899 = vadd.f32 %v2815, %v2898
        %2900 = vmatprep.mubr.f32.mxu0 %v2717
        %2901 = vmatmul.mubr.f32.gmra.mrb[0].mxu0 %v2716
        %v2902 = vpop.f32.mrb[0].mxu0
        %v2903 = vadd.f32 %v2811, %v2902
        %v2904 = vpop.f32.mrb[0].mxu0
        %v2905 = vadd.f32 %v2815, %v2904
        %2906 = vmatprep.mubr.f32.mxu0 %v2719
        %2907 = vmatmul.mubr.f32.gmra.mrb[0].mxu0 %v2718
        %v2908 = vpop.f32.mrb[0].mxu0
        %v2909 = vadd.f32 %v2811, %v2908
        %v2910 = vpop.f32.mrb[0].mxu0
        %v2911 = vadd.f32 %v2815, %v2910
        %2912 = vmatprep.mubr.f32.mxu0 %v2721
        %2913 = vmatmul.mubr.f32.gmra.mrb[0].mxu0 %v2720
        %v2914 = vpop.f32.mrb[0].mxu0
        %v2915 = vadd.f32 %v2811, %v2914
        %v2916 = vpop.f32.mrb[0].mxu0
        %v2917 = vadd.f32 %v2815, %v2916
        %2918 = vmatprep.mubr.f32.mxu0 %v2723
        %2919 = vmatmul.mubr.f32.gmra.mrb[0].mxu0 %v2722
        %v2920 = vpop.f32.mrb[0].mxu0
        %v2921 = vadd.f32 %v2811, %v2920
        %v2922 = vpop.f32.mrb[0].mxu0
        %v2923 = vadd.f32 %v2815, %v2922
        %2924 = vmatprep.mubr.f32.mxu0 %v2725
        %2925 = vmatmul.mubr.f32.gmra.mrb[0].mxu0 %v2724
        %v2926 = vpop.f32.mrb[0].mxu0
        %v2927 = vadd.f32 %v2811, %v2926
        %v2928 = vpop.f32.mrb[0].mxu0
        %v2929 = vadd.f32 %v2815, %v2928
        %2930 = vmatprep.mubr.f32.mxu0 %v2727
        %2931 = vmatmul.mubr.f32.gmra.mrb[0].mxu0 %v2726
        %v2932 = vpop.f32.mrb[0].mxu0
        %v2933 = vadd.f32 %v2811, %v2932
        %v2934 = vpop.f32.mrb[0].mxu0
        %v2935 = vadd.f32 %v2815, %v2934
        %2936 = vmatprep.mubr.f32.mxu0 %v2729
        %2937 = vmatmul.mubr.f32.gmra.mrb[0].mxu0 %v2728
        %v2938 = vpop.f32.mrb[0].mxu0
        %v2939 = vadd.f32 %v2811, %v2938
        %v2940 = vpop.f32.mrb[0].mxu0
        %v2941 = vadd.f32 %v2815, %v2940
        %2942 = vmatprep.mubr.f32.mxu0 %v2731
        %2943 = vmatmul.mubr.f32.gmra.mrb[0].mxu0 %v2730
        %v2944 = vpop.f32.mrb[0].mxu0
        %v2945 = vadd.f32 %v2811, %v2944
        %v2946 = vpop.f32.mrb[0].mxu0
        %v2947 = vadd.f32 %v2815, %v2946
        %2948 = vmatprep.mubr.f32.mxu0 %v2733
        %2949 = vmatmul.mubr.f32.gmra.mrb[0].mxu0 %v2732
        %v2950 = vpop.f32.mrb[0].mxu0
        %v2951 = vadd.f32 %v2811, %v2950
        %v2952 = vpop.f32.mrb[0].mxu0
        %v2953 = vadd.f32 %v2815, %v2952
        %2954 = vmatprep.mubr.f32.mxu0 %v2735
        %2955 = vmatmul.mubr.f32.gmra.mrb[0].mxu0 %v2734
        %v2956 = vpop.f32.mrb[0].mxu0
        %v2957 = vadd.f32 %v2811, %v2956
        %v2958 = vpop.f32.mrb[0].mxu0
        %v2959 = vadd.f32 %v2815, %v2958
        %2960 = vmatprep.mubr.f32.mxu0 %v2737
        %2961 = vmatmul.mubr.f32.gmra.mrb[0].mxu0 %v2736
        %v2962 = vpop.f32.mrb[0].mxu0
        %v2963 = vadd.f32 %v2811, %v2962
        %v2964 = vpop.f32.mrb[0].mxu0
        %v2965 = vadd.f32 %v2815, %v2964
        %2966 = vmatprep.mubr.f32.mxu0 %v2739
        %2967 = vmatmul.mubr.f32.gmra.mrb[0].mxu0 %v2738
        %v2968 = vpop.f32.mrb[0].mxu0
        %v2969 = vadd.f32 %v2811, %v2968
        %v2970 = vpop.f32.mrb[0].mxu0
        %v2971 = vadd.f32 %v2815, %v2970
        %2972 = vmatprep.mubr.f32.mxu0 %v2741
        %2973 = vmatmul.mubr.f32.gmra.mrb[0].mxu0 %v2740
        %v2974 = vpop.f32.mrb[0].mxu0
        %v2975 = vadd.f32 %v2811, %v2974
        %v2976 = vpop.f32.mrb[0].mxu0
        %v2977 = vadd.f32 %v2815, %v2976
        %2978 = vdwg.mxu0
        %v2979 = vmax.f32 %v2885, 0.0
        %v2980 = vmax.f32 %v2891, 0.0
        %v2981 = vmax.f32 %v2897, 0.0
        %v2982 = vmax.f32 %v2903, 0.0
        %v2983 = vmax.f32 %v2909, 0.0
        %v2984 = vmax.f32 %v2915, 0.0
        %v2985 = vmax.f32 %v2921, 0.0
        %v2986 = vmax.f32 %v2927, 0.0
        %v2987 = vmax.f32 %v2933, 0.0
        %v2988 = vmax.f32 %v2939, 0.0
        %v2989 = vmax.f32 %v2945, 0.0
        %v2990 = vmax.f32 %v2951, 0.0
        %v2991 = vmax.f32 %v2957, 0.0
        %v2992 = vmax.f32 %v2963, 0.0
        %v2993 = vmax.f32 %v2969, 0.0
        %v2994 = vmax.f32 %v2975, 0.0
        %v2995 = vld [vmem:[#allocation8] sm:$0xff]
        %v2996 = vld [vmem:[#allocation8 + $0x8] sm:$0xff]
        %v2997 = vld [vmem:[#allocation8 + $0x10] sm:$0xff]
        %v2998 = vld [vmem:[#allocation8 + $0x18] sm:$0xff]
        %v2999 = vld [vmem:[#allocation8 + $0x20] sm:$0xff]
        %v3000 = vld [vmem:[#allocation8 + $0x28] sm:$0xff]
        %v3001 = vld [vmem:[#allocation8 + $0x30] sm:$0xff]
        %v3002 = vld [vmem:[#allocation8 + $0x38] sm:$0xff]
        %v3003 = vld [vmem:[#allocation8 + $0x40] sm:$0xff]
        %v3004 = vld [vmem:[#allocation8 + $0x48] sm:$0xff]
        %v3005 = vld [vmem:[#allocation8 + $0x50] sm:$0xff]
        %v3006 = vld [vmem:[#allocation8 + $0x58] sm:$0xff]
        %v3007 = vld [vmem:[#allocation8 + $0x60] sm:$0xff]
        %v3008 = vld [vmem:[#allocation8 + $0x68] sm:$0xff]
        %v3009 = vld [vmem:[#allocation8 + $0x70] sm:$0xff]
        %v3010 = vld [vmem:[#allocation8 + $0x78] sm:$0xff]
        %3011 = vmatprep.subr.mxu0 0.0
        %3012 = vmatpush1.msra.mxu0 %v2995
        %3013 = vmatprep.subr.mxu0 0.0
        %3014 = vmatpush1.msra.mxu0 %v2996
        %3015 = vmatprep.subr.mxu0 0.0
        %3016 = vmatpush1.msra.mxu0 %v2997
        %3017 = vmatprep.subr.mxu0 0.0
        %3018 = vmatpush1.msra.mxu0 %v2998
        %3019 = vmatprep.subr.mxu0 0.0
        %3020 = vmatpush1.msra.mxu0 %v2999
        %3021 = vmatprep.subr.mxu0 0.0
        %3022 = vmatpush1.msra.mxu0 %v3000
        %3023 = vmatprep.subr.mxu0 0.0
        %3024 = vmatpush1.msra.mxu0 %v3001
        %3025 = vmatprep.subr.mxu0 0.0
        %3026 = vmatpush1.msra.mxu0 %v3002
        %3027 = vmatprep.subr.mxu0 0.0
        %3028 = vmatpush1.msra.mxu0 %v3003
        %3029 = vmatprep.subr.mxu0 0.0
        %3030 = vmatpush1.msra.mxu0 %v3004
        %3031 = vmatprep.subr.mxu0 0.0
        %3032 = vmatpush1.msra.mxu0 %v3005
        %3033 = vmatprep.subr.mxu0 0.0
        %3034 = vmatpush1.msra.mxu0 %v3006
        %3035 = vmatprep.subr.mxu0 0.0
        %3036 = vmatpush1.msra.mxu0 %v3007
        %3037 = vmatprep.subr.mxu0 0.0
        %3038 = vmatpush1.msra.mxu0 %v3008
        %3039 = vmatprep.subr.mxu0 0.0
        %3040 = vmatpush1.msra.mxu0 %v3009
        %3041 = vmatprep.subr.mxu0 0.0
        %3042 = vmatpush1.msra.mxu0 %v3010
        %3043 = vmatprep.subr.mxu0 0.0
        %3044 = vmatpush1.msra.mxu0 0.0
        %3045 = vmatprep.subr.mxu0 0.0
        %3046 = vmatpush1.msra.mxu0 0.0
        %3047 = vmatprep.subr.mxu0 0.0
        %3048 = vmatpush1.msra.mxu0 0.0
        %3049 = vmatprep.subr.mxu0 0.0
        %3050 = vmatpush1.msra.mxu0 0.0
        %3051 = vmatprep.subr.mxu0 0.0
        %3052 = vmatpush1.msra.mxu0 0.0
        %3053 = vmatprep.subr.mxu0 0.0
        %3054 = vmatpush1.msra.mxu0 0.0
        %3055 = vmatprep.subr.mxu0 0.0
        %3056 = vmatpush1.msra.mxu0 0.0
        %3057 = vmatprep.subr.mxu0 0.0
        %3058 = vmatpush1.msra.mxu0 0.0
        %3059 = vmatprep.subr.mxu0 0.0
        %3060 = vmatpush1.msra.mxu0 0.0
        %3061 = vmatprep.subr.mxu0 0.0
        %3062 = vmatpush1.msra.mxu0 0.0
        %3063 = vmatprep.subr.mxu0 0.0
        %3064 = vmatpush1.msra.mxu0 0.0
        %3065 = vmatprep.subr.mxu0 0.0
        %3066 = vmatpush1.msra.mxu0 0.0
        %3067 = vmatprep.subr.mxu0 0.0
        %3068 = vmatpush1.msra.mxu0 0.0
        %3069 = vmatprep.subr.mxu0 0.0
        %3070 = vmatpush1.msra.mxu0 0.0
        %3071 = vmatprep.subr.mxu0 0.0
        %3072 = vmatpush1.msra.mxu0 0.0
        %3073 = vmatprep.subr.mxu0 0.0
        %3074 = vmatpush1.msra.mxu0 0.0
        %3075 = vmatprep.mubr.f32.mxu0 0.0
        %3076 = vmatmul.mubr.f32.gmra.mrb[0].mxu0 %v2979
        %v3077 = vpop.f32.mrb[0].mxu0
        %v3078 = vadd.f32 0.0, %v3077
        %v3079 = vpop.f32.mrb[0].mxu0
        %3080 = vmatprep.mubr.f32.mxu0 0.0
        %3081 = vmatmul.mubr.f32.gmra.mrb[0].mxu0 %v2980
        %v3082 = vpop.f32.mrb[0].mxu0
        %v3083 = vadd.f32 0.0, %v3082
        %v3084 = vpop.f32.mrb[0].mxu0
        %3085 = vmatprep.mubr.f32.mxu0 0.0
        %3086 = vmatmul.mubr.f32.gmra.mrb[0].mxu0 %v2981
        %v3087 = vpop.f32.mrb[0].mxu0
        %v3088 = vadd.f32 0.0, %v3087
        %v3089 = vpop.f32.mrb[0].mxu0
        %3090 = vmatprep.mubr.f32.mxu0 0.0
        %3091 = vmatmul.mubr.f32.gmra.mrb[0].mxu0 %v2982
        %v3092 = vpop.f32.mrb[0].mxu0
        %v3093 = vadd.f32 0.0, %v3092
        %v3094 = vpop.f32.mrb[0].mxu0
        %3095 = vmatprep.mubr.f32.mxu0 0.0
        %3096 = vmatmul.mubr.f32.gmra.mrb[0].mxu0 %v2983
        %v3097 = vpop.f32.mrb[0].mxu0
        %v3098 = vadd.f32 0.0, %v3097
        %v3099 = vpop.f32.mrb[0].mxu0
        %3100 = vmatprep.mubr.f32.mxu0 0.0
        %3101 = vmatmul.mubr.f32.gmra.mrb[0].mxu0 %v2984
        %v3102 = vpop.f32.mrb[0].mxu0
        %v3103 = vadd.f32 0.0, %v3102
        %v3104 = vpop.f32.mrb[0].mxu0
        %3105 = vmatprep.mubr.f32.mxu0 0.0
        %3106 = vmatmul.mubr.f32.gmra.mrb[0].mxu0 %v2985
        %v3107 = vpop.f32.mrb[0].mxu0
        %v3108 = vadd.f32 0.0, %v3107
        %v3109 = vpop.f32.mrb[0].mxu0
        %3110 = vmatprep.mubr.f32.mxu0 0.0
        %3111 = vmatmul.mubr.f32.gmra.mrb[0].mxu0 %v2986
        %v3112 = vpop.f32.mrb[0].mxu0
        %v3113 = vadd.f32 0.0, %v3112
        %v3114 = vpop.f32.mrb[0].mxu0
        %3115 = vmatprep.mubr.f32.mxu0 0.0
        %3116 = vmatmul.mubr.f32.gmra.mrb[0].mxu0 %v2987
        %v3117 = vpop.f32.mrb[0].mxu0
        %v3118 = vadd.f32 0.0, %v3117
        %v3119 = vpop.f32.mrb[0].mxu0
        %3120 = vmatprep.mubr.f32.mxu0 0.0
        %3121 = vmatmul.mubr.f32.gmra.mrb[0].mxu0 %v2988
        %v3122 = vpop.f32.mrb[0].mxu0
        %v3123 = vadd.f32 0.0, %v3122
        %v3124 = vpop.f32.mrb[0].mxu0
        %3125 = vmatprep.mubr.f32.mxu0 0.0
        %3126 = vmatmul.mubr.f32.gmra.mrb[0].mxu0 %v2989
        %v3127 = vpop.f32.mrb[0].mxu0
        %v3128 = vadd.f32 0.0, %v3127
        %v3129 = vpop.f32.mrb[0].mxu0
        %3130 = vmatprep.mubr.f32.mxu0 0.0
        %3131 = vmatmul.mubr.f32.gmra.mrb[0].mxu0 %v2990
        %v3132 = vpop.f32.mrb[0].mxu0
        %v3133 = vadd.f32 0.0, %v3132
        %v3134 = vpop.f32.mrb[0].mxu0
        %3135 = vmatprep.mubr.f32.mxu0 0.0
        %3136 = vmatmul.mubr.f32.gmra.mrb[0].mxu0 %v2991
        %v3137 = vpop.f32.mrb[0].mxu0
        %v3138 = vadd.f32 0.0, %v3137
        %v3139 = vpop.f32.mrb[0].mxu0
        %3140 = vmatprep.mubr.f32.mxu0 0.0
        %3141 = vmatmul.mubr.f32.gmra.mrb[0].mxu0 %v2992
        %v3142 = vpop.f32.mrb[0].mxu0
        %v3143 = vadd.f32 0.0, %v3142
        %v3144 = vpop.f32.mrb[0].mxu0
        %3145 = vmatprep.mubr.f32.mxu0 0.0
        %3146 = vmatmul.mubr.f32.gmra.mrb[0].mxu0 %v2993
        %v3147 = vpop.f32.mrb[0].mxu0
        %v3148 = vadd.f32 0.0, %v3147
        %v3149 = vpop.f32.mrb[0].mxu0
        %3150 = vmatprep.mubr.f32.mxu0 0.0
        %3151 = vmatmul.mubr.f32.gmra.mrb[0].mxu0 %v2994
        %v3152 = vpop.f32.mrb[0].mxu0
        %v3153 = vadd.f32 0.0, %v3152
        %v3154 = vpop.f32.mrb[0].mxu0
        %3155 = vdwg.mxu0
        %v3156 = vadd.f32 %v2887, %v3078
        %v3157 = vadd.f32 %v2893, %v3083
        %v3158 = vadd.f32 %v2899, %v3088
        %v3159 = vadd.f32 %v2905, %v3093
        %v3160 = vadd.f32 %v2911, %v3098
        %v3161 = vadd.f32 %v2917, %v3103
        %v3162 = vadd.f32 %v2923, %v3108
        %v3163 = vadd.f32 %v2929, %v3113
        %v3164 = vadd.f32 %v2935, %v3118
        %v3165 = vadd.f32 %v2941, %v3123
        %v3166 = vadd.f32 %v2947, %v3128
        %v3167 = vadd.f32 %v2953, %v3133
        %v3168 = vadd.f32 %v2959, %v3138
        %v3169 = vadd.f32 %v2965, %v3143
        %v3170 = vadd.f32 %v2971, %v3148
        %v3171 = vadd.f32 %v2977, %v3153
        %v3172 = vadd.f32 %v3156, %v562
        %v3173 = vadd.f32 %v3157, %v562
        %v3174 = vadd.f32 %v3158, %v562
        %v3175 = vadd.f32 %v3159, %v562
        %v3176 = vadd.f32 %v3160, %v562
        %v3177 = vadd.f32 %v3161, %v562
        %v3178 = vadd.f32 %v3162, %v562
        %v3179 = vadd.f32 %v3163, %v562
        %v3180 = vadd.f32 %v3164, %v562
        %v3181 = vadd.f32 %v3165, %v562
        %v3182 = vadd.f32 %v3166, %v562
        %v3183 = vadd.f32 %v3167, %v562
        %v3184 = vadd.f32 %v3168, %v562
        %v3185 = vadd.f32 %v3169, %v562
        %v3186 = vadd.f32 %v3170, %v562
        %v3187 = vadd.f32 %v3171, %v562
        %3188 = vadd.xlane.f32.xlu0 %v3172
        %v3189 = vpop.xlane.xlu0 %3188
        %3190 = vadd.xlane.f32.xlu0 %v3173
        %v3191 = vpop.xlane.xlu0 %3190
        %3192 = vadd.xlane.f32.xlu0 %v3174
        %v3193 = vpop.xlane.xlu0 %3192
        %3194 = vadd.xlane.f32.xlu0 %v3175
        %v3195 = vpop.xlane.xlu0 %3194
        %3196 = vadd.xlane.f32.xlu0 %v3176
        %v3197 = vpop.xlane.xlu0 %3196
        %3198 = vadd.xlane.f32.xlu0 %v3177
        %v3199 = vpop.xlane.xlu0 %3198
        %3200 = vadd.xlane.f32.xlu0 %v3178
        %v3201 = vpop.xlane.xlu0 %3200
        %3202 = vadd.xlane.f32.xlu0 %v3179
        %v3203 = vpop.xlane.xlu0 %3202
        %3204 = vadd.xlane.f32.xlu0 %v3180
        %v3205 = vpop.xlane.xlu0 %3204
        %3206 = vadd.xlane.f32.xlu0 %v3181
        %v3207 = vpop.xlane.xlu0 %3206
        %3208 = vadd.xlane.f32.xlu0 %v3182
        %v3209 = vpop.xlane.xlu0 %3208
        %3210 = vadd.xlane.f32.xlu0 %v3183
        %v3211 = vpop.xlane.xlu0 %3210
        %3212 = vadd.xlane.f32.xlu0 %v3184
        %v3213 = vpop.xlane.xlu0 %3212
        %3214 = vadd.xlane.f32.xlu0 %v3185
        %v3215 = vpop.xlane.xlu0 %3214
        %3216 = vadd.xlane.f32.xlu0 %v3186
        %v3217 = vpop.xlane.xlu0 %3216
        %3218 = vadd.xlane.f32.xlu0 %v3187
        %v3219 = vpop.xlane.xlu0 %3218
        %v3220 = vrot.slane %v3189, 4
        %v3221 = vadd.f32 %v3189, %v3220
        %v3222 = vrot.slane %v3221, 2
        %v3223 = vadd.f32 %v3221, %v3222
        %v3224 = vrot.slane %v3223, 1
        %v3225 = vadd.f32 %v3223, %v3224
        %v3226 = vrot.slane %v3191, 4
        %v3227 = vadd.f32 %v3191, %v3226
        %v3228 = vrot.slane %v3227, 2
        %v3229 = vadd.f32 %v3227, %v3228
        %v3230 = vrot.slane %v3229, 1
        %v3231 = vadd.f32 %v3229, %v3230
        %v3232 = vrot.slane %v3193, 4
        %v3233 = vadd.f32 %v3193, %v3232
        %v3234 = vrot.slane %v3233, 2
        %v3235 = vadd.f32 %v3233, %v3234
        %v3236 = vrot.slane %v3235, 1
        %v3237 = vadd.f32 %v3235, %v3236
        %v3238 = vrot.slane %v3195, 4
        %v3239 = vadd.f32 %v3195, %v3238
        %v3240 = vrot.slane %v3239, 2
        %v3241 = vadd.f32 %v3239, %v3240
        %v3242 = vrot.slane %v3241, 1
        %v3243 = vadd.f32 %v3241, %v3242
        %v3244 = vrot.slane %v3197, 4
        %v3245 = vadd.f32 %v3197, %v3244
        %v3246 = vrot.slane %v3245, 2
        %v3247 = vadd.f32 %v3245, %v3246
        %v3248 = vrot.slane %v3247, 1
        %v3249 = vadd.f32 %v3247, %v3248
        %v3250 = vrot.slane %v3199, 4
        %v3251 = vadd.f32 %v3199, %v3250
        %v3252 = vrot.slane %v3251, 2
        %v3253 = vadd.f32 %v3251, %v3252
        %v3254 = vrot.slane %v3253, 1
        %v3255 = vadd.f32 %v3253, %v3254
        %v3256 = vrot.slane %v3201, 4
        %v3257 = vadd.f32 %v3201, %v3256
        %v3258 = vrot.slane %v3257, 2
        %v3259 = vadd.f32 %v3257, %v3258
        %v3260 = vrot.slane %v3259, 1
        %v3261 = vadd.f32 %v3259, %v3260
        %v3262 = vrot.slane %v3203, 4
        %v3263 = vadd.f32 %v3203, %v3262
        %v3264 = vrot.slane %v3263, 2
        %v3265 = vadd.f32 %v3263, %v3264
        %v3266 = vrot.slane %v3265, 1
        %v3267 = vadd.f32 %v3265, %v3266
        %v3268 = vrot.slane %v3205, 4
        %v3269 = vadd.f32 %v3205, %v3268
        %v3270 = vrot.slane %v3269, 2
        %v3271 = vadd.f32 %v3269, %v3270
        %v3272 = vrot.slane %v3271, 1
        %v3273 = vadd.f32 %v3271, %v3272
        %v3274 = vrot.slane %v3207, 4
        %v3275 = vadd.f32 %v3207, %v3274
        %v3276 = vrot.slane %v3275, 2
        %v3277 = vadd.f32 %v3275, %v3276
        %v3278 = vrot.slane %v3277, 1
        %v3279 = vadd.f32 %v3277, %v3278
        %v3280 = vrot.slane %v3209, 4
        %v3281 = vadd.f32 %v3209, %v3280
        %v3282 = vrot.slane %v3281, 2
        %v3283 = vadd.f32 %v3281, %v3282
        %v3284 = vrot.slane %v3283, 1
        %v3285 = vadd.f32 %v3283, %v3284
        %v3286 = vrot.slane %v3211, 4
        %v3287 = vadd.f32 %v3211, %v3286
        %v3288 = vrot.slane %v3287, 2
        %v3289 = vadd.f32 %v3287, %v3288
        %v3290 = vrot.slane %v3289, 1
        %v3291 = vadd.f32 %v3289, %v3290
        %v3292 = vrot.slane %v3213, 4
        %v3293 = vadd.f32 %v3213, %v3292
        %v3294 = vrot.slane %v3293, 2
        %v3295 = vadd.f32 %v3293, %v3294
        %v3296 = vrot.slane %v3295, 1
        %v3297 = vadd.f32 %v3295, %v3296
        %v3298 = vrot.slane %v3215, 4
        %v3299 = vadd.f32 %v3215, %v3298
        %v3300 = vrot.slane %v3299, 2
        %v3301 = vadd.f32 %v3299, %v3300
        %v3302 = vrot.slane %v3301, 1
        %v3303 = vadd.f32 %v3301, %v3302
        %v3304 = vrot.slane %v3217, 4
        %v3305 = vadd.f32 %v3217, %v3304
        %v3306 = vrot.slane %v3305, 2
        %v3307 = vadd.f32 %v3305, %v3306
        %v3308 = vrot.slane %v3307, 1
        %v3309 = vadd.f32 %v3307, %v3308
        %v3310 = vrot.slane %v3219, 4
        %v3311 = vadd.f32 %v3219, %v3310
        %v3312 = vrot.slane %v3311, 2
        %v3313 = vadd.f32 %v3311, %v3312
        %v3314 = vrot.slane %v3313, 1
        %v3315 = vadd.f32 %v3313, %v3314
        %v3316 = vrcp.pop 1024.0
        %v3317 = vmul.f32 %v3225, %v3316
        %v3318 = vmul.f32 %v3231, %v3316
        %v3319 = vmul.f32 %v3237, %v3316
        %v3320 = vmul.f32 %v3243, %v3316
        %v3321 = vmul.f32 %v3249, %v3316
        %v3322 = vmul.f32 %v3255, %v3316
        %v3323 = vmul.f32 %v3261, %v3316
        %v3324 = vmul.f32 %v3267, %v3316
        %v3325 = vmul.f32 %v3273, %v3316
        %v3326 = vmul.f32 %v3279, %v3316
        %v3327 = vmul.f32 %v3285, %v3316
        %v3328 = vmul.f32 %v3291, %v3316
        %v3329 = vmul.f32 %v3297, %v3316
        %v3330 = vmul.f32 %v3303, %v3316
        %v3331 = vmul.f32 %v3309, %v3316
        %v3332 = vmul.f32 %v3315, %v3316
        %v3333 = vsub.f32 %v3172, %v3317
        %v3334 = vsub.f32 %v3173, %v3318
        %v3335 = vsub.f32 %v3174, %v3319
        %v3336 = vsub.f32 %v3175, %v3320
        %v3337 = vsub.f32 %v3176, %v3321
        %v3338 = vsub.f32 %v3177, %v3322
        %v3339 = vsub.f32 %v3178, %v3323
        %v3340 = vsub.f32 %v3179, %v3324
        %v3341 = vsub.f32 %v3180, %v3325
        %v3342 = vsub.f32 %v3181, %v3326
        %v3343 = vsub.f32 %v3182, %v3327
        %v3344 = vsub.f32 %v3183, %v3328
        %v3345 = vsub.f32 %v3184, %v3329
        %v3346 = vsub.f32 %v3185, %v3330
        %v3347 = vsub.f32 %v3186, %v3331
        %v3348 = vsub.f32 %v3187, %v3332
        %v3349 = vmul.f32 %v3333, %v3333
        %v3350 = vmul.f32 %v3334, %v3334
        %v3351 = vmul.f32 %v3335, %v3335
        %v3352 = vmul.f32 %v3336, %v3336
        %v3353 = vmul.f32 %v3337, %v3337
        %v3354 = vmul.f32 %v3338, %v3338
        %v3355 = vmul.f32 %v3339, %v3339
        %v3356 = vmul.f32 %v3340, %v3340
        %v3357 = vmul.f32 %v3341, %v3341
        %v3358 = vmul.f32 %v3342, %v3342
        %v3359 = vmul.f32 %v3343, %v3343
        %v3360 = vmul.f32 %v3344, %v3344
        %v3361 = vmul.f32 %v3345, %v3345
        %v3362 = vmul.f32 %v3346, %v3346
        %v3363 = vmul.f32 %v3347, %v3347
        %v3364 = vmul.f32 %v3348, %v3348
        %3365 = vadd.xlane.f32.xlu0 %v3349
        %v3366 = vpop.xlane.xlu0 %3365
        %3367 = vadd.xlane.f32.xlu0 %v3350
        %v3368 = vpop.xlane.xlu0 %3367
        %3369 = vadd.xlane.f32.xlu0 %v3351
        %v3370 = vpop.xlane.xlu0 %3369
        %3371 = vadd.xlane.f32.xlu0 %v3352
        %v3372 = vpop.xlane.xlu0 %3371
        %3373 = vadd.xlane.f32.xlu0 %v3353
        %v3374 = vpop.xlane.xlu0 %3373
        %3375 = vadd.xlane.f32.xlu0 %v3354
        %v3376 = vpop.xlane.xlu0 %3375
        %3377 = vadd.xlane.f32.xlu0 %v3355
        %v3378 = vpop.xlane.xlu0 %3377
        %3379 = vadd.xlane.f32.xlu0 %v3356
        %v3380 = vpop.xlane.xlu0 %3379
        %3381 = vadd.xlane.f32.xlu0 %v3357
        %v3382 = vpop.xlane.xlu0 %3381
        %3383 = vadd.xlane.f32.xlu0 %v3358
        %v3384 = vpop.xlane.xlu0 %3383
        %3385 = vadd.xlane.f32.xlu0 %v3359
        %v3386 = vpop.xlane.xlu0 %3385
        %3387 = vadd.xlane.f32.xlu0 %v3360
        %v3388 = vpop.xlane.xlu0 %3387
        %3389 = vadd.xlane.f32.xlu0 %v3361
        %v3390 = vpop.xlane.xlu0 %3389
        %3391 = vadd.xlane.f32.xlu0 %v3362
        %v3392 = vpop.xlane.xlu0 %3391
        %3393 = vadd.xlane.f32.xlu0 %v3363
        %v3394 = vpop.xlane.xlu0 %3393
        %3395 = vadd.xlane.f32.xlu0 %v3364
        %v3396 = vpop.xlane.xlu0 %3395
        %v3397 = vrot.slane %v3366, 4
        %v3398 = vadd.f32 %v3366, %v3397
        %v3399 = vrot.slane %v3398, 2
        %v3400 = vadd.f32 %v3398, %v3399
        %v3401 = vrot.slane %v3400, 1
        %v3402 = vadd.f32 %v3400, %v3401
        %v3403 = vrot.slane %v3368, 4
        %v3404 = vadd.f32 %v3368, %v3403
        %v3405 = vrot.slane %v3404, 2
        %v3406 = vadd.f32 %v3404, %v3405
        %v3407 = vrot.slane %v3406, 1
        %v3408 = vadd.f32 %v3406, %v3407
        %v3409 = vrot.slane %v3370, 4
        %v3410 = vadd.f32 %v3370, %v3409
        %v3411 = vrot.slane %v3410, 2
        %v3412 = vadd.f32 %v3410, %v3411
        %v3413 = vrot.slane %v3412, 1
        %v3414 = vadd.f32 %v3412, %v3413
        %v3415 = vrot.slane %v3372, 4
        %v3416 = vadd.f32 %v3372, %v3415
        %v3417 = vrot.slane %v3416, 2
        %v3418 = vadd.f32 %v3416, %v3417
        %v3419 = vrot.slane %v3418, 1
        %v3420 = vadd.f32 %v3418, %v3419
        %v3421 = vrot.slane %v3374, 4
        %v3422 = vadd.f32 %v3374, %v3421
        %v3423 = vrot.slane %v3422, 2
        %v3424 = vadd.f32 %v3422, %v3423
        %v3425 = vrot.slane %v3424, 1
        %v3426 = vadd.f32 %v3424, %v3425
        %v3427 = vrot.slane %v3376, 4
        %v3428 = vadd.f32 %v3376, %v3427
        %v3429 = vrot.slane %v3428, 2
        %v3430 = vadd.f32 %v3428, %v3429
        %v3431 = vrot.slane %v3430, 1
        %v3432 = vadd.f32 %v3430, %v3431
        %v3433 = vrot.slane %v3378, 4
        %v3434 = vadd.f32 %v3378, %v3433
        %v3435 = vrot.slane %v3434, 2
        %v3436 = vadd.f32 %v3434, %v3435
        %v3437 = vrot.slane %v3436, 1
        %v3438 = vadd.f32 %v3436, %v3437
        %v3439 = vrot.slane %v3380, 4
        %v3440 = vadd.f32 %v3380, %v3439
        %v3441 = vrot.slane %v3440, 2
        %v3442 = vadd.f32 %v3440, %v3441
        %v3443 = vrot.slane %v3442, 1
        %v3444 = vadd.f32 %v3442, %v3443
        %v3445 = vrot.slane %v3382, 4
        %v3446 = vadd.f32 %v3382, %v3445
        %v3447 = vrot.slane %v3446, 2
        %v3448 = vadd.f32 %v3446, %v3447
        %v3449 = vrot.slane %v3448, 1
        %v3450 = vadd.f32 %v3448, %v3449
        %v3451 = vrot.slane %v3384, 4
        %v3452 = vadd.f32 %v3384, %v3451
        %v3453 = vrot.slane %v3452, 2
        %v3454 = vadd.f32 %v3452, %v3453
        %v3455 = vrot.slane %v3454, 1
        %v3456 = vadd.f32 %v3454, %v3455
        %v3457 = vrot.slane %v3386, 4
        %v3458 = vadd.f32 %v3386, %v3457
        %v3459 = vrot.slane %v3458, 2
        %v3460 = vadd.f32 %v3458, %v3459
        %v3461 = vrot.slane %v3460, 1
        %v3462 = vadd.f32 %v3460, %v3461
        %v3463 = vrot.slane %v3388, 4
        %v3464 = vadd.f32 %v3388, %v3463
        %v3465 = vrot.slane %v3464, 2
        %v3466 = vadd.f32 %v3464, %v3465
        %v3467 = vrot.slane %v3466, 1
        %v3468 = vadd.f32 %v3466, %v3467
        %v3469 = vrot.slane %v3390, 4
        %v3470 = vadd.f32 %v3390, %v3469
        %v3471 = vrot.slane %v3470, 2
        %v3472 = vadd.f32 %v3470, %v3471
        %v3473 = vrot.slane %v3472, 1
        %v3474 = vadd.f32 %v3472, %v3473
        %v3475 = vrot.slane %v3392, 4
        %v3476 = vadd.f32 %v3392, %v3475
        %v3477 = vrot.slane %v3476, 2
        %v3478 = vadd.f32 %v3476, %v3477
        %v3479 = vrot.slane %v3478, 1
        %v3480 = vadd.f32 %v3478, %v3479
        %v3481 = vrot.slane %v3394, 4
        %v3482 = vadd.f32 %v3394, %v3481
        %v3483 = vrot.slane %v3482, 2
        %v3484 = vadd.f32 %v3482, %v3483
        %v3485 = vrot.slane %v3484, 1
        %v3486 = vadd.f32 %v3484, %v3485
        %v3487 = vrot.slane %v3396, 4
        %v3488 = vadd.f32 %v3396, %v3487
        %v3489 = vrot.slane %v3488, 2
        %v3490 = vadd.f32 %v3488, %v3489
        %v3491 = vrot.slane %v3490, 1
        %v3492 = vadd.f32 %v3490, %v3491
        %v3493 = vmul.f32 %v3402, %v3316
        %v3494 = vmul.f32 %v3408, %v3316
        %v3495 = vmul.f32 %v3414, %v3316
        %v3496 = vmul.f32 %v3420, %v3316
        %v3497 = vmul.f32 %v3426, %v3316
        %v3498 = vmul.f32 %v3432, %v3316
        %v3499 = vmul.f32 %v3438, %v3316
        %v3500 = vmul.f32 %v3444, %v3316
        %v3501 = vmul.f32 %v3450, %v3316
        %v3502 = vmul.f32 %v3456, %v3316
        %v3503 = vmul.f32 %v3462, %v3316
        %v3504 = vmul.f32 %v3468, %v3316
        %v3505 = vmul.f32 %v3474, %v3316
        %v3506 = vmul.f32 %v3480, %v3316
        %v3507 = vmul.f32 %v3486, %v3316
        %v3508 = vmul.f32 %v3492, %v3316
        %v3509 = vadd.f32 %v3493, 1e-05
        %v3510 = vadd.f32 %v3494, 1e-05
        %v3511 = vadd.f32 %v3495, 1e-05
        %v3512 = vadd.f32 %v3496, 1e-05
        %v3513 = vadd.f32 %v3497, 1e-05
        %v3514 = vadd.f32 %v3498, 1e-05
        %v3515 = vadd.f32 %v3499, 1e-05
        %v3516 = vadd.f32 %v3500, 1e-05
        %v3517 = vadd.f32 %v3501, 1e-05
        %v3518 = vadd.f32 %v3502, 1e-05
        %v3519 = vadd.f32 %v3503, 1e-05
        %v3520 = vadd.f32 %v3504, 1e-05
        %v3521 = vadd.f32 %v3505, 1e-05
        %v3522 = vadd.f32 %v3506, 1e-05
        %v3523 = vadd.f32 %v3507, 1e-05
        %v3524 = vadd.f32 %v3508, 1e-05
        %v3525 = vrsqrt.pop %v3509
        %v3526 = vrsqrt.pop %v3510
        %v3527 = vrsqrt.pop %v3511
        %v3528 = vrsqrt.pop %v3512
        %v3529 = vrsqrt.pop %v3513
        %v3530 = vrsqrt.pop %v3514
        %v3531 = vrsqrt.pop %v3515
        %v3532 = vrsqrt.pop %v3516
        %v3533 = vrsqrt.pop %v3517
        %v3534 = vrsqrt.pop %v3518
        %v3535 = vrsqrt.pop %v3519
        %v3536 = vrsqrt.pop %v3520
        %v3537 = vrsqrt.pop %v3521
        %v3538 = vrsqrt.pop %v3522
        %v3539 = vrsqrt.pop %v3523
        %v3540 = vrsqrt.pop %v3524
        %v3541 = vmul.f32 %v3333, %v3525
        %v3542 = vmul.f32 %v3334, %v3526
        %v3543 = vmul.f32 %v3335, %v3527
        %v3544 = vmul.f32 %v3336, %v3528
        %v3545 = vmul.f32 %v3337, %v3529
        %v3546 = vmul.f32 %v3338, %v3530
        %v3547 = vmul.f32 %v3339, %v3531
        %v3548 = vmul.f32 %v3340, %v3532
        %v3549 = vmul.f32 %v3341, %v3533
        %v3550 = vmul.f32 %v3342, %v3534
        %v3551 = vmul.f32 %v3343, %v3535
        %v3552 = vmul.f32 %v3344, %v3536
        %v3553 = vmul.f32 %v3345, %v3537
        %v3554 = vmul.f32 %v3346, %v3538
        %v3555 = vmul.f32 %v3347, %v3539
        %v3556 = vmul.f32 %v3348, %v3540
        %v3557 = vmul.f32 %v3541, %v560
        %v3558 = vmul.f32 %v3542, %v560
        %v3559 = vmul.f32 %v3543, %v560
        %v3560 = vmul.f32 %v3544, %v560
        %v3561 = vmul.f32 %v3545, %v560
        %v3562 = vmul.f32 %v3546, %v560
        %v3563 = vmul.f32 %v3547, %v560
        %v3564 = vmul.f32 %v3548, %v560
        %v3565 = vmul.f32 %v3549, %v560
        %v3566 = vmul.f32 %v3550, %v560
        %v3567 = vmul.f32 %v3551, %v560
        %v3568 = vmul.f32 %v3552, %v560
        %v3569 = vmul.f32 %v3553, %v560
        %v3570 = vmul.f32 %v3554, %v560
        %v3571 = vmul.f32 %v3555, %v560
        %v3572 = vmul.f32 %v3556, %v560
        %v3573 = vadd.f32 %v3557, %v561
        %v3574 = vadd.f32 %v3558, %v561
        %v3575 = vadd.f32 %v3559, %v561
        %v3576 = vadd.f32 %v3560, %v561
        %v3577 = vadd.f32 %v3561, %v561
        %v3578 = vadd.f32 %v3562, %v561
        %v3579 = vadd.f32 %v3563, %v561
        %v3580 = vadd.f32 %v3564, %v561
        %v3581 = vadd.f32 %v3565, %v561
        %v3582 = vadd.f32 %v3566, %v561
        %v3583 = vadd.f32 %v3567, %v561
        %v3584 = vadd.f32 %v3568, %v561
        %v3585 = vadd.f32 %v3569, %v561
        %v3586 = vadd.f32 %v3570, %v561
        %v3587 = vadd.f32 %v3571, %v561
        %v3588 = vadd.f32 %v3572, %v561
        %v3589 = vld [vmem:[#allocation16] sm:$0xff]
        %v3590 = vld [vmem:[#allocation16 + $0x8] sm:$0xff]
        %v3591 = vld [vmem:[#allocation16 + $0x10] sm:$0xff]
        %v3592 = vld [vmem:[#allocation16 + $0x18] sm:$0xff]
        %v3593 = vld [vmem:[#allocation16 + $0x20] sm:$0xff]
        %v3594 = vld [vmem:[#allocation16 + $0x28] sm:$0xff]
        %v3595 = vld [vmem:[#allocation16 + $0x30] sm:$0xff]
        %v3596 = vld [vmem:[%s7] sm:$0xff]
        %3598 = vset.pattern.permute.xlu0 0
        %3599 = vperm.xlu0 %3598, %v3596
        %v3600 = vpop.permute.xlu0 %3599
        %v3602 = vlaneseq
        %v3603 = vshrl.u32 %v3602, 7
        %v3604 = vsub.s32 0, %v3603
        %v3605 = vrot.slane %v3573, %v3604
        %v3606 = vlaneseq
        %v3607 = vshrl.u32 %v3606, 7
        %v3608 = vsub.s32 0, %v3607
        %v3609 = vrot.slane %v3574, %v3608
        %v3610 = vlaneseq
        %v3611 = vshrl.u32 %v3610, 7
        %v3612 = vsub.s32 0, %v3611
        %v3613 = vrot.slane %v3575, %v3612
        %v3614 = vlaneseq
        %v3615 = vshrl.u32 %v3614, 7
        %v3616 = vsub.s32 0, %v3615
        %v3617 = vrot.slane %v3576, %v3616
        %v3618 = vlaneseq
        %v3619 = vshrl.u32 %v3618, 7
        %v3620 = vsub.s32 0, %v3619
        %v3621 = vrot.slane %v3577, %v3620
        %v3622 = vlaneseq
        %v3623 = vshrl.u32 %v3622, 7
        %v3624 = vsub.s32 0, %v3623
        %v3625 = vrot.slane %v3578, %v3624
        %v3626 = vlaneseq
        %v3627 = vshrl.u32 %v3626, 7
        %v3628 = vsub.s32 0, %v3627
        %v3629 = vrot.slane %v3579, %v3628
        %v3630 = vlaneseq
        %v3631 = vshrl.u32 %v3630, 7
        %v3632 = vsub.s32 0, %v3631
        %v3633 = vrot.slane %v3580, %v3632
        %v3634 = vlaneseq
        %v3635 = vshrl.u32 %v3634, 7
        %v3636 = vsub.s32 0, %v3635
        %v3637 = vrot.slane %v3581, %v3636
        %v3638 = vlaneseq
        %v3639 = vshrl.u32 %v3638, 7
        %v3640 = vsub.s32 0, %v3639
        %v3641 = vrot.slane %v3582, %v3640
        %v3642 = vlaneseq
        %v3643 = vshrl.u32 %v3642, 7
        %v3644 = vsub.s32 0, %v3643
        %v3645 = vrot.slane %v3583, %v3644
        %v3646 = vlaneseq
        %v3647 = vshrl.u32 %v3646, 7
        %v3648 = vsub.s32 0, %v3647
        %v3649 = vrot.slane %v3584, %v3648
        %v3650 = vlaneseq
        %v3651 = vshrl.u32 %v3650, 7
        %v3652 = vsub.s32 0, %v3651
        %v3653 = vrot.slane %v3585, %v3652
        %v3654 = vlaneseq
        %v3655 = vshrl.u32 %v3654, 7
        %v3656 = vsub.s32 0, %v3655
        %v3657 = vrot.slane %v3586, %v3656
        %v3658 = vlaneseq
        %v3659 = vshrl.u32 %v3658, 7
        %v3660 = vsub.s32 0, %v3659
        %v3661 = vrot.slane %v3587, %v3660
        %v3662 = vlaneseq
        %v3663 = vshrl.u32 %v3662, 7
        %v3664 = vsub.s32 0, %v3663
        %v3665 = vrot.slane %v3588, %v3664
        %v3666 = vmul.f32 %v3600, %v3605
        %v3667 = vmul.f32 %v3600, %v3609
        %v3668 = vmul.f32 %v3600, %v3613
        %v3669 = vmul.f32 %v3600, %v3617
        %v3670 = vmul.f32 %v3600, %v3621
        %v3671 = vmul.f32 %v3600, %v3625
        %v3672 = vmul.f32 %v3600, %v3629
        %v3673 = vmul.f32 %v3600, %v3633
        %v3674 = vmul.f32 %v3600, %v3637
        %v3675 = vmul.f32 %v3600, %v3641
        %v3676 = vmul.f32 %v3600, %v3645
        %v3677 = vmul.f32 %v3600, %v3649
        %v3678 = vmul.f32 %v3600, %v3653
        %v3679 = vmul.f32 %v3600, %v3657
        %v3680 = vmul.f32 %v3600, %v3661
        %v3681 = vmul.f32 %v3600, %v3665
        %v3682 = vadd.f32 %v3666, 0.0
        %v3683 = vadd.f32 %v3667, 0.0
        %v3684 = vadd.f32 %v3668, 0.0
        %v3685 = vadd.f32 %v3669, 0.0
        %v3686 = vadd.f32 %v3670, 0.0
        %v3687 = vadd.f32 %v3671, 0.0
        %v3688 = vadd.f32 %v3672, 0.0
        %v3689 = vadd.f32 %v3673, 0.0
        %v3690 = vadd.f32 %v3674, 0.0
        %v3691 = vadd.f32 %v3675, 0.0
        %v3692 = vadd.f32 %v3676, 0.0
        %v3693 = vadd.f32 %v3677, 0.0
        %v3694 = vadd.f32 %v3678, 0.0
        %v3695 = vadd.f32 %v3679, 0.0
        %v3696 = vadd.f32 %v3680, 0.0
        %v3697 = vadd.f32 %v3681, 0.0
        %3698 = vset.pattern.permute.xlu0 1
        %3699 = vperm.xlu0 %3698, %v3596
        %v3700 = vpop.permute.xlu0 %3699
        %v3702 = vlaneseq
        %v3703 = vshrl.u32 %v3702, 7
        %v3704 = vsub.s32 1, %v3703
        %v3705 = vrot.slane %v3573, %v3704
        %v3706 = vlaneseq
        %v3707 = vshrl.u32 %v3706, 7
        %v3708 = vsub.s32 1, %v3707
        %v3709 = vrot.slane %v3574, %v3708
        %v3710 = vlaneseq
        %v3711 = vshrl.u32 %v3710, 7
        %v3712 = vsub.s32 1, %v3711
        %v3713 = vrot.slane %v3575, %v3712
        %v3714 = vlaneseq
        %v3715 = vshrl.u32 %v3714, 7
        %v3716 = vsub.s32 1, %v3715
        %v3717 = vrot.slane %v3576, %v3716
        %v3718 = vlaneseq
        %v3719 = vshrl.u32 %v3718, 7
        %v3720 = vsub.s32 1, %v3719
        %v3721 = vrot.slane %v3577, %v3720
        %v3722 = vlaneseq
        %v3723 = vshrl.u32 %v3722, 7
        %v3724 = vsub.s32 1, %v3723
        %v3725 = vrot.slane %v3578, %v3724
        %v3726 = vlaneseq
        %v3727 = vshrl.u32 %v3726, 7
        %v3728 = vsub.s32 1, %v3727
        %v3729 = vrot.slane %v3579, %v3728
        %v3730 = vlaneseq
        %v3731 = vshrl.u32 %v3730, 7
        %v3732 = vsub.s32 1, %v3731
        %v3733 = vrot.slane %v3580, %v3732
        %v3734 = vlaneseq
        %v3735 = vshrl.u32 %v3734, 7
        %v3736 = vsub.s32 1, %v3735
        %v3737 = vrot.slane %v3581, %v3736
        %v3738 = vlaneseq
        %v3739 = vshrl.u32 %v3738, 7
        %v3740 = vsub.s32 1, %v3739
        %v3741 = vrot.slane %v3582, %v3740
        %v3742 = vlaneseq
        %v3743 = vshrl.u32 %v3742, 7
        %v3744 = vsub.s32 1, %v3743
        %v3745 = vrot.slane %v3583, %v3744
        %v3746 = vlaneseq
        %v3747 = vshrl.u32 %v3746, 7
        %v3748 = vsub.s32 1, %v3747
        %v3749 = vrot.slane %v3584, %v3748
        %v3750 = vlaneseq
        %v3751 = vshrl.u32 %v3750, 7
        %v3752 = vsub.s32 1, %v3751
        %v3753 = vrot.slane %v3585, %v3752
        %v3754 = vlaneseq
        %v3755 = vshrl.u32 %v3754, 7
        %v3756 = vsub.s32 1, %v3755
        %v3757 = vrot.slane %v3586, %v3756
        %v3758 = vlaneseq
        %v3759 = vshrl.u32 %v3758, 7
        %v3760 = vsub.s32 1, %v3759
        %v3761 = vrot.slane %v3587, %v3760
        %v3762 = vlaneseq
        %v3763 = vshrl.u32 %v3762, 7
        %v3764 = vsub.s32 1, %v3763
        %v3765 = vrot.slane %v3588, %v3764
        %v3766 = vmul.f32 %v3700, %v3705
        %v3767 = vmul.f32 %v3700, %v3709
        %v3768 = vmul.f32 %v3700, %v3713
        %v3769 = vmul.f32 %v3700, %v3717
        %v3770 = vmul.f32 %v3700, %v3721
        %v3771 = vmul.f32 %v3700, %v3725
        %v3772 = vmul.f32 %v3700, %v3729
        %v3773 = vmul.f32 %v3700, %v3733
        %v3774 = vmul.f32 %v3700, %v3737
        %v3775 = vmul.f32 %v3700, %v3741
        %v3776 = vmul.f32 %v3700, %v3745
        %v3777 = vmul.f32 %v3700, %v3749
        %v3778 = vmul.f32 %v3700, %v3753
        %v3779 = vmul.f32 %v3700, %v3757
        %v3780 = vmul.f32 %v3700, %v3761
        %v3781 = vmul.f32 %v3700, %v3765
        %v3782 = vadd.f32 %v3682, %v3766
        %v3783 = vadd.f32 %v3683, %v3767
        %v3784 = vadd.f32 %v3684, %v3768
        %v3785 = vadd.f32 %v3685, %v3769
        %v3786 = vadd.f32 %v3686, %v3770
        %v3787 = vadd.f32 %v3687, %v3771
        %v3788 = vadd.f32 %v3688, %v3772
        %v3789 = vadd.f32 %v3689, %v3773
        %v3790 = vadd.f32 %v3690, %v3774
        %v3791 = vadd.f32 %v3691, %v3775
        %v3792 = vadd.f32 %v3692, %v3776
        %v3793 = vadd.f32 %v3693, %v3777
        %v3794 = vadd.f32 %v3694, %v3778
        %v3795 = vadd.f32 %v3695, %v3779
        %v3796 = vadd.f32 %v3696, %v3780
        %v3797 = vadd.f32 %v3697, %v3781
        %3798 = vset.pattern.permute.xlu0 2
        %3799 = vperm.xlu0 %3798, %v3596
        %v3800 = vpop.permute.xlu0 %3799
        %v3802 = vlaneseq
        %v3803 = vshrl.u32 %v3802, 7
        %v3804 = vsub.s32 2, %v3803
        %v3805 = vrot.slane %v3573, %v3804
        %v3806 = vlaneseq
        %v3807 = vshrl.u32 %v3806, 7
        %v3808 = vsub.s32 2, %v3807
        %v3809 = vrot.slane %v3574, %v3808
        %v3810 = vlaneseq
        %v3811 = vshrl.u32 %v3810, 7
        %v3812 = vsub.s32 2, %v3811
        %v3813 = vrot.slane %v3575, %v3812
        %v3814 = vlaneseq
        %v3815 = vshrl.u32 %v3814, 7
        %v3816 = vsub.s32 2, %v3815
        %v3817 = vrot.slane %v3576, %v3816
        %v3818 = vlaneseq
        %v3819 = vshrl.u32 %v3818, 7
        %v3820 = vsub.s32 2, %v3819
        %v3821 = vrot.slane %v3577, %v3820
        %v3822 = vlaneseq
        %v3823 = vshrl.u32 %v3822, 7
        %v3824 = vsub.s32 2, %v3823
        %v3825 = vrot.slane %v3578, %v3824
        %v3826 = vlaneseq
        %v3827 = vshrl.u32 %v3826, 7
        %v3828 = vsub.s32 2, %v3827
        %v3829 = vrot.slane %v3579, %v3828
        %v3830 = vlaneseq
        %v3831 = vshrl.u32 %v3830, 7
        %v3832 = vsub.s32 2, %v3831
        %v3833 = vrot.slane %v3580, %v3832
        %v3834 = vlaneseq
        %v3835 = vshrl.u32 %v3834, 7
        %v3836 = vsub.s32 2, %v3835
        %v3837 = vrot.slane %v3581, %v3836
        %v3838 = vlaneseq
        %v3839 = vshrl.u32 %v3838, 7
        %v3840 = vsub.s32 2, %v3839
        %v3841 = vrot.slane %v3582, %v3840
        %v3842 = vlaneseq
        %v3843 = vshrl.u32 %v3842, 7
        %v3844 = vsub.s32 2, %v3843
        %v3845 = vrot.slane %v3583, %v3844
        %v3846 = vlaneseq
        %v3847 = vshrl.u32 %v3846, 7
        %v3848 = vsub.s32 2, %v3847
        %v3849 = vrot.slane %v3584, %v3848
        %v3850 = vlaneseq
        %v3851 = vshrl.u32 %v3850, 7
        %v3852 = vsub.s32 2, %v3851
        %v3853 = vrot.slane %v3585, %v3852
        %v3854 = vlaneseq
        %v3855 = vshrl.u32 %v3854, 7
        %v3856 = vsub.s32 2, %v3855
        %v3857 = vrot.slane %v3586, %v3856
        %v3858 = vlaneseq
        %v3859 = vshrl.u32 %v3858, 7
        %v3860 = vsub.s32 2, %v3859
        %v3861 = vrot.slane %v3587, %v3860
        %v3862 = vlaneseq
        %v3863 = vshrl.u32 %v3862, 7
        %v3864 = vsub.s32 2, %v3863
        %v3865 = vrot.slane %v3588, %v3864
        %v3866 = vmul.f32 %v3800, %v3805
        %v3867 = vmul.f32 %v3800, %v3809
        %v3868 = vmul.f32 %v3800, %v3813
        %v3869 = vmul.f32 %v3800, %v3817
        %v3870 = vmul.f32 %v3800, %v3821
        %v3871 = vmul.f32 %v3800, %v3825
        %v3872 = vmul.f32 %v3800, %v3829
        %v3873 = vmul.f32 %v3800, %v3833
        %v3874 = vmul.f32 %v3800, %v3837
        %v3875 = vmul.f32 %v3800, %v3841
        %v3876 = vmul.f32 %v3800, %v3845
        %v3877 = vmul.f32 %v3800, %v3849
        %v3878 = vmul.f32 %v3800, %v3853
        %v3879 = vmul.f32 %v3800, %v3857
        %v3880 = vmul.f32 %v3800, %v3861
        %v3881 = vmul.f32 %v3800, %v3865
        %v3882 = vadd.f32 %v3782, %v3866
        %v3883 = vadd.f32 %v3783, %v3867
        %v3884 = vadd.f32 %v3784, %v3868
        %v3885 = vadd.f32 %v3785, %v3869
        %v3886 = vadd.f32 %v3786, %v3870
        %v3887 = vadd.f32 %v3787, %v3871
        %v3888 = vadd.f32 %v3788, %v3872
        %v3889 = vadd.f32 %v3789, %v3873
        %v3890 = vadd.f32 %v3790, %v3874
        %v3891 = vadd.f32 %v3791, %v3875
        %v3892 = vadd.f32 %v3792, %v3876
        %v3893 = vadd.f32 %v3793, %v3877
        %v3894 = vadd.f32 %v3794, %v3878
        %v3895 = vadd.f32 %v3795, %v3879
        %v3896 = vadd.f32 %v3796, %v3880
        %v3897 = vadd.f32 %v3797, %v3881
        %3898 = vset.pattern.permute.xlu0 3
        %3899 = vperm.xlu0 %3898, %v3596
        %v3900 = vpop.permute.xlu0 %3899
        %v3902 = vlaneseq
        %v3903 = vshrl.u32 %v3902, 7
        %v3904 = vsub.s32 3, %v3903
        %v3905 = vrot.slane %v3573, %v3904
        %v3906 = vlaneseq
        %v3907 = vshrl.u32 %v3906, 7
        %v3908 = vsub.s32 3, %v3907
        %v3909 = vrot.slane %v3574, %v3908
        %v3910 = vlaneseq
        %v3911 = vshrl.u32 %v3910, 7
        %v3912 = vsub.s32 3, %v3911
        %v3913 = vrot.slane %v3575, %v3912
        %v3914 = vlaneseq
        %v3915 = vshrl.u32 %v3914, 7
        %v3916 = vsub.s32 3, %v3915
        %v3917 = vrot.slane %v3576, %v3916
        %v3918 = vlaneseq
        %v3919 = vshrl.u32 %v3918, 7
        %v3920 = vsub.s32 3, %v3919
        %v3921 = vrot.slane %v3577, %v3920
        %v3922 = vlaneseq
        %v3923 = vshrl.u32 %v3922, 7
        %v3924 = vsub.s32 3, %v3923
        %v3925 = vrot.slane %v3578, %v3924
        %v3926 = vlaneseq
        %v3927 = vshrl.u32 %v3926, 7
        %v3928 = vsub.s32 3, %v3927
        %v3929 = vrot.slane %v3579, %v3928
        %v3930 = vlaneseq
        %v3931 = vshrl.u32 %v3930, 7
        %v3932 = vsub.s32 3, %v3931
        %v3933 = vrot.slane %v3580, %v3932
        %v3934 = vlaneseq
        %v3935 = vshrl.u32 %v3934, 7
        %v3936 = vsub.s32 3, %v3935
        %v3937 = vrot.slane %v3581, %v3936
        %v3938 = vlaneseq
        %v3939 = vshrl.u32 %v3938, 7
        %v3940 = vsub.s32 3, %v3939
        %v3941 = vrot.slane %v3582, %v3940
        %v3942 = vlaneseq
        %v3943 = vshrl.u32 %v3942, 7
        %v3944 = vsub.s32 3, %v3943
        %v3945 = vrot.slane %v3583, %v3944
        %v3946 = vlaneseq
        %v3947 = vshrl.u32 %v3946, 7
        %v3948 = vsub.s32 3, %v3947
        %v3949 = vrot.slane %v3584, %v3948
        %v3950 = vlaneseq
        %v3951 = vshrl.u32 %v3950, 7
        %v3952 = vsub.s32 3, %v3951
        %v3953 = vrot.slane %v3585, %v3952
        %v3954 = vlaneseq
        %v3955 = vshrl.u32 %v3954, 7
        %v3956 = vsub.s32 3, %v3955
        %v3957 = vrot.slane %v3586, %v3956
        %v3958 = vlaneseq
        %v3959 = vshrl.u32 %v3958, 7
        %v3960 = vsub.s32 3, %v3959
        %v3961 = vrot.slane %v3587, %v3960
        %v3962 = vlaneseq
        %v3963 = vshrl.u32 %v3962, 7
        %v3964 = vsub.s32 3, %v3963
        %v3965 = vrot.slane %v3588, %v3964
        %v3966 = vmul.f32 %v3900, %v3905
        %v3967 = vmul.f32 %v3900, %v3909
        %v3968 = vmul.f32 %v3900, %v3913
        %v3969 = vmul.f32 %v3900, %v3917
        %v3970 = vmul.f32 %v3900, %v3921
        %v3971 = vmul.f32 %v3900, %v3925
        %v3972 = vmul.f32 %v3900, %v3929
        %v3973 = vmul.f32 %v3900, %v3933
        %v3974 = vmul.f32 %v3900, %v3937
        %v3975 = vmul.f32 %v3900, %v3941
        %v3976 = vmul.f32 %v3900, %v3945
        %v3977 = vmul.f32 %v3900, %v3949
        %v3978 = vmul.f32 %v3900, %v3953
        %v3979 = vmul.f32 %v3900, %v3957
        %v3980 = vmul.f32 %v3900, %v3961
        %v3981 = vmul.f32 %v3900, %v3965
        %v3982 = vadd.f32 %v3882, %v3966
        %v3983 = vadd.f32 %v3883, %v3967
        %v3984 = vadd.f32 %v3884, %v3968
        %v3985 = vadd.f32 %v3885, %v3969
        %v3986 = vadd.f32 %v3886, %v3970
        %v3987 = vadd.f32 %v3887, %v3971
        %v3988 = vadd.f32 %v3888, %v3972
        %v3989 = vadd.f32 %v3889, %v3973
        %v3990 = vadd.f32 %v3890, %v3974
        %v3991 = vadd.f32 %v3891, %v3975
        %v3992 = vadd.f32 %v3892, %v3976
        %v3993 = vadd.f32 %v3893, %v3977
        %v3994 = vadd.f32 %v3894, %v3978
        %v3995 = vadd.f32 %v3895, %v3979
        %v3996 = vadd.f32 %v3896, %v3980
        %v3997 = vadd.f32 %v3897, %v3981
        %3998 = vset.pattern.permute.xlu0 4
        %3999 = vperm.xlu0 %3998, %v3596
        %v4000 = vpop.permute.xlu0 %3999
        %v4002 = vlaneseq
        %v4003 = vshrl.u32 %v4002, 7
        %v4004 = vsub.s32 4, %v4003
        %v4005 = vrot.slane %v3573, %v4004
        %v4006 = vlaneseq
        %v4007 = vshrl.u32 %v4006, 7
        %v4008 = vsub.s32 4, %v4007
        %v4009 = vrot.slane %v3574, %v4008
        %v4010 = vlaneseq
        %v4011 = vshrl.u32 %v4010, 7
        %v4012 = vsub.s32 4, %v4011
        %v4013 = vrot.slane %v3575, %v4012
        %v4014 = vlaneseq
        %v4015 = vshrl.u32 %v4014, 7
        %v4016 = vsub.s32 4, %v4015
        %v4017 = vrot.slane %v3576, %v4016
        %v4018 = vlaneseq
        %v4019 = vshrl.u32 %v4018, 7
        %v4020 = vsub.s32 4, %v4019
        %v4021 = vrot.slane %v3577, %v4020
        %v4022 = vlaneseq
        %v4023 = vshrl.u32 %v4022, 7
        %v4024 = vsub.s32 4, %v4023
        %v4025 = vrot.slane %v3578, %v4024
        %v4026 = vlaneseq
        %v4027 = vshrl.u32 %v4026, 7
        %v4028 = vsub.s32 4, %v4027
        %v4029 = vrot.slane %v3579, %v4028
        %v4030 = vlaneseq
        %v4031 = vshrl.u32 %v4030, 7
        %v4032 = vsub.s32 4, %v4031
        %v4033 = vrot.slane %v3580, %v4032
        %v4034 = vlaneseq
        %v4035 = vshrl.u32 %v4034, 7
        %v4036 = vsub.s32 4, %v4035
        %v4037 = vrot.slane %v3581, %v4036
        %v4038 = vlaneseq
        %v4039 = vshrl.u32 %v4038, 7
        %v4040 = vsub.s32 4, %v4039
        %v4041 = vrot.slane %v3582, %v4040
        %v4042 = vlaneseq
        %v4043 = vshrl.u32 %v4042, 7
        %v4044 = vsub.s32 4, %v4043
        %v4045 = vrot.slane %v3583, %v4044
        %v4046 = vlaneseq
        %v4047 = vshrl.u32 %v4046, 7
        %v4048 = vsub.s32 4, %v4047
        %v4049 = vrot.slane %v3584, %v4048
        %v4050 = vlaneseq
        %v4051 = vshrl.u32 %v4050, 7
        %v4052 = vsub.s32 4, %v4051
        %v4053 = vrot.slane %v3585, %v4052
        %v4054 = vlaneseq
        %v4055 = vshrl.u32 %v4054, 7
        %v4056 = vsub.s32 4, %v4055
        %v4057 = vrot.slane %v3586, %v4056
        %v4058 = vlaneseq
        %v4059 = vshrl.u32 %v4058, 7
        %v4060 = vsub.s32 4, %v4059
        %v4061 = vrot.slane %v3587, %v4060
        %v4062 = vlaneseq
        %v4063 = vshrl.u32 %v4062, 7
        %v4064 = vsub.s32 4, %v4063
        %v4065 = vrot.slane %v3588, %v4064
        %v4066 = vmul.f32 %v4000, %v4005
        %v4067 = vmul.f32 %v4000, %v4009
        %v4068 = vmul.f32 %v4000, %v4013
        %v4069 = vmul.f32 %v4000, %v4017
        %v4070 = vmul.f32 %v4000, %v4021
        %v4071 = vmul.f32 %v4000, %v4025
        %v4072 = vmul.f32 %v4000, %v4029
        %v4073 = vmul.f32 %v4000, %v4033
        %v4074 = vmul.f32 %v4000, %v4037
        %v4075 = vmul.f32 %v4000, %v4041
        %v4076 = vmul.f32 %v4000, %v4045
        %v4077 = vmul.f32 %v4000, %v4049
        %v4078 = vmul.f32 %v4000, %v4053
        %v4079 = vmul.f32 %v4000, %v4057
        %v4080 = vmul.f32 %v4000, %v4061
        %v4081 = vmul.f32 %v4000, %v4065
        %v4082 = vadd.f32 %v3982, %v4066
        %v4083 = vadd.f32 %v3983, %v4067
        %v4084 = vadd.f32 %v3984, %v4068
        %v4085 = vadd.f32 %v3985, %v4069
        %v4086 = vadd.f32 %v3986, %v4070
        %v4087 = vadd.f32 %v3987, %v4071
        %v4088 = vadd.f32 %v3988, %v4072
        %v4089 = vadd.f32 %v3989, %v4073
        %v4090 = vadd.f32 %v3990, %v4074
        %v4091 = vadd.f32 %v3991, %v4075
        %v4092 = vadd.f32 %v3992, %v4076
        %v4093 = vadd.f32 %v3993, %v4077
        %v4094 = vadd.f32 %v3994, %v4078
        %v4095 = vadd.f32 %v3995, %v4079
        %v4096 = vadd.f32 %v3996, %v4080
        %v4097 = vadd.f32 %v3997, %v4081
        %4098 = vset.pattern.permute.xlu0 5
        %4099 = vperm.xlu0 %4098, %v3596
        %v4100 = vpop.permute.xlu0 %4099
        %v4102 = vlaneseq
        %v4103 = vshrl.u32 %v4102, 7
        %v4104 = vsub.s32 5, %v4103
        %v4105 = vrot.slane %v3573, %v4104
        %v4106 = vlaneseq
        %v4107 = vshrl.u32 %v4106, 7
        %v4108 = vsub.s32 5, %v4107
        %v4109 = vrot.slane %v3574, %v4108
        %v4110 = vlaneseq
        %v4111 = vshrl.u32 %v4110, 7
        %v4112 = vsub.s32 5, %v4111
        %v4113 = vrot.slane %v3575, %v4112
        %v4114 = vlaneseq
        %v4115 = vshrl.u32 %v4114, 7
        %v4116 = vsub.s32 5, %v4115
        %v4117 = vrot.slane %v3576, %v4116
        %v4118 = vlaneseq
        %v4119 = vshrl.u32 %v4118, 7
        %v4120 = vsub.s32 5, %v4119
        %v4121 = vrot.slane %v3577, %v4120
        %v4122 = vlaneseq
        %v4123 = vshrl.u32 %v4122, 7
        %v4124 = vsub.s32 5, %v4123
        %v4125 = vrot.slane %v3578, %v4124
        %v4126 = vlaneseq
        %v4127 = vshrl.u32 %v4126, 7
        %v4128 = vsub.s32 5, %v4127
        %v4129 = vrot.slane %v3579, %v4128
        %v4130 = vlaneseq
        %v4131 = vshrl.u32 %v4130, 7
        %v4132 = vsub.s32 5, %v4131
        %v4133 = vrot.slane %v3580, %v4132
        %v4134 = vlaneseq
        %v4135 = vshrl.u32 %v4134, 7
        %v4136 = vsub.s32 5, %v4135
        %v4137 = vrot.slane %v3581, %v4136
        %v4138 = vlaneseq
        %v4139 = vshrl.u32 %v4138, 7
        %v4140 = vsub.s32 5, %v4139
        %v4141 = vrot.slane %v3582, %v4140
        %v4142 = vlaneseq
        %v4143 = vshrl.u32 %v4142, 7
        %v4144 = vsub.s32 5, %v4143
        %v4145 = vrot.slane %v3583, %v4144
        %v4146 = vlaneseq
        %v4147 = vshrl.u32 %v4146, 7
        %v4148 = vsub.s32 5, %v4147
        %v4149 = vrot.slane %v3584, %v4148
        %v4150 = vlaneseq
        %v4151 = vshrl.u32 %v4150, 7
        %v4152 = vsub.s32 5, %v4151
        %v4153 = vrot.slane %v3585, %v4152
        %v4154 = vlaneseq
        %v4155 = vshrl.u32 %v4154, 7
        %v4156 = vsub.s32 5, %v4155
        %v4157 = vrot.slane %v3586, %v4156
        %v4158 = vlaneseq
        %v4159 = vshrl.u32 %v4158, 7
        %v4160 = vsub.s32 5, %v4159
        %v4161 = vrot.slane %v3587, %v4160
        %v4162 = vlaneseq
        %v4163 = vshrl.u32 %v4162, 7
        %v4164 = vsub.s32 5, %v4163
        %v4165 = vrot.slane %v3588, %v4164
        %v4166 = vmul.f32 %v4100, %v4105
        %v4167 = vmul.f32 %v4100, %v4109
        %v4168 = vmul.f32 %v4100, %v4113
        %v4169 = vmul.f32 %v4100, %v4117
        %v4170 = vmul.f32 %v4100, %v4121
        %v4171 = vmul.f32 %v4100, %v4125
        %v4172 = vmul.f32 %v4100, %v4129
        %v4173 = vmul.f32 %v4100, %v4133
        %v4174 = vmul.f32 %v4100, %v4137
        %v4175 = vmul.f32 %v4100, %v4141
        %v4176 = vmul.f32 %v4100, %v4145
        %v4177 = vmul.f32 %v4100, %v4149
        %v4178 = vmul.f32 %v4100, %v4153
        %v4179 = vmul.f32 %v4100, %v4157
        %v4180 = vmul.f32 %v4100, %v4161
        %v4181 = vmul.f32 %v4100, %v4165
        %v4182 = vadd.f32 %v4082, %v4166
        %v4183 = vadd.f32 %v4083, %v4167
        %v4184 = vadd.f32 %v4084, %v4168
        %v4185 = vadd.f32 %v4085, %v4169
        %v4186 = vadd.f32 %v4086, %v4170
        %v4187 = vadd.f32 %v4087, %v4171
        %v4188 = vadd.f32 %v4088, %v4172
        %v4189 = vadd.f32 %v4089, %v4173
        %v4190 = vadd.f32 %v4090, %v4174
        %v4191 = vadd.f32 %v4091, %v4175
        %v4192 = vadd.f32 %v4092, %v4176
        %v4193 = vadd.f32 %v4093, %v4177
        %v4194 = vadd.f32 %v4094, %v4178
        %v4195 = vadd.f32 %v4095, %v4179
        %v4196 = vadd.f32 %v4096, %v4180
        %v4197 = vadd.f32 %v4097, %v4181
        %4198 = vset.pattern.permute.xlu0 6
        %4199 = vperm.xlu0 %4198, %v3596
        %v4200 = vpop.permute.xlu0 %4199
        %v4202 = vlaneseq
        %v4203 = vshrl.u32 %v4202, 7
        %v4204 = vsub.s32 6, %v4203
        %v4205 = vrot.slane %v3573, %v4204
        %v4206 = vlaneseq
        %v4207 = vshrl.u32 %v4206, 7
        %v4208 = vsub.s32 6, %v4207
        %v4209 = vrot.slane %v3574, %v4208
        %v4210 = vlaneseq
        %v4211 = vshrl.u32 %v4210, 7
        %v4212 = vsub.s32 6, %v4211
        %v4213 = vrot.slane %v3575, %v4212
        %v4214 = vlaneseq
        %v4215 = vshrl.u32 %v4214, 7
        %v4216 = vsub.s32 6, %v4215
        %v4217 = vrot.slane %v3576, %v4216
        %v4218 = vlaneseq
        %v4219 = vshrl.u32 %v4218, 7
        %v4220 = vsub.s32 6, %v4219
        %v4221 = vrot.slane %v3577, %v4220
        %v4222 = vlaneseq
        %v4223 = vshrl.u32 %v4222, 7
        %v4224 = vsub.s32 6, %v4223
        %v4225 = vrot.slane %v3578, %v4224
        %v4226 = vlaneseq
        %v4227 = vshrl.u32 %v4226, 7
        %v4228 = vsub.s32 6, %v4227
        %v4229 = vrot.slane %v3579, %v4228
        %v4230 = vlaneseq
        %v4231 = vshrl.u32 %v4230, 7
        %v4232 = vsub.s32 6, %v4231
        %v4233 = vrot.slane %v3580, %v4232
        %v4234 = vlaneseq
        %v4235 = vshrl.u32 %v4234, 7
        %v4236 = vsub.s32 6, %v4235
        %v4237 = vrot.slane %v3581, %v4236
        %v4238 = vlaneseq
        %v4239 = vshrl.u32 %v4238, 7
        %v4240 = vsub.s32 6, %v4239
        %v4241 = vrot.slane %v3582, %v4240
        %v4242 = vlaneseq
        %v4243 = vshrl.u32 %v4242, 7
        %v4244 = vsub.s32 6, %v4243
        %v4245 = vrot.slane %v3583, %v4244
        %v4246 = vlaneseq
        %v4247 = vshrl.u32 %v4246, 7
        %v4248 = vsub.s32 6, %v4247
        %v4249 = vrot.slane %v3584, %v4248
        %v4250 = vlaneseq
        %v4251 = vshrl.u32 %v4250, 7
        %v4252 = vsub.s32 6, %v4251
        %v4253 = vrot.slane %v3585, %v4252
        %v4254 = vlaneseq
        %v4255 = vshrl.u32 %v4254, 7
        %v4256 = vsub.s32 6, %v4255
        %v4257 = vrot.slane %v3586, %v4256
        %v4258 = vlaneseq
        %v4259 = vshrl.u32 %v4258, 7
        %v4260 = vsub.s32 6, %v4259
        %v4261 = vrot.slane %v3587, %v4260
        %v4262 = vlaneseq
        %v4263 = vshrl.u32 %v4262, 7
        %v4264 = vsub.s32 6, %v4263
        %v4265 = vrot.slane %v3588, %v4264
        %v4266 = vmul.f32 %v4200, %v4205
        %v4267 = vmul.f32 %v4200, %v4209
        %v4268 = vmul.f32 %v4200, %v4213
        %v4269 = vmul.f32 %v4200, %v4217
        %v4270 = vmul.f32 %v4200, %v4221
        %v4271 = vmul.f32 %v4200, %v4225
        %v4272 = vmul.f32 %v4200, %v4229
        %v4273 = vmul.f32 %v4200, %v4233
        %v4274 = vmul.f32 %v4200, %v4237
        %v4275 = vmul.f32 %v4200, %v4241
        %v4276 = vmul.f32 %v4200, %v4245
        %v4277 = vmul.f32 %v4200, %v4249
        %v4278 = vmul.f32 %v4200, %v4253
        %v4279 = vmul.f32 %v4200, %v4257
        %v4280 = vmul.f32 %v4200, %v4261
        %v4281 = vmul.f32 %v4200, %v4265
        %v4282 = vadd.f32 %v4182, %v4266
        %v4283 = vadd.f32 %v4183, %v4267
        %v4284 = vadd.f32 %v4184, %v4268
        %v4285 = vadd.f32 %v4185, %v4269
        %v4286 = vadd.f32 %v4186, %v4270
        %v4287 = vadd.f32 %v4187, %v4271
        %v4288 = vadd.f32 %v4188, %v4272
        %v4289 = vadd.f32 %v4189, %v4273
        %v4290 = vadd.f32 %v4190, %v4274
        %v4291 = vadd.f32 %v4191, %v4275
        %v4292 = vadd.f32 %v4192, %v4276
        %v4293 = vadd.f32 %v4193, %v4277
        %v4294 = vadd.f32 %v4194, %v4278
        %v4295 = vadd.f32 %v4195, %v4279
        %v4296 = vadd.f32 %v4196, %v4280
        %v4297 = vadd.f32 %v4197, %v4281
        %4298 = vset.pattern.permute.xlu0 7
        %4299 = vperm.xlu0 %4298, %v3596
        %v4300 = vpop.permute.xlu0 %4299
        %v4302 = vlaneseq
        %v4303 = vshrl.u32 %v4302, 7
        %v4304 = vsub.s32 7, %v4303
        %v4305 = vrot.slane %v3573, %v4304
        %v4306 = vlaneseq
        %v4307 = vshrl.u32 %v4306, 7
        %v4308 = vsub.s32 7, %v4307
        %v4309 = vrot.slane %v3574, %v4308
        %v4310 = vlaneseq
        %v4311 = vshrl.u32 %v4310, 7
        %v4312 = vsub.s32 7, %v4311
        %v4313 = vrot.slane %v3575, %v4312
        %v4314 = vlaneseq
        %v4315 = vshrl.u32 %v4314, 7
        %v4316 = vsub.s32 7, %v4315
        %v4317 = vrot.slane %v3576, %v4316
        %v4318 = vlaneseq
        %v4319 = vshrl.u32 %v4318, 7
        %v4320 = vsub.s32 7, %v4319
        %v4321 = vrot.slane %v3577, %v4320
        %v4322 = vlaneseq
        %v4323 = vshrl.u32 %v4322, 7
        %v4324 = vsub.s32 7, %v4323
        %v4325 = vrot.slane %v3578, %v4324
        %v4326 = vlaneseq
        %v4327 = vshrl.u32 %v4326, 7
        %v4328 = vsub.s32 7, %v4327
        %v4329 = vrot.slane %v3579, %v4328
        %v4330 = vlaneseq
        %v4331 = vshrl.u32 %v4330, 7
        %v4332 = vsub.s32 7, %v4331
        %v4333 = vrot.slane %v3580, %v4332
        %v4334 = vlaneseq
        %v4335 = vshrl.u32 %v4334, 7
        %v4336 = vsub.s32 7, %v4335
        %v4337 = vrot.slane %v3581, %v4336
        %v4338 = vlaneseq
        %v4339 = vshrl.u32 %v4338, 7
        %v4340 = vsub.s32 7, %v4339
        %v4341 = vrot.slane %v3582, %v4340
        %v4342 = vlaneseq
        %v4343 = vshrl.u32 %v4342, 7
        %v4344 = vsub.s32 7, %v4343
        %v4345 = vrot.slane %v3583, %v4344
        %v4346 = vlaneseq
        %v4347 = vshrl.u32 %v4346, 7
        %v4348 = vsub.s32 7, %v4347
        %v4349 = vrot.slane %v3584, %v4348
        %v4350 = vlaneseq
        %v4351 = vshrl.u32 %v4350, 7
        %v4352 = vsub.s32 7, %v4351
        %v4353 = vrot.slane %v3585, %v4352
        %v4354 = vlaneseq
        %v4355 = vshrl.u32 %v4354, 7
        %v4356 = vsub.s32 7, %v4355
        %v4357 = vrot.slane %v3586, %v4356
        %v4358 = vlaneseq
        %v4359 = vshrl.u32 %v4358, 7
        %v4360 = vsub.s32 7, %v4359
        %v4361 = vrot.slane %v3587, %v4360
        %v4362 = vlaneseq
        %v4363 = vshrl.u32 %v4362, 7
        %v4364 = vsub.s32 7, %v4363
        %v4365 = vrot.slane %v3588, %v4364
        %v4366 = vmul.f32 %v4300, %v4305
        %v4367 = vmul.f32 %v4300, %v4309
        %v4368 = vmul.f32 %v4300, %v4313
        %v4369 = vmul.f32 %v4300, %v4317
        %v4370 = vmul.f32 %v4300, %v4321
        %v4371 = vmul.f32 %v4300, %v4325
        %v4372 = vmul.f32 %v4300, %v4329
        %v4373 = vmul.f32 %v4300, %v4333
        %v4374 = vmul.f32 %v4300, %v4337
        %v4375 = vmul.f32 %v4300, %v4341
        %v4376 = vmul.f32 %v4300, %v4345
        %v4377 = vmul.f32 %v4300, %v4349
        %v4378 = vmul.f32 %v4300, %v4353
        %v4379 = vmul.f32 %v4300, %v4357
        %v4380 = vmul.f32 %v4300, %v4361
        %v4381 = vmul.f32 %v4300, %v4365
        %v4382 = vadd.f32 %v4282, %v4366
        %v4383 = vadd.f32 %v4283, %v4367
        %v4384 = vadd.f32 %v4284, %v4368
        %v4385 = vadd.f32 %v4285, %v4369
        %v4386 = vadd.f32 %v4286, %v4370
        %v4387 = vadd.f32 %v4287, %v4371
        %v4388 = vadd.f32 %v4288, %v4372
        %v4389 = vadd.f32 %v4289, %v4373
        %v4390 = vadd.f32 %v4290, %v4374
        %v4391 = vadd.f32 %v4291, %v4375
        %v4392 = vadd.f32 %v4292, %v4376
        %v4393 = vadd.f32 %v4293, %v4377
        %v4394 = vadd.f32 %v4294, %v4378
        %v4395 = vadd.f32 %v4295, %v4379
        %v4396 = vadd.f32 %v4296, %v4380
        %v4397 = vadd.f32 %v4297, %v4381
        %v4398 = vadd.f32 %v4382, %v3589
        %v4399 = vadd.f32 %v4383, %v3589
        %v4400 = vadd.f32 %v4384, %v3589
        %v4401 = vadd.f32 %v4385, %v3589
        %v4402 = vadd.f32 %v4386, %v3589
        %v4403 = vadd.f32 %v4387, %v3589
        %v4404 = vadd.f32 %v4388, %v3589
        %v4405 = vadd.f32 %v4389, %v3589
        %v4406 = vadd.f32 %v4390, %v3589
        %v4407 = vadd.f32 %v4391, %v3589
        %v4408 = vadd.f32 %v4392, %v3589
        %v4409 = vadd.f32 %v4393, %v3589
        %v4410 = vadd.f32 %v4394, %v3589
        %v4411 = vadd.f32 %v4395, %v3589
        %v4412 = vadd.f32 %v4396, %v3589
        %v4413 = vadd.f32 %v4397, %v3589
        %v4414 = vmax.f32 %v4398, 0.0
        %v4415 = vmax.f32 %v4399, 0.0
        %v4416 = vmax.f32 %v4400, 0.0
        %v4417 = vmax.f32 %v4401, 0.0
        %v4418 = vmax.f32 %v4402, 0.0
        %v4419 = vmax.f32 %v4403, 0.0
        %v4420 = vmax.f32 %v4404, 0.0
        %v4421 = vmax.f32 %v4405, 0.0
        %v4422 = vmax.f32 %v4406, 0.0
        %v4423 = vmax.f32 %v4407, 0.0
        %v4424 = vmax.f32 %v4408, 0.0
        %v4425 = vmax.f32 %v4409, 0.0
        %v4426 = vmax.f32 %v4410, 0.0
        %v4427 = vmax.f32 %v4411, 0.0
        %v4428 = vmax.f32 %v4412, 0.0
        %v4429 = vmax.f32 %v4413, 0.0
        %v4430 = vadd.f32 %v3573, %v4414
        %v4431 = vadd.f32 %v3574, %v4415
        %v4432 = vadd.f32 %v3575, %v4416
        %v4433 = vadd.f32 %v3576, %v4417
        %v4434 = vadd.f32 %v3577, %v4418
        %v4435 = vadd.f32 %v3578, %v4419
        %v4436 = vadd.f32 %v3579, %v4420
        %v4437 = vadd.f32 %v3580, %v4421
        %v4438 = vadd.f32 %v3581, %v4422
        %v4439 = vadd.f32 %v3582, %v4423
        %v4440 = vadd.f32 %v3583, %v4424
        %v4441 = vadd.f32 %v3584, %v4425
        %v4442 = vadd.f32 %v3585, %v4426
        %v4443 = vadd.f32 %v3586, %v4427
        %v4444 = vadd.f32 %v3587, %v4428
        %v4445 = vadd.f32 %v3588, %v4429
        %4446 = vadd.xlane.f32.xlu0 %v4430
        %v4447 = vpop.xlane.xlu0 %4446
        %4448 = vadd.xlane.f32.xlu0 %v4431
        %v4449 = vpop.xlane.xlu0 %4448
        %4450 = vadd.xlane.f32.xlu0 %v4432
        %v4451 = vpop.xlane.xlu0 %4450
        %4452 = vadd.xlane.f32.xlu0 %v4433
        %v4453 = vpop.xlane.xlu0 %4452
        %4454 = vadd.xlane.f32.xlu0 %v4434
        %v4455 = vpop.xlane.xlu0 %4454
        %4456 = vadd.xlane.f32.xlu0 %v4435
        %v4457 = vpop.xlane.xlu0 %4456
        %4458 = vadd.xlane.f32.xlu0 %v4436
        %v4459 = vpop.xlane.xlu0 %4458
        %4460 = vadd.xlane.f32.xlu0 %v4437
        %v4461 = vpop.xlane.xlu0 %4460
        %4462 = vadd.xlane.f32.xlu0 %v4438
        %v4463 = vpop.xlane.xlu0 %4462
        %4464 = vadd.xlane.f32.xlu0 %v4439
        %v4465 = vpop.xlane.xlu0 %4464
        %4466 = vadd.xlane.f32.xlu0 %v4440
        %v4467 = vpop.xlane.xlu0 %4466
        %4468 = vadd.xlane.f32.xlu0 %v4441
        %v4469 = vpop.xlane.xlu0 %4468
        %4470 = vadd.xlane.f32.xlu0 %v4442
        %v4471 = vpop.xlane.xlu0 %4470
        %4472 = vadd.xlane.f32.xlu0 %v4443
        %v4473 = vpop.xlane.xlu0 %4472
        %4474 = vadd.xlane.f32.xlu0 %v4444
        %v4475 = vpop.xlane.xlu0 %4474
        %4476 = vadd.xlane.f32.xlu0 %v4445
        %v4477 = vpop.xlane.xlu0 %4476
        %v4478 = vrot.slane %v4447, 4
        %v4479 = vadd.f32 %v4447, %v4478
        %v4480 = vrot.slane %v4479, 2
        %v4481 = vadd.f32 %v4479, %v4480
        %v4482 = vrot.slane %v4481, 1
        %v4483 = vadd.f32 %v4481, %v4482
        %v4484 = vrot.slane %v4449, 4
        %v4485 = vadd.f32 %v4449, %v4484
        %v4486 = vrot.slane %v4485, 2
        %v4487 = vadd.f32 %v4485, %v4486
        %v4488 = vrot.slane %v4487, 1
        %v4489 = vadd.f32 %v4487, %v4488
        %v4490 = vrot.slane %v4451, 4
        %v4491 = vadd.f32 %v4451, %v4490
        %v4492 = vrot.slane %v4491, 2
        %v4493 = vadd.f32 %v4491, %v4492
        %v4494 = vrot.slane %v4493, 1
        %v4495 = vadd.f32 %v4493, %v4494
        %v4496 = vrot.slane %v4453, 4
        %v4497 = vadd.f32 %v4453, %v4496
        %v4498 = vrot.slane %v4497, 2
        %v4499 = vadd.f32 %v4497, %v4498
        %v4500 = vrot.slane %v4499, 1
        %v4501 = vadd.f32 %v4499, %v4500
        %v4502 = vrot.slane %v4455, 4
        %v4503 = vadd.f32 %v4455, %v4502
        %v4504 = vrot.slane %v4503, 2
        %v4505 = vadd.f32 %v4503, %v4504
        %v4506 = vrot.slane %v4505, 1
        %v4507 = vadd.f32 %v4505, %v4506
        %v4508 = vrot.slane %v4457, 4
        %v4509 = vadd.f32 %v4457, %v4508
        %v4510 = vrot.slane %v4509, 2
        %v4511 = vadd.f32 %v4509, %v4510
        %v4512 = vrot.slane %v4511, 1
        %v4513 = vadd.f32 %v4511, %v4512
        %v4514 = vrot.slane %v4459, 4
        %v4515 = vadd.f32 %v4459, %v4514
        %v4516 = vrot.slane %v4515, 2
        %v4517 = vadd.f32 %v4515, %v4516
        %v4518 = vrot.slane %v4517, 1
        %v4519 = vadd.f32 %v4517, %v4518
        %v4520 = vrot.slane %v4461, 4
        %v4521 = vadd.f32 %v4461, %v4520
        %v4522 = vrot.slane %v4521, 2
        %v4523 = vadd.f32 %v4521, %v4522
        %v4524 = vrot.slane %v4523, 1
        %v4525 = vadd.f32 %v4523, %v4524
        %v4526 = vrot.slane %v4463, 4
        %v4527 = vadd.f32 %v4463, %v4526
        %v4528 = vrot.slane %v4527, 2
        %v4529 = vadd.f32 %v4527, %v4528
        %v4530 = vrot.slane %v4529, 1
        %v4531 = vadd.f32 %v4529, %v4530
        %v4532 = vrot.slane %v4465, 4
        %v4533 = vadd.f32 %v4465, %v4532
        %v4534 = vrot.slane %v4533, 2
        %v4535 = vadd.f32 %v4533, %v4534
        %v4536 = vrot.slane %v4535, 1
        %v4537 = vadd.f32 %v4535, %v4536
        %v4538 = vrot.slane %v4467, 4
        %v4539 = vadd.f32 %v4467, %v4538
        %v4540 = vrot.slane %v4539, 2
        %v4541 = vadd.f32 %v4539, %v4540
        %v4542 = vrot.slane %v4541, 1
        %v4543 = vadd.f32 %v4541, %v4542
        %v4544 = vrot.slane %v4469, 4
        %v4545 = vadd.f32 %v4469, %v4544
        %v4546 = vrot.slane %v4545, 2
        %v4547 = vadd.f32 %v4545, %v4546
        %v4548 = vrot.slane %v4547, 1
        %v4549 = vadd.f32 %v4547, %v4548
        %v4550 = vrot.slane %v4471, 4
        %v4551 = vadd.f32 %v4471, %v4550
        %v4552 = vrot.slane %v4551, 2
        %v4553 = vadd.f32 %v4551, %v4552
        %v4554 = vrot.slane %v4553, 1
        %v4555 = vadd.f32 %v4553, %v4554
        %v4556 = vrot.slane %v4473, 4
        %v4557 = vadd.f32 %v4473, %v4556
        %v4558 = vrot.slane %v4557, 2
        %v4559 = vadd.f32 %v4557, %v4558
        %v4560 = vrot.slane %v4559, 1
        %v4561 = vadd.f32 %v4559, %v4560
        %v4562 = vrot.slane %v4475, 4
        %v4563 = vadd.f32 %v4475, %v4562
        %v4564 = vrot.slane %v4563, 2
        %v4565 = vadd.f32 %v4563, %v4564
        %v4566 = vrot.slane %v4565, 1
        %v4567 = vadd.f32 %v4565, %v4566
        %v4568 = vrot.slane %v4477, 4
        %v4569 = vadd.f32 %v4477, %v4568
        %v4570 = vrot.slane %v4569, 2
        %v4571 = vadd.f32 %v4569, %v4570
        %v4572 = vrot.slane %v4571, 1
        %v4573 = vadd.f32 %v4571, %v4572
        %v4574 = vmul.f32 %v4483, %v3316
        %v4575 = vmul.f32 %v4489, %v3316
        %v4576 = vmul.f32 %v4495, %v3316
        %v4577 = vmul.f32 %v4501, %v3316
        %v4578 = vmul.f32 %v4507, %v3316
        %v4579 = vmul.f32 %v4513, %v3316
        %v4580 = vmul.f32 %v4519, %v3316
        %v4581 = vmul.f32 %v4525, %v3316
        %v4582 = vmul.f32 %v4531, %v3316
        %v4583 = vmul.f32 %v4537, %v3316
        %v4584 = vmul.f32 %v4543, %v3316
        %v4585 = vmul.f32 %v4549, %v3316
        %v4586 = vmul.f32 %v4555, %v3316
        %v4587 = vmul.f32 %v4561, %v3316
        %v4588 = vmul.f32 %v4567, %v3316
        %v4589 = vmul.f32 %v4573, %v3316
        %v4590 = vsub.f32 %v4430, %v4574
        %v4591 = vsub.f32 %v4431, %v4575
        %v4592 = vsub.f32 %v4432, %v4576
        %v4593 = vsub.f32 %v4433, %v4577
        %v4594 = vsub.f32 %v4434, %v4578
        %v4595 = vsub.f32 %v4435, %v4579
        %v4596 = vsub.f32 %v4436, %v4580
        %v4597 = vsub.f32 %v4437, %v4581
        %v4598 = vsub.f32 %v4438, %v4582
        %v4599 = vsub.f32 %v4439, %v4583
        %v4600 = vsub.f32 %v4440, %v4584
        %v4601 = vsub.f32 %v4441, %v4585
        %v4602 = vsub.f32 %v4442, %v4586
        %v4603 = vsub.f32 %v4443, %v4587
        %v4604 = vsub.f32 %v4444, %v4588
        %v4605 = vsub.f32 %v4445, %v4589
        %v4606 = vmul.f32 %v4590, %v4590
        %v4607 = vmul.f32 %v4591, %v4591
        %v4608 = vmul.f32 %v4592, %v4592
        %v4609 = vmul.f32 %v4593, %v4593
        %v4610 = vmul.f32 %v4594, %v4594
        %v4611 = vmul.f32 %v4595, %v4595
        %v4612 = vmul.f32 %v4596, %v4596
        %v4613 = vmul.f32 %v4597, %v4597
        %v4614 = vmul.f32 %v4598, %v4598
        %v4615 = vmul.f32 %v4599, %v4599
        %v4616 = vmul.f32 %v4600, %v4600
        %v4617 = vmul.f32 %v4601, %v4601
        %v4618 = vmul.f32 %v4602, %v4602
        %v4619 = vmul.f32 %v4603, %v4603
        %v4620 = vmul.f32 %v4604, %v4604
        %v4621 = vmul.f32 %v4605, %v4605
        %4622 = vadd.xlane.f32.xlu0 %v4606
        %v4623 = vpop.xlane.xlu0 %4622
        %4624 = vadd.xlane.f32.xlu0 %v4607
        %v4625 = vpop.xlane.xlu0 %4624
        %4626 = vadd.xlane.f32.xlu0 %v4608
        %v4627 = vpop.xlane.xlu0 %4626
        %4628 = vadd.xlane.f32.xlu0 %v4609
        %v4629 = vpop.xlane.xlu0 %4628
        %4630 = vadd.xlane.f32.xlu0 %v4610
        %v4631 = vpop.xlane.xlu0 %4630
        %4632 = vadd.xlane.f32.xlu0 %v4611
        %v4633 = vpop.xlane.xlu0 %4632
        %4634 = vadd.xlane.f32.xlu0 %v4612
        %v4635 = vpop.xlane.xlu0 %4634
        %4636 = vadd.xlane.f32.xlu0 %v4613
        %v4637 = vpop.xlane.xlu0 %4636
        %4638 = vadd.xlane.f32.xlu0 %v4614
        %v4639 = vpop.xlane.xlu0 %4638
        %4640 = vadd.xlane.f32.xlu0 %v4615
        %v4641 = vpop.xlane.xlu0 %4640
        %4642 = vadd.xlane.f32.xlu0 %v4616
        %v4643 = vpop.xlane.xlu0 %4642
        %4644 = vadd.xlane.f32.xlu0 %v4617
        %v4645 = vpop.xlane.xlu0 %4644
        %4646 = vadd.xlane.f32.xlu0 %v4618
        %v4647 = vpop.xlane.xlu0 %4646
        %4648 = vadd.xlane.f32.xlu0 %v4619
        %v4649 = vpop.xlane.xlu0 %4648
        %4650 = vadd.xlane.f32.xlu0 %v4620
        %v4651 = vpop.xlane.xlu0 %4650
        %4652 = vadd.xlane.f32.xlu0 %v4621
        %v4653 = vpop.xlane.xlu0 %4652
        %v4654 = vrot.slane %v4623, 4
        %v4655 = vadd.f32 %v4623, %v4654
        %v4656 = vrot.slane %v4655, 2
        %v4657 = vadd.f32 %v4655, %v4656
        %v4658 = vrot.slane %v4657, 1
        %v4659 = vadd.f32 %v4657, %v4658
        %v4660 = vrot.slane %v4625, 4
        %v4661 = vadd.f32 %v4625, %v4660
        %v4662 = vrot.slane %v4661, 2
        %v4663 = vadd.f32 %v4661, %v4662
        %v4664 = vrot.slane %v4663, 1
        %v4665 = vadd.f32 %v4663, %v4664
        %v4666 = vrot.slane %v4627, 4
        %v4667 = vadd.f32 %v4627, %v4666
        %v4668 = vrot.slane %v4667, 2
        %v4669 = vadd.f32 %v4667, %v4668
        %v4670 = vrot.slane %v4669, 1
        %v4671 = vadd.f32 %v4669, %v4670
        %v4672 = vrot.slane %v4629, 4
        %v4673 = vadd.f32 %v4629, %v4672
        %v4674 = vrot.slane %v4673, 2
        %v4675 = vadd.f32 %v4673, %v4674
        %v4676 = vrot.slane %v4675, 1
        %v4677 = vadd.f32 %v4675, %v4676
        %v4678 = vrot.slane %v4631, 4
        %v4679 = vadd.f32 %v4631, %v4678
        %v4680 = vrot.slane %v4679, 2
        %v4681 = vadd.f32 %v4679, %v4680
        %v4682 = vrot.slane %v4681, 1
        %v4683 = vadd.f32 %v4681, %v4682
        %v4684 = vrot.slane %v4633, 4
        %v4685 = vadd.f32 %v4633, %v4684
        %v4686 = vrot.slane %v4685, 2
        %v4687 = vadd.f32 %v4685, %v4686
        %v4688 = vrot.slane %v4687, 1
        %v4689 = vadd.f32 %v4687, %v4688
        %v4690 = vrot.slane %v4635, 4
        %v4691 = vadd.f32 %v4635, %v4690
        %v4692 = vrot.slane %v4691, 2
        %v4693 = vadd.f32 %v4691, %v4692
        %v4694 = vrot.slane %v4693, 1
        %v4695 = vadd.f32 %v4693, %v4694
        %v4696 = vrot.slane %v4637, 4
        %v4697 = vadd.f32 %v4637, %v4696
        %v4698 = vrot.slane %v4697, 2
        %v4699 = vadd.f32 %v4697, %v4698
        %v4700 = vrot.slane %v4699, 1
        %v4701 = vadd.f32 %v4699, %v4700
        %v4702 = vrot.slane %v4639, 4
        %v4703 = vadd.f32 %v4639, %v4702
        %v4704 = vrot.slane %v4703, 2
        %v4705 = vadd.f32 %v4703, %v4704
        %v4706 = vrot.slane %v4705, 1
        %v4707 = vadd.f32 %v4705, %v4706
        %v4708 = vrot.slane %v4641, 4
        %v4709 = vadd.f32 %v4641, %v4708
        %v4710 = vrot.slane %v4709, 2
        %v4711 = vadd.f32 %v4709, %v4710
        %v4712 = vrot.slane %v4711, 1
        %v4713 = vadd.f32 %v4711, %v4712
        %v4714 = vrot.slane %v4643, 4
        %v4715 = vadd.f32 %v4643, %v4714
        %v4716 = vrot.slane %v4715, 2
        %v4717 = vadd.f32 %v4715, %v4716
        %v4718 = vrot.slane %v4717, 1
        %v4719 = vadd.f32 %v4717, %v4718
        %v4720 = vrot.slane %v4645, 4
        %v4721 = vadd.f32 %v4645, %v4720
        %v4722 = vrot.slane %v4721, 2
        %v4723 = vadd.f32 %v4721, %v4722
        %v4724 = vrot.slane %v4723, 1
        %v4725 = vadd.f32 %v4723, %v4724
        %v4726 = vrot.slane %v4647, 4
        %v4727 = vadd.f32 %v4647, %v4726
        %v4728 = vrot.slane %v4727, 2
        %v4729 = vadd.f32 %v4727, %v4728
        %v4730 = vrot.slane %v4729, 1
        %v4731 = vadd.f32 %v4729, %v4730
        %v4732 = vrot.slane %v4649, 4
        %v4733 = vadd.f32 %v4649, %v4732
        %v4734 = vrot.slane %v4733, 2
        %v4735 = vadd.f32 %v4733, %v4734
        %v4736 = vrot.slane %v4735, 1
        %v4737 = vadd.f32 %v4735, %v4736
        %v4738 = vrot.slane %v4651, 4
        %v4739 = vadd.f32 %v4651, %v4738
        %v4740 = vrot.slane %v4739, 2
        %v4741 = vadd.f32 %v4739, %v4740
        %v4742 = vrot.slane %v4741, 1
        %v4743 = vadd.f32 %v4741, %v4742
        %v4744 = vrot.slane %v4653, 4
        %v4745 = vadd.f32 %v4653, %v4744
        %v4746 = vrot.slane %v4745, 2
        %v4747 = vadd.f32 %v4745, %v4746
        %v4748 = vrot.slane %v4747, 1
        %v4749 = vadd.f32 %v4747, %v4748
        %v4750 = vmul.f32 %v4659, %v3316
        %v4751 = vmul.f32 %v4665, %v3316
        %v4752 = vmul.f32 %v4671, %v3316
        %v4753 = vmul.f32 %v4677, %v3316
        %v4754 = vmul.f32 %v4683, %v3316
        %v4755 = vmul.f32 %v4689, %v3316
        %v4756 = vmul.f32 %v4695, %v3316
        %v4757 = vmul.f32 %v4701, %v3316
        %v4758 = vmul.f32 %v4707, %v3316
        %v4759 = vmul.f32 %v4713, %v3316
        %v4760 = vmul.f32 %v4719, %v3316
        %v4761 = vmul.f32 %v4725, %v3316
        %v4762 = vmul.f32 %v4731, %v3316
        %v4763 = vmul.f32 %v4737, %v3316
        %v4764 = vmul.f32 %v4743, %v3316
        %v4765 = vmul.f32 %v4749, %v3316
        %v4766 = vadd.f32 %v4750, 1e-05
        %v4767 = vadd.f32 %v4751, 1e-05
        %v4768 = vadd.f32 %v4752, 1e-05
        %v4769 = vadd.f32 %v4753, 1e-05
        %v4770 = vadd.f32 %v4754, 1e-05
        %v4771 = vadd.f32 %v4755, 1e-05
        %v4772 = vadd.f32 %v4756, 1e-05
        %v4773 = vadd.f32 %v4757, 1e-05
        %v4774 = vadd.f32 %v4758, 1e-05
        %v4775 = vadd.f32 %v4759, 1e-05
        %v4776 = vadd.f32 %v4760, 1e-05
        %v4777 = vadd.f32 %v4761, 1e-05
        %v4778 = vadd.f32 %v4762, 1e-05
        %v4779 = vadd.f32 %v4763, 1e-05
        %v4780 = vadd.f32 %v4764, 1e-05
        %v4781 = vadd.f32 %v4765, 1e-05
        %v4782 = vrsqrt.pop %v4766
        %v4783 = vrsqrt.pop %v4767
        %v4784 = vrsqrt.pop %v4768
        %v4785 = vrsqrt.pop %v4769
        %v4786 = vrsqrt.pop %v4770
        %v4787 = vrsqrt.pop %v4771
        %v4788 = vrsqrt.pop %v4772
        %v4789 = vrsqrt.pop %v4773
        %v4790 = vrsqrt.pop %v4774
        %v4791 = vrsqrt.pop %v4775
        %v4792 = vrsqrt.pop %v4776
        %v4793 = vrsqrt.pop %v4777
        %v4794 = vrsqrt.pop %v4778
        %v4795 = vrsqrt.pop %v4779
        %v4796 = vrsqrt.pop %v4780
        %v4797 = vrsqrt.pop %v4781
        %v4798 = vmul.f32 %v4590, %v4782
        %v4799 = vmul.f32 %v4591, %v4783
        %v4800 = vmul.f32 %v4592, %v4784
        %v4801 = vmul.f32 %v4593, %v4785
        %v4802 = vmul.f32 %v4594, %v4786
        %v4803 = vmul.f32 %v4595, %v4787
        %v4804 = vmul.f32 %v4596, %v4788
        %v4805 = vmul.f32 %v4597, %v4789
        %v4806 = vmul.f32 %v4598, %v4790
        %v4807 = vmul.f32 %v4599, %v4791
        %v4808 = vmul.f32 %v4600, %v4792
        %v4809 = vmul.f32 %v4601, %v4793
        %v4810 = vmul.f32 %v4602, %v4794
        %v4811 = vmul.f32 %v4603, %v4795
        %v4812 = vmul.f32 %v4604, %v4796
        %v4813 = vmul.f32 %v4605, %v4797
        %v4814 = vmul.f32 %v4798, %v3590
        %v4815 = vmul.f32 %v4799, %v3590
        %v4816 = vmul.f32 %v4800, %v3590
        %v4817 = vmul.f32 %v4801, %v3590
        %v4818 = vmul.f32 %v4802, %v3590
        %v4819 = vmul.f32 %v4803, %v3590
        %v4820 = vmul.f32 %v4804, %v3590
        %v4821 = vmul.f32 %v4805, %v3590
        %v4822 = vmul.f32 %v4806, %v3590
        %v4823 = vmul.f32 %v4807, %v3590
        %v4824 = vmul.f32 %v4808, %v3590
        %v4825 = vmul.f32 %v4809, %v3590
        %v4826 = vmul.f32 %v4810, %v3590
        %v4827 = vmul.f32 %v4811, %v3590
        %v4828 = vmul.f32 %v4812, %v3590
        %v4829 = vmul.f32 %v4813, %v3590
        %v4830 = vadd.f32 %v4814, %v3591
        %v4831 = vadd.f32 %v4815, %v3591
        %v4832 = vadd.f32 %v4816, %v3591
        %v4833 = vadd.f32 %v4817, %v3591
        %v4834 = vadd.f32 %v4818, %v3591
        %v4835 = vadd.f32 %v4819, %v3591
        %v4836 = vadd.f32 %v4820, %v3591
        %v4837 = vadd.f32 %v4821, %v3591
        %v4838 = vadd.f32 %v4822, %v3591
        %v4839 = vadd.f32 %v4823, %v3591
        %v4840 = vadd.f32 %v4824, %v3591
        %v4841 = vadd.f32 %v4825, %v3591
        %v4842 = vadd.f32 %v4826, %v3591
        %v4843 = vadd.f32 %v4827, %v3591
        %v4844 = vadd.f32 %v4828, %v3591
        %v4845 = vadd.f32 %v4829, %v3591
        %v4846 = vld [vmem:[#allocation13] sm:$0xff]
        %v4847 = vld [vmem:[#allocation13 + $0x8] sm:$0xff]
        %v4848 = vld [vmem:[#allocation13 + $0x10] sm:$0xff]
        %v4849 = vld [vmem:[#allocation13 + $0x18] sm:$0xff]
        %v4850 = vld [vmem:[#allocation13 + $0x20] sm:$0xff]
        %v4851 = vld [vmem:[#allocation13 + $0x28] sm:$0xff]
        %v4852 = vld [vmem:[#allocation13 + $0x30] sm:$0xff]
        %v4853 = vld [vmem:[#allocation13 + $0x38] sm:$0xff]
        %v4854 = vld [vmem:[#allocation13 + $0x40] sm:$0xff]
        %v4855 = vld [vmem:[#allocation13 + $0x48] sm:$0xff]
        %v4856 = vld [vmem:[#allocation13 + $0x50] sm:$0xff]
        %v4857 = vld [vmem:[#allocation13 + $0x58] sm:$0xff]
        %v4858 = vld [vmem:[#allocation13 + $0x60] sm:$0xff]
        %v4859 = vld [vmem:[#allocation13 + $0x68] sm:$0xff]
        %v4860 = vld [vmem:[#allocation13 + $0x70] sm:$0xff]
        %v4861 = vld [vmem:[#allocation13 + $0x78] sm:$0xff]
        %v4862 = vlaneseq
        %v4863 = vshrl.u32 %v4862, 7
        %v4864 = vsub.s32 0, %v4863
        %v4865 = vrot.slane %v3592, %v4864
        %4866 = vmatprep.subr.mxu0 0.0
        %4867 = vmatpush1.msra.mxu0 %v4846
        %4868 = vmatprep.subr.mxu0 0.0
        %4869 = vmatpush1.msra.mxu0 %v4847
        %4870 = vmatprep.subr.mxu0 0.0
        %4871 = vmatpush1.msra.mxu0 %v4848
        %4872 = vmatprep.subr.mxu0 0.0
        %4873 = vmatpush1.msra.mxu0 %v4849
        %4874 = vmatprep.subr.mxu0 0.0
        %4875 = vmatpush1.msra.mxu0 %v4850
        %4876 = vmatprep.subr.mxu0 0.0
        %4877 = vmatpush1.msra.mxu0 %v4851
        %4878 = vmatprep.subr.mxu0 0.0
        %4879 = vmatpush1.msra.mxu0 %v4852
        %4880 = vmatprep.subr.mxu0 0.0
        %4881 = vmatpush1.msra.mxu0 %v4853
        %4882 = vmatprep.subr.mxu0 0.0
        %4883 = vmatpush1.msra.mxu0 %v4854
        %4884 = vmatprep.subr.mxu0 0.0
        %4885 = vmatpush1.msra.mxu0 %v4855
        %4886 = vmatprep.subr.mxu0 0.0
        %4887 = vmatpush1.msra.mxu0 %v4856
        %4888 = vmatprep.subr.mxu0 0.0
        %4889 = vmatpush1.msra.mxu0 %v4857
        %4890 = vmatprep.subr.mxu0 0.0
        %4891 = vmatpush1.msra.mxu0 %v4858
        %4892 = vmatprep.subr.mxu0 0.0
        %4893 = vmatpush1.msra.mxu0 %v4859
        %4894 = vmatprep.subr.mxu0 0.0
        %4895 = vmatpush1.msra.mxu0 %v4860
        %4896 = vmatprep.subr.mxu0 0.0
        %4897 = vmatpush1.msra.mxu0 %v4861
        %4898 = vmatprep.subr.mxu0 0.0
        %4899 = vmatpush1.msra.mxu0 0.0
        %4900 = vmatprep.subr.mxu0 0.0
        %4901 = vmatpush1.msra.mxu0 0.0
        %4902 = vmatprep.subr.mxu0 0.0
        %4903 = vmatpush1.msra.mxu0 0.0
        %4904 = vmatprep.subr.mxu0 0.0
        %4905 = vmatpush1.msra.mxu0 0.0
        %4906 = vmatprep.subr.mxu0 0.0
        %4907 = vmatpush1.msra.mxu0 0.0
        %4908 = vmatprep.subr.mxu0 0.0
        %4909 = vmatpush1.msra.mxu0 0.0
        %4910 = vmatprep.subr.mxu0 0.0
        %4911 = vmatpush1.msra.mxu0 0.0
        %4912 = vmatprep.subr.mxu0 0.0
        %4913 = vmatpush1.msra.mxu0 0.0
        %4914 = vmatprep.subr.mxu0 0.0
        %4915 = vmatpush1.msra.mxu0 0.0
        %4916 = vmatprep.subr.mxu0 0.0
        %4917 = vmatpush1.msra.mxu0 0.0
        %4918 = vmatprep.subr.mxu0 0.0
        %4919 = vmatpush1.msra.mxu0 0.0
        %4920 = vmatprep.subr.mxu0 0.0
        %4921 = vmatpush1.msra.mxu0 0.0
        %4922 = vmatprep.subr.mxu0 0.0
        %4923 = vmatpush1.msra.mxu0 0.0
        %4924 = vmatprep.subr.mxu0 0.0
        %4925 = vmatpush1.msra.mxu0 0.0
        %4926 = vmatprep.subr.mxu0 0.0
        %4927 = vmatpush1.msra.mxu0 0.0
        %4928 = vmatprep.subr.mxu0 0.0
        %4929 = vmatpush1.msra.mxu0 0.0
        %4930 = vmatprep.mubr.f32.mxu0 0.0
        %4931 = vmatmul.mubr.f32.gmra.mrb[0].mxu0 %v4830
        %v4932 = vpop.f32.mrb[0].mxu0
        %v4933 = vadd.f32 %v4865, %v4932
        %v4934 = vpop.f32.mrb[0].mxu0
        %4935 = vmatprep.mubr.f32.mxu0 0.0
        %4936 = vmatmul.mubr.f32.gmra.mrb[0].mxu0 %v4831
        %v4937 = vpop.f32.mrb[0].mxu0
        %v4938 = vadd.f32 %v4865, %v4937
        %v4939 = vpop.f32.mrb[0].mxu0
        %4940 = vmatprep.mubr.f32.mxu0 0.0
        %4941 = vmatmul.mubr.f32.gmra.mrb[0].mxu0 %v4832
        %v4942 = vpop.f32.mrb[0].mxu0
        %v4943 = vadd.f32 %v4865, %v4942
        %v4944 = vpop.f32.mrb[0].mxu0
        %4945 = vmatprep.mubr.f32.mxu0 0.0
        %4946 = vmatmul.mubr.f32.gmra.mrb[0].mxu0 %v4833
        %v4947 = vpop.f32.mrb[0].mxu0
        %v4948 = vadd.f32 %v4865, %v4947
        %v4949 = vpop.f32.mrb[0].mxu0
        %4950 = vmatprep.mubr.f32.mxu0 0.0
        %4951 = vmatmul.mubr.f32.gmra.mrb[0].mxu0 %v4834
        %v4952 = vpop.f32.mrb[0].mxu0
        %v4953 = vadd.f32 %v4865, %v4952
        %v4954 = vpop.f32.mrb[0].mxu0
        %4955 = vmatprep.mubr.f32.mxu0 0.0
        %4956 = vmatmul.mubr.f32.gmra.mrb[0].mxu0 %v4835
        %v4957 = vpop.f32.mrb[0].mxu0
        %v4958 = vadd.f32 %v4865, %v4957
        %v4959 = vpop.f32.mrb[0].mxu0
        %4960 = vmatprep.mubr.f32.mxu0 0.0
        %4961 = vmatmul.mubr.f32.gmra.mrb[0].mxu0 %v4836
        %v4962 = vpop.f32.mrb[0].mxu0
        %v4963 = vadd.f32 %v4865, %v4962
        %v4964 = vpop.f32.mrb[0].mxu0
        %4965 = vmatprep.mubr.f32.mxu0 0.0
        %4966 = vmatmul.mubr.f32.gmra.mrb[0].mxu0 %v4837
        %v4967 = vpop.f32.mrb[0].mxu0
        %v4968 = vadd.f32 %v4865, %v4967
        %v4969 = vpop.f32.mrb[0].mxu0
        %4970 = vmatprep.mubr.f32.mxu0 0.0
        %4971 = vmatmul.mubr.f32.gmra.mrb[0].mxu0 %v4838
        %v4972 = vpop.f32.mrb[0].mxu0
        %v4973 = vadd.f32 %v4865, %v4972
        %v4974 = vpop.f32.mrb[0].mxu0
        %4975 = vmatprep.mubr.f32.mxu0 0.0
        %4976 = vmatmul.mubr.f32.gmra.mrb[0].mxu0 %v4839
        %v4977 = vpop.f32.mrb[0].mxu0
        %v4978 = vadd.f32 %v4865, %v4977
        %v4979 = vpop.f32.mrb[0].mxu0
        %4980 = vmatprep.mubr.f32.mxu0 0.0
        %4981 = vmatmul.mubr.f32.gmra.mrb[0].mxu0 %v4840
        %v4982 = vpop.f32.mrb[0].mxu0
        %v4983 = vadd.f32 %v4865, %v4982
        %v4984 = vpop.f32.mrb[0].mxu0
        %4985 = vmatprep.mubr.f32.mxu0 0.0
        %4986 = vmatmul.mubr.f32.gmra.mrb[0].mxu0 %v4841
        %v4987 = vpop.f32.mrb[0].mxu0
        %v4988 = vadd.f32 %v4865, %v4987
        %v4989 = vpop.f32.mrb[0].mxu0
        %4990 = vmatprep.mubr.f32.mxu0 0.0
        %4991 = vmatmul.mubr.f32.gmra.mrb[0].mxu0 %v4842
        %v4992 = vpop.f32.mrb[0].mxu0
        %v4993 = vadd.f32 %v4865, %v4992
        %v4994 = vpop.f32.mrb[0].mxu0
        %4995 = vmatprep.mubr.f32.mxu0 0.0
        %4996 = vmatmul.mubr.f32.gmra.mrb[0].mxu0 %v4843
        %v4997 = vpop.f32.mrb[0].mxu0
        %v4998 = vadd.f32 %v4865, %v4997
        %v4999 = vpop.f32.mrb[0].mxu0
        %5000 = vmatprep.mubr.f32.mxu0 0.0
        %5001 = vmatmul.mubr.f32.gmra.mrb[0].mxu0 %v4844
        %v5002 = vpop.f32.mrb[0].mxu0
        %v5003 = vadd.f32 %v4865, %v5002
        %v5004 = vpop.f32.mrb[0].mxu0
        %5005 = vmatprep.mubr.f32.mxu0 0.0
        %5006 = vmatmul.mubr.f32.gmra.mrb[0].mxu0 %v4845
        %v5007 = vpop.f32.mrb[0].mxu0
        %v5008 = vadd.f32 %v4865, %v5007
        %v5009 = vpop.f32.mrb[0].mxu0
        %5010 = vdwg.mxu0
        %v5011 = vmax.f32 %v4933, 0.0
        %v5012 = vmax.f32 %v4938, 0.0
        %v5013 = vmax.f32 %v4943, 0.0
        %v5014 = vmax.f32 %v4948, 0.0
        %v5015 = vmax.f32 %v4953, 0.0
        %v5016 = vmax.f32 %v4958, 0.0
        %v5017 = vmax.f32 %v4963, 0.0
        %v5018 = vmax.f32 %v4968, 0.0
        %v5019 = vmax.f32 %v4973, 0.0
        %v5020 = vmax.f32 %v4978, 0.0
        %v5021 = vmax.f32 %v4983, 0.0
        %v5022 = vmax.f32 %v4988, 0.0
        %v5023 = vmax.f32 %v4993, 0.0
        %v5024 = vmax.f32 %v4998, 0.0
        %v5025 = vmax.f32 %v5003, 0.0
        %v5026 = vmax.f32 %v5008, 0.0
        %v5027 = vld [vmem:[#allocation14] sm:$0xff]
        %v5028 = vld [vmem:[#allocation14 + $0x8] sm:$0xff]
        %v5029 = vld [vmem:[#allocation14 + $0x10] sm:$0xff]
        %v5030 = vld [vmem:[#allocation14 + $0x18] sm:$0xff]
        %v5031 = vld [vmem:[#allocation14 + $0x20] sm:$0xff]
        %v5032 = vld [vmem:[#allocation14 + $0x28] sm:$0xff]
        %v5033 = vld [vmem:[#allocation14 + $0x30] sm:$0xff]
        %v5034 = vld [vmem:[#allocation14 + $0x38] sm:$0xff]
        %v5035 = vld [vmem:[#allocation14 + $0x40] sm:$0xff]
        %v5036 = vld [vmem:[#allocation14 + $0x48] sm:$0xff]
        %v5037 = vld [vmem:[#allocation14 + $0x50] sm:$0xff]
        %v5038 = vld [vmem:[#allocation14 + $0x58] sm:$0xff]
        %v5039 = vld [vmem:[#allocation14 + $0x60] sm:$0xff]
        %v5040 = vld [vmem:[#allocation14 + $0x68] sm:$0xff]
        %v5041 = vld [vmem:[#allocation14 + $0x70] sm:$0xff]
        %v5042 = vld [vmem:[#allocation14 + $0x78] sm:$0xff]
        %5043 = vmatprep.subr.mxu0 0.0
        %5044 = vmatpush1.msra.mxu0 %v5027
        %5045 = vmatprep.subr.mxu0 0.0
        %5046 = vmatpush1.msra.mxu0 %v5028
        %5047 = vmatprep.subr.mxu0 0.0
        %5048 = vmatpush1.msra.mxu0 %v5029
        %5049 = vmatprep.subr.mxu0 0.0
        %5050 = vmatpush1.msra.mxu0 %v5030
        %5051 = vmatprep.subr.mxu0 0.0
        %5052 = vmatpush1.msra.mxu0 %v5031
        %5053 = vmatprep.subr.mxu0 0.0
        %5054 = vmatpush1.msra.mxu0 %v5032
        %5055 = vmatprep.subr.mxu0 0.0
        %5056 = vmatpush1.msra.mxu0 %v5033
        %5057 = vmatprep.subr.mxu0 0.0
        %5058 = vmatpush1.msra.mxu0 %v5034
        %5059 = vmatprep.subr.mxu0 0.0
        %5060 = vmatpush1.msra.mxu0 %v5035
        %5061 = vmatprep.subr.mxu0 0.0
        %5062 = vmatpush1.msra.mxu0 %v5036
        %5063 = vmatprep.subr.mxu0 0.0
        %5064 = vmatpush1.msra.mxu0 %v5037
        %5065 = vmatprep.subr.mxu0 0.0
        %5066 = vmatpush1.msra.mxu0 %v5038
        %5067 = vmatprep.subr.mxu0 0.0
        %5068 = vmatpush1.msra.mxu0 %v5039
        %5069 = vmatprep.subr.mxu0 0.0
        %5070 = vmatpush1.msra.mxu0 %v5040
        %5071 = vmatprep.subr.mxu0 0.0
        %5072 = vmatpush1.msra.mxu0 %v5041
        %5073 = vmatprep.subr.mxu0 0.0
        %5074 = vmatpush1.msra.mxu0 %v5042
        %5075 = vmatprep.subr.mxu0 0.0
        %5076 = vmatpush1.msra.mxu0 0.0
        %5077 = vmatprep.subr.mxu0 0.0
        %5078 = vmatpush1.msra.mxu0 0.0
        %5079 = vmatprep.subr.mxu0 0.0
        %5080 = vmatpush1.msra.mxu0 0.0
        %5081 = vmatprep.subr.mxu0 0.0
        %5082 = vmatpush1.msra.mxu0 0.0
        %5083 = vmatprep.subr.mxu0 0.0
        %5084 = vmatpush1.msra.mxu0 0.0
        %5085 = vmatprep.subr.mxu0 0.0
        %5086 = vmatpush1.msra.mxu0 0.0
        %5087 = vmatprep.subr.mxu0 0.0
        %5088 = vmatpush1.msra.mxu0 0.0
        %5089 = vmatprep.subr.mxu0 0.0
        %5090 = vmatpush1.msra.mxu0 0.0
        %5091 = vmatprep.subr.mxu0 0.0
        %5092 = vmatpush1.msra.mxu0 0.0
        %5093 = vmatprep.subr.mxu0 0.0
        %5094 = vmatpush1.msra.mxu0 0.0
        %5095 = vmatprep.subr.mxu0 0.0
        %5096 = vmatpush1.msra.mxu0 0.0
        %5097 = vmatprep.subr.mxu0 0.0
        %5098 = vmatpush1.msra.mxu0 0.0
        %5099 = vmatprep.subr.mxu0 0.0
        %5100 = vmatpush1.msra.mxu0 0.0
        %5101 = vmatprep.subr.mxu0 0.0
        %5102 = vmatpush1.msra.mxu0 0.0
        %5103 = vmatprep.subr.mxu0 0.0
        %5104 = vmatpush1.msra.mxu0 0.0
        %5105 = vmatprep.subr.mxu0 0.0
        %5106 = vmatpush1.msra.mxu0 0.0
        %5107 = vmatprep.mubr.f32.mxu0 0.0
        %5108 = vmatmul.mubr.f32.gmra.mrb[0].mxu0 %v5011
        %v5109 = vpop.f32.mrb[0].mxu0
        %v5110 = vadd.f32 0.0, %v5109
        %v5111 = vpop.f32.mrb[0].mxu0
        %5112 = vmatprep.mubr.f32.mxu0 0.0
        %5113 = vmatmul.mubr.f32.gmra.mrb[0].mxu0 %v5012
        %v5114 = vpop.f32.mrb[0].mxu0
        %v5115 = vadd.f32 0.0, %v5114
        %v5116 = vpop.f32.mrb[0].mxu0
        %5117 = vmatprep.mubr.f32.mxu0 0.0
        %5118 = vmatmul.mubr.f32.gmra.mrb[0].mxu0 %v5013
        %v5119 = vpop.f32.mrb[0].mxu0
        %v5120 = vadd.f32 0.0, %v5119
        %v5121 = vpop.f32.mrb[0].mxu0
        %5122 = vmatprep.mubr.f32.mxu0 0.0
        %5123 = vmatmul.mubr.f32.gmra.mrb[0].mxu0 %v5014
        %v5124 = vpop.f32.mrb[0].mxu0
        %v5125 = vadd.f32 0.0, %v5124
        %v5126 = vpop.f32.mrb[0].mxu0
        %5127 = vmatprep.mubr.f32.mxu0 0.0
        %5128 = vmatmul.mubr.f32.gmra.mrb[0].mxu0 %v5015
        %v5129 = vpop.f32.mrb[0].mxu0
        %v5130 = vadd.f32 0.0, %v5129
        %v5131 = vpop.f32.mrb[0].mxu0
        %5132 = vmatprep.mubr.f32.mxu0 0.0
        %5133 = vmatmul.mubr.f32.gmra.mrb[0].mxu0 %v5016
        %v5134 = vpop.f32.mrb[0].mxu0
        %v5135 = vadd.f32 0.0, %v5134
        %v5136 = vpop.f32.mrb[0].mxu0
        %5137 = vmatprep.mubr.f32.mxu0 0.0
        %5138 = vmatmul.mubr.f32.gmra.mrb[0].mxu0 %v5017
        %v5139 = vpop.f32.mrb[0].mxu0
        %v5140 = vadd.f32 0.0, %v5139
        %v5141 = vpop.f32.mrb[0].mxu0
        %5142 = vmatprep.mubr.f32.mxu0 0.0
        %5143 = vmatmul.mubr.f32.gmra.mrb[0].mxu0 %v5018
        %v5144 = vpop.f32.mrb[0].mxu0
        %v5145 = vadd.f32 0.0, %v5144
        %v5146 = vpop.f32.mrb[0].mxu0
        %5147 = vmatprep.mubr.f32.mxu0 0.0
        %5148 = vmatmul.mubr.f32.gmra.mrb[0].mxu0 %v5019
        %v5149 = vpop.f32.mrb[0].mxu0
        %v5150 = vadd.f32 0.0, %v5149
        %v5151 = vpop.f32.mrb[0].mxu0
        %5152 = vmatprep.mubr.f32.mxu0 0.0
        %5153 = vmatmul.mubr.f32.gmra.mrb[0].mxu0 %v5020
        %v5154 = vpop.f32.mrb[0].mxu0
        %v5155 = vadd.f32 0.0, %v5154
        %v5156 = vpop.f32.mrb[0].mxu0
        %5157 = vmatprep.mubr.f32.mxu0 0.0
        %5158 = vmatmul.mubr.f32.gmra.mrb[0].mxu0 %v5021
        %v5159 = vpop.f32.mrb[0].mxu0
        %v5160 = vadd.f32 0.0, %v5159
        %v5161 = vpop.f32.mrb[0].mxu0
        %5162 = vmatprep.mubr.f32.mxu0 0.0
        %5163 = vmatmul.mubr.f32.gmra.mrb[0].mxu0 %v5022
        %v5164 = vpop.f32.mrb[0].mxu0
        %v5165 = vadd.f32 0.0, %v5164
        %v5166 = vpop.f32.mrb[0].mxu0
        %5167 = vmatprep.mubr.f32.mxu0 0.0
        %5168 = vmatmul.mubr.f32.gmra.mrb[0].mxu0 %v5023
        %v5169 = vpop.f32.mrb[0].mxu0
        %v5170 = vadd.f32 0.0, %v5169
        %v5171 = vpop.f32.mrb[0].mxu0
        %5172 = vmatprep.mubr.f32.mxu0 0.0
        %5173 = vmatmul.mubr.f32.gmra.mrb[0].mxu0 %v5024
        %v5174 = vpop.f32.mrb[0].mxu0
        %v5175 = vadd.f32 0.0, %v5174
        %v5176 = vpop.f32.mrb[0].mxu0
        %5177 = vmatprep.mubr.f32.mxu0 0.0
        %5178 = vmatmul.mubr.f32.gmra.mrb[0].mxu0 %v5025
        %v5179 = vpop.f32.mrb[0].mxu0
        %v5180 = vadd.f32 0.0, %v5179
        %v5181 = vpop.f32.mrb[0].mxu0
        %5182 = vmatprep.mubr.f32.mxu0 0.0
        %5183 = vmatmul.mubr.f32.gmra.mrb[0].mxu0 %v5026
        %v5184 = vpop.f32.mrb[0].mxu0
        %v5185 = vadd.f32 0.0, %v5184
        %v5186 = vpop.f32.mrb[0].mxu0
        %5187 = vdwg.mxu0
        %v5188 = vadd.f32 %v4830, %v5110
        %v5189 = vadd.f32 %v4831, %v5115
        %v5190 = vadd.f32 %v4832, %v5120
        %v5191 = vadd.f32 %v4833, %v5125
        %v5192 = vadd.f32 %v4834, %v5130
        %v5193 = vadd.f32 %v4835, %v5135
        %v5194 = vadd.f32 %v4836, %v5140
        %v5195 = vadd.f32 %v4837, %v5145
        %v5196 = vadd.f32 %v4838, %v5150
        %v5197 = vadd.f32 %v4839, %v5155
        %v5198 = vadd.f32 %v4840, %v5160
        %v5199 = vadd.f32 %v4841, %v5165
        %v5200 = vadd.f32 %v4842, %v5170
        %v5201 = vadd.f32 %v4843, %v5175
        %v5202 = vadd.f32 %v4844, %v5180
        %v5203 = vadd.f32 %v4845, %v5185
        %v5204 = vadd.f32 %v5188, %v3593
        %v5205 = vadd.f32 %v5189, %v3593
        %v5206 = vadd.f32 %v5190, %v3593
        %v5207 = vadd.f32 %v5191, %v3593
        %v5208 = vadd.f32 %v5192, %v3593
        %v5209 = vadd.f32 %v5193, %v3593
        %v5210 = vadd.f32 %v5194, %v3593
        %v5211 = vadd.f32 %v5195, %v3593
        %v5212 = vadd.f32 %v5196, %v3593
        %v5213 = vadd.f32 %v5197, %v3593
        %v5214 = vadd.f32 %v5198, %v3593
        %v5215 = vadd.f32 %v5199, %v3593
        %v5216 = vadd.f32 %v5200, %v3593
        %v5217 = vadd.f32 %v5201, %v3593
        %v5218 = vadd.f32 %v5202, %v3593
        %v5219 = vadd.f32 %v5203, %v3593
        %5220 = vadd.xlane.f32.xlu0 %v5204
        %v5221 = vpop.xlane.xlu0 %5220
        %5222 = vadd.xlane.f32.xlu0 %v5205
        %v5223 = vpop.xlane.xlu0 %5222
        %5224 = vadd.xlane.f32.xlu0 %v5206
        %v5225 = vpop.xlane.xlu0 %5224
        %5226 = vadd.xlane.f32.xlu0 %v5207
        %v5227 = vpop.xlane.xlu0 %5226
        %5228 = vadd.xlane.f32.xlu0 %v5208
        %v5229 = vpop.xlane.xlu0 %5228
        %5230 = vadd.xlane.f32.xlu0 %v5209
        %v5231 = vpop.xlane.xlu0 %5230
        %5232 = vadd.xlane.f32.xlu0 %v5210
        %v5233 = vpop.xlane.xlu0 %5232
        %5234 = vadd.xlane.f32.xlu0 %v5211
        %v5235 = vpop.xlane.xlu0 %5234
        %5236 = vadd.xlane.f32.xlu0 %v5212
        %v5237 = vpop.xlane.xlu0 %5236
        %5238 = vadd.xlane.f32.xlu0 %v5213
        %v5239 = vpop.xlane.xlu0 %5238
        %5240 = vadd.xlane.f32.xlu0 %v5214
        %v5241 = vpop.xlane.xlu0 %5240
        %5242 = vadd.xlane.f32.xlu0 %v5215
        %v5243 = vpop.xlane.xlu0 %5242
        %5244 = vadd.xlane.f32.xlu0 %v5216
        %v5245 = vpop.xlane.xlu0 %5244
        %5246 = vadd.xlane.f32.xlu0 %v5217
        %v5247 = vpop.xlane.xlu0 %5246
        %5248 = vadd.xlane.f32.xlu0 %v5218
        %v5249 = vpop.xlane.xlu0 %5248
        %5250 = vadd.xlane.f32.xlu0 %v5219
        %v5251 = vpop.xlane.xlu0 %5250
        %v5252 = vrot.slane %v5221, 4
        %v5253 = vadd.f32 %v5221, %v5252
        %v5254 = vrot.slane %v5253, 2
        %v5255 = vadd.f32 %v5253, %v5254
        %v5256 = vrot.slane %v5255, 1
        %v5257 = vadd.f32 %v5255, %v5256
        %v5258 = vrot.slane %v5223, 4
        %v5259 = vadd.f32 %v5223, %v5258
        %v5260 = vrot.slane %v5259, 2
        %v5261 = vadd.f32 %v5259, %v5260
        %v5262 = vrot.slane %v5261, 1
        %v5263 = vadd.f32 %v5261, %v5262
        %v5264 = vrot.slane %v5225, 4
        %v5265 = vadd.f32 %v5225, %v5264
        %v5266 = vrot.slane %v5265, 2
        %v5267 = vadd.f32 %v5265, %v5266
        %v5268 = vrot.slane %v5267, 1
        %v5269 = vadd.f32 %v5267, %v5268
        %v5270 = vrot.slane %v5227, 4
        %v5271 = vadd.f32 %v5227, %v5270
        %v5272 = vrot.slane %v5271, 2
        %v5273 = vadd.f32 %v5271, %v5272
        %v5274 = vrot.slane %v5273, 1
        %v5275 = vadd.f32 %v5273, %v5274
        %v5276 = vrot.slane %v5229, 4
        %v5277 = vadd.f32 %v5229, %v5276
        %v5278 = vrot.slane %v5277, 2
        %v5279 = vadd.f32 %v5277, %v5278
        %v5280 = vrot.slane %v5279, 1
        %v5281 = vadd.f32 %v5279, %v5280
        %v5282 = vrot.slane %v5231, 4
        %v5283 = vadd.f32 %v5231, %v5282
        %v5284 = vrot.slane %v5283, 2
        %v5285 = vadd.f32 %v5283, %v5284
        %v5286 = vrot.slane %v5285, 1
        %v5287 = vadd.f32 %v5285, %v5286
        %v5288 = vrot.slane %v5233, 4
        %v5289 = vadd.f32 %v5233, %v5288
        %v5290 = vrot.slane %v5289, 2
        %v5291 = vadd.f32 %v5289, %v5290
        %v5292 = vrot.slane %v5291, 1
        %v5293 = vadd.f32 %v5291, %v5292
        %v5294 = vrot.slane %v5235, 4
        %v5295 = vadd.f32 %v5235, %v5294
        %v5296 = vrot.slane %v5295, 2
        %v5297 = vadd.f32 %v5295, %v5296
        %v5298 = vrot.slane %v5297, 1
        %v5299 = vadd.f32 %v5297, %v5298
        %v5300 = vrot.slane %v5237, 4
        %v5301 = vadd.f32 %v5237, %v5300
        %v5302 = vrot.slane %v5301, 2
        %v5303 = vadd.f32 %v5301, %v5302
        %v5304 = vrot.slane %v5303, 1
        %v5305 = vadd.f32 %v5303, %v5304
        %v5306 = vrot.slane %v5239, 4
        %v5307 = vadd.f32 %v5239, %v5306
        %v5308 = vrot.slane %v5307, 2
        %v5309 = vadd.f32 %v5307, %v5308
        %v5310 = vrot.slane %v5309, 1
        %v5311 = vadd.f32 %v5309, %v5310
        %v5312 = vrot.slane %v5241, 4
        %v5313 = vadd.f32 %v5241, %v5312
        %v5314 = vrot.slane %v5313, 2
        %v5315 = vadd.f32 %v5313, %v5314
        %v5316 = vrot.slane %v5315, 1
        %v5317 = vadd.f32 %v5315, %v5316
        %v5318 = vrot.slane %v5243, 4
        %v5319 = vadd.f32 %v5243, %v5318
        %v5320 = vrot.slane %v5319, 2
        %v5321 = vadd.f32 %v5319, %v5320
        %v5322 = vrot.slane %v5321, 1
        %v5323 = vadd.f32 %v5321, %v5322
        %v5324 = vrot.slane %v5245, 4
        %v5325 = vadd.f32 %v5245, %v5324
        %v5326 = vrot.slane %v5325, 2
        %v5327 = vadd.f32 %v5325, %v5326
        %v5328 = vrot.slane %v5327, 1
        %v5329 = vadd.f32 %v5327, %v5328
        %v5330 = vrot.slane %v5247, 4
        %v5331 = vadd.f32 %v5247, %v5330
        %v5332 = vrot.slane %v5331, 2
        %v5333 = vadd.f32 %v5331, %v5332
        %v5334 = vrot.slane %v5333, 1
        %v5335 = vadd.f32 %v5333, %v5334
        %v5336 = vrot.slane %v5249, 4
        %v5337 = vadd.f32 %v5249, %v5336
        %v5338 = vrot.slane %v5337, 2
        %v5339 = vadd.f32 %v5337, %v5338
        %v5340 = vrot.slane %v5339, 1
        %v5341 = vadd.f32 %v5339, %v5340
        %v5342 = vrot.slane %v5251, 4
        %v5343 = vadd.f32 %v5251, %v5342
        %v5344 = vrot.slane %v5343, 2
        %v5345 = vadd.f32 %v5343, %v5344
        %v5346 = vrot.slane %v5345, 1
        %v5347 = vadd.f32 %v5345, %v5346
        %v5348 = vmul.f32 %v5257, %v3316
        %v5349 = vmul.f32 %v5263, %v3316
        %v5350 = vmul.f32 %v5269, %v3316
        %v5351 = vmul.f32 %v5275, %v3316
        %v5352 = vmul.f32 %v5281, %v3316
        %v5353 = vmul.f32 %v5287, %v3316
        %v5354 = vmul.f32 %v5293, %v3316
        %v5355 = vmul.f32 %v5299, %v3316
        %v5356 = vmul.f32 %v5305, %v3316
        %v5357 = vmul.f32 %v5311, %v3316
        %v5358 = vmul.f32 %v5317, %v3316
        %v5359 = vmul.f32 %v5323, %v3316
        %v5360 = vmul.f32 %v5329, %v3316
        %v5361 = vmul.f32 %v5335, %v3316
        %v5362 = vmul.f32 %v5341, %v3316
        %v5363 = vmul.f32 %v5347, %v3316
        %v5364 = vsub.f32 %v5204, %v5348
        %v5365 = vsub.f32 %v5205, %v5349
        %v5366 = vsub.f32 %v5206, %v5350
        %v5367 = vsub.f32 %v5207, %v5351
        %v5368 = vsub.f32 %v5208, %v5352
        %v5369 = vsub.f32 %v5209, %v5353
        %v5370 = vsub.f32 %v5210, %v5354
        %v5371 = vsub.f32 %v5211, %v5355
        %v5372 = vsub.f32 %v5212, %v5356
        %v5373 = vsub.f32 %v5213, %v5357
        %v5374 = vsub.f32 %v5214, %v5358
        %v5375 = vsub.f32 %v5215, %v5359
        %v5376 = vsub.f32 %v5216, %v5360
        %v5377 = vsub.f32 %v5217, %v5361
        %v5378 = vsub.f32 %v5218, %v5362
        %v5379 = vsub.f32 %v5219, %v5363
        %v5380 = vmul.f32 %v5364, %v5364
        %v5381 = vmul.f32 %v5365, %v5365
        %v5382 = vmul.f32 %v5366, %v5366
        %v5383 = vmul.f32 %v5367, %v5367
        %v5384 = vmul.f32 %v5368, %v5368
        %v5385 = vmul.f32 %v5369, %v5369
        %v5386 = vmul.f32 %v5370, %v5370
        %v5387 = vmul.f32 %v5371, %v5371
        %v5388 = vmul.f32 %v5372, %v5372
        %v5389 = vmul.f32 %v5373, %v5373
        %v5390 = vmul.f32 %v5374, %v5374
        %v5391 = vmul.f32 %v5375, %v5375
        %v5392 = vmul.f32 %v5376, %v5376
        %v5393 = vmul.f32 %v5377, %v5377
        %v5394 = vmul.f32 %v5378, %v5378
        %v5395 = vmul.f32 %v5379, %v5379
        %5396 = vadd.xlane.f32.xlu0 %v5380
        %v5397 = vpop.xlane.xlu0 %5396
        %5398 = vadd.xlane.f32.xlu0 %v5381
        %v5399 = vpop.xlane.xlu0 %5398
        %5400 = vadd.xlane.f32.xlu0 %v5382
        %v5401 = vpop.xlane.xlu0 %5400
        %5402 = vadd.xlane.f32.xlu0 %v5383
        %v5403 = vpop.xlane.xlu0 %5402
        %5404 = vadd.xlane.f32.xlu0 %v5384
        %v5405 = vpop.xlane.xlu0 %5404
        %5406 = vadd.xlane.f32.xlu0 %v5385
        %v5407 = vpop.xlane.xlu0 %5406
        %5408 = vadd.xlane.f32.xlu0 %v5386
        %v5409 = vpop.xlane.xlu0 %5408
        %5410 = vadd.xlane.f32.xlu0 %v5387
        %v5411 = vpop.xlane.xlu0 %5410
        %5412 = vadd.xlane.f32.xlu0 %v5388
        %v5413 = vpop.xlane.xlu0 %5412
        %5414 = vadd.xlane.f32.xlu0 %v5389
        %v5415 = vpop.xlane.xlu0 %5414
        %5416 = vadd.xlane.f32.xlu0 %v5390
        %v5417 = vpop.xlane.xlu0 %5416
        %5418 = vadd.xlane.f32.xlu0 %v5391
        %v5419 = vpop.xlane.xlu0 %5418
        %5420 = vadd.xlane.f32.xlu0 %v5392
        %v5421 = vpop.xlane.xlu0 %5420
        %5422 = vadd.xlane.f32.xlu0 %v5393
        %v5423 = vpop.xlane.xlu0 %5422
        %5424 = vadd.xlane.f32.xlu0 %v5394
        %v5425 = vpop.xlane.xlu0 %5424
        %5426 = vadd.xlane.f32.xlu0 %v5395
        %v5427 = vpop.xlane.xlu0 %5426
        %v5428 = vrot.slane %v5397, 4
        %v5429 = vadd.f32 %v5397, %v5428
        %v5430 = vrot.slane %v5429, 2
        %v5431 = vadd.f32 %v5429, %v5430
        %v5432 = vrot.slane %v5431, 1
        %v5433 = vadd.f32 %v5431, %v5432
        %v5434 = vrot.slane %v5399, 4
        %v5435 = vadd.f32 %v5399, %v5434
        %v5436 = vrot.slane %v5435, 2
        %v5437 = vadd.f32 %v5435, %v5436
        %v5438 = vrot.slane %v5437, 1
        %v5439 = vadd.f32 %v5437, %v5438
        %v5440 = vrot.slane %v5401, 4
        %v5441 = vadd.f32 %v5401, %v5440
        %v5442 = vrot.slane %v5441, 2
        %v5443 = vadd.f32 %v5441, %v5442
        %v5444 = vrot.slane %v5443, 1
        %v5445 = vadd.f32 %v5443, %v5444
        %v5446 = vrot.slane %v5403, 4
        %v5447 = vadd.f32 %v5403, %v5446
        %v5448 = vrot.slane %v5447, 2
        %v5449 = vadd.f32 %v5447, %v5448
        %v5450 = vrot.slane %v5449, 1
        %v5451 = vadd.f32 %v5449, %v5450
        %v5452 = vrot.slane %v5405, 4
        %v5453 = vadd.f32 %v5405, %v5452
        %v5454 = vrot.slane %v5453, 2
        %v5455 = vadd.f32 %v5453, %v5454
        %v5456 = vrot.slane %v5455, 1
        %v5457 = vadd.f32 %v5455, %v5456
        %v5458 = vrot.slane %v5407, 4
        %v5459 = vadd.f32 %v5407, %v5458
        %v5460 = vrot.slane %v5459, 2
        %v5461 = vadd.f32 %v5459, %v5460
        %v5462 = vrot.slane %v5461, 1
        %v5463 = vadd.f32 %v5461, %v5462
        %v5464 = vrot.slane %v5409, 4
        %v5465 = vadd.f32 %v5409, %v5464
        %v5466 = vrot.slane %v5465, 2
        %v5467 = vadd.f32 %v5465, %v5466
        %v5468 = vrot.slane %v5467, 1
        %v5469 = vadd.f32 %v5467, %v5468
        %v5470 = vrot.slane %v5411, 4
        %v5471 = vadd.f32 %v5411, %v5470
        %v5472 = vrot.slane %v5471, 2
        %v5473 = vadd.f32 %v5471, %v5472
        %v5474 = vrot.slane %v5473, 1
        %v5475 = vadd.f32 %v5473, %v5474
        %v5476 = vrot.slane %v5413, 4
        %v5477 = vadd.f32 %v5413, %v5476
        %v5478 = vrot.slane %v5477, 2
        %v5479 = vadd.f32 %v5477, %v5478
        %v5480 = vrot.slane %v5479, 1
        %v5481 = vadd.f32 %v5479, %v5480
        %v5482 = vrot.slane %v5415, 4
        %v5483 = vadd.f32 %v5415, %v5482
        %v5484 = vrot.slane %v5483, 2
        %v5485 = vadd.f32 %v5483, %v5484
        %v5486 = vrot.slane %v5485, 1
        %v5487 = vadd.f32 %v5485, %v5486
        %v5488 = vrot.slane %v5417, 4
        %v5489 = vadd.f32 %v5417, %v5488
        %v5490 = vrot.slane %v5489, 2
        %v5491 = vadd.f32 %v5489, %v5490
        %v5492 = vrot.slane %v5491, 1
        %v5493 = vadd.f32 %v5491, %v5492
        %v5494 = vrot.slane %v5419, 4
        %v5495 = vadd.f32 %v5419, %v5494
        %v5496 = vrot.slane %v5495, 2
        %v5497 = vadd.f32 %v5495, %v5496
        %v5498 = vrot.slane %v5497, 1
        %v5499 = vadd.f32 %v5497, %v5498
        %v5500 = vrot.slane %v5421, 4
        %v5501 = vadd.f32 %v5421, %v5500
        %v5502 = vrot.slane %v5501, 2
        %v5503 = vadd.f32 %v5501, %v5502
        %v5504 = vrot.slane %v5503, 1
        %v5505 = vadd.f32 %v5503, %v5504
        %v5506 = vrot.slane %v5423, 4
        %v5507 = vadd.f32 %v5423, %v5506
        %v5508 = vrot.slane %v5507, 2
        %v5509 = vadd.f32 %v5507, %v5508
        %v5510 = vrot.slane %v5509, 1
        %v5511 = vadd.f32 %v5509, %v5510
        %v5512 = vrot.slane %v5425, 4
        %v5513 = vadd.f32 %v5425, %v5512
        %v5514 = vrot.slane %v5513, 2
        %v5515 = vadd.f32 %v5513, %v5514
        %v5516 = vrot.slane %v5515, 1
        %v5517 = vadd.f32 %v5515, %v5516
        %v5518 = vrot.slane %v5427, 4
        %v5519 = vadd.f32 %v5427, %v5518
        %v5520 = vrot.slane %v5519, 2
        %v5521 = vadd.f32 %v5519, %v5520
        %v5522 = vrot.slane %v5521, 1
        %v5523 = vadd.f32 %v5521, %v5522
        %v5524 = vmul.f32 %v5433, %v3316
        %v5525 = vmul.f32 %v5439, %v3316
        %v5526 = vmul.f32 %v5445, %v3316
        %v5527 = vmul.f32 %v5451, %v3316
        %v5528 = vmul.f32 %v5457, %v3316
        %v5529 = vmul.f32 %v5463, %v3316
        %v5530 = vmul.f32 %v5469, %v3316
        %v5531 = vmul.f32 %v5475, %v3316
        %v5532 = vmul.f32 %v5481, %v3316
        %v5533 = vmul.f32 %v5487, %v3316
        %v5534 = vmul.f32 %v5493, %v3316
        %v5535 = vmul.f32 %v5499, %v3316
        %v5536 = vmul.f32 %v5505, %v3316
        %v5537 = vmul.f32 %v5511, %v3316
        %v5538 = vmul.f32 %v5517, %v3316
        %v5539 = vmul.f32 %v5523, %v3316
        %v5540 = vadd.f32 %v5524, 1e-05
        %v5541 = vadd.f32 %v5525, 1e-05
        %v5542 = vadd.f32 %v5526, 1e-05
        %v5543 = vadd.f32 %v5527, 1e-05
        %v5544 = vadd.f32 %v5528, 1e-05
        %v5545 = vadd.f32 %v5529, 1e-05
        %v5546 = vadd.f32 %v5530, 1e-05
        %v5547 = vadd.f32 %v5531, 1e-05
        %v5548 = vadd.f32 %v5532, 1e-05
        %v5549 = vadd.f32 %v5533, 1e-05
        %v5550 = vadd.f32 %v5534, 1e-05
        %v5551 = vadd.f32 %v5535, 1e-05
        %v5552 = vadd.f32 %v5536, 1e-05
        %v5553 = vadd.f32 %v5537, 1e-05
        %v5554 = vadd.f32 %v5538, 1e-05
        %v5555 = vadd.f32 %v5539, 1e-05
        %v5556 = vrsqrt.pop %v5540
        %v5557 = vrsqrt.pop %v5541
        %v5558 = vrsqrt.pop %v5542
        %v5559 = vrsqrt.pop %v5543
        %v5560 = vrsqrt.pop %v5544
        %v5561 = vrsqrt.pop %v5545
        %v5562 = vrsqrt.pop %v5546
        %v5563 = vrsqrt.pop %v5547
        %v5564 = vrsqrt.pop %v5548
        %v5565 = vrsqrt.pop %v5549
        %v5566 = vrsqrt.pop %v5550
        %v5567 = vrsqrt.pop %v5551
        %v5568 = vrsqrt.pop %v5552
        %v5569 = vrsqrt.pop %v5553
        %v5570 = vrsqrt.pop %v5554
        %v5571 = vrsqrt.pop %v5555
        %v5572 = vmul.f32 %v5364, %v5556
        %v5573 = vmul.f32 %v5365, %v5557
        %v5574 = vmul.f32 %v5366, %v5558
        %v5575 = vmul.f32 %v5367, %v5559
        %v5576 = vmul.f32 %v5368, %v5560
        %v5577 = vmul.f32 %v5369, %v5561
        %v5578 = vmul.f32 %v5370, %v5562
        %v5579 = vmul.f32 %v5371, %v5563
        %v5580 = vmul.f32 %v5372, %v5564
        %v5581 = vmul.f32 %v5373, %v5565
        %v5582 = vmul.f32 %v5374, %v5566
        %v5583 = vmul.f32 %v5375, %v5567
        %v5584 = vmul.f32 %v5376, %v5568
        %v5585 = vmul.f32 %v5377, %v5569
        %v5586 = vmul.f32 %v5378, %v5570
        %v5587 = vmul.f32 %v5379, %v5571
        %v5588 = vmul.f32 %v5572, %v3594
        %v5589 = vmul.f32 %v5573, %v3594
        %v5590 = vmul.f32 %v5574, %v3594
        %v5591 = vmul.f32 %v5575, %v3594
        %v5592 = vmul.f32 %v5576, %v3594
        %v5593 = vmul.f32 %v5577, %v3594
        %v5594 = vmul.f32 %v5578, %v3594
        %v5595 = vmul.f32 %v5579, %v3594
        %v5596 = vmul.f32 %v5580, %v3594
        %v5597 = vmul.f32 %v5581, %v3594
        %v5598 = vmul.f32 %v5582, %v3594
        %v5599 = vmul.f32 %v5583, %v3594
        %v5600 = vmul.f32 %v5584, %v3594
        %v5601 = vmul.f32 %v5585, %v3594
        %v5602 = vmul.f32 %v5586, %v3594
        %v5603 = vmul.f32 %v5587, %v3594
        %v5604 = vadd.f32 %v5588, %v3595
        %v5605 = vadd.f32 %v5589, %v3595
        %v5606 = vadd.f32 %v5590, %v3595
        %v5607 = vadd.f32 %v5591, %v3595
        %v5608 = vadd.f32 %v5592, %v3595
        %v5609 = vadd.f32 %v5593, %v3595
        %v5610 = vadd.f32 %v5594, %v3595
        %v5611 = vadd.f32 %v5595, %v3595
        %v5612 = vadd.f32 %v5596, %v3595
        %v5613 = vadd.f32 %v5597, %v3595
        %v5614 = vadd.f32 %v5598, %v3595
        %v5615 = vadd.f32 %v5599, %v3595
        %v5616 = vadd.f32 %v5600, %v3595
        %v5617 = vadd.f32 %v5601, %v3595
        %v5618 = vadd.f32 %v5602, %v3595
        %v5619 = vadd.f32 %v5603, %v3595
        %5620 = vst [vmem:[%s519] sm:$0xff] %v5604
        %5621 = vst [vmem:[%s519 + $0x8] sm:$0xff] %v5605
        %5622 = vst [vmem:[%s519 + $0x10] sm:$0xff] %v5606
        %5623 = vst [vmem:[%s519 + $0x18] sm:$0xff] %v5607
        %5624 = vst [vmem:[%s519 + $0x20] sm:$0xff] %v5608
        %5625 = vst [vmem:[%s519 + $0x28] sm:$0xff] %v5609
        %5626 = vst [vmem:[%s519 + $0x30] sm:$0xff] %v5610
        %5627 = vst [vmem:[%s519 + $0x38] sm:$0xff] %v5611
        %5628 = vst [vmem:[%s519 + $0x40] sm:$0xff] %v5612
        %5629 = vst [vmem:[%s519 + $0x48] sm:$0xff] %v5613
        %5630 = vst [vmem:[%s519 + $0x50] sm:$0xff] %v5614
        %5631 = vst [vmem:[%s519 + $0x58] sm:$0xff] %v5615
        %5632 = vst [vmem:[%s519 + $0x60] sm:$0xff] %v5616
        %5633 = vst [vmem:[%s519 + $0x68] sm:$0xff] %v5617
        %5634 = vst [vmem:[%s519 + $0x70] sm:$0xff] %v5618
        %5635 = vst [vmem:[%s519 + $0x78] sm:$0xff] %v5619
        %s5636 = sand.u32 %s276, 1
        %s5637 = scalar_lea.sflag [#allocation4], %s5636
        %s5638 = sand.u32 %s276, 1
        %s5639 = smul.addr %s5638, 128
        %s5640 = scalar_lea.vmem [#allocation17], %s5639
        // Predicated region
        $region101: #{tpu_custom_call.1} parent=63 // pred_check
          %p5641 = pneg %p286
        $region102: #{tpu_custom_call.1} parent=63 // pred_check_branch
          %5643 = sbr.rel (%p5641) target = $region104
        $region103: #{tpu_custom_call.1} parent=63 // pred_region
          %s5644 = smul.u32 16, %s32
          %s5646 = ssub.s32 2048, 2048
          %5647 = vsyncadd %s5637, %s5646
          %s5648 = smul.addr %s5644, 128
          %s5649 = scalar_lea.hbm %s11, %s5648
          %s5650 = sshll.u32 %s5640, 4
          %s5651 = int_to_ptr.vmem [resolvable:$true] %s5650
          %5656 = dma.vmem_to_hbm [thread:$0]  %s5651, 2048, %s5649, %s5637, 128, 128, 8
        $region104: #{tpu_custom_call.1} parent=63 // pred_fallthru
          _
      $region64: #{tpu_custom_call.1} parent=5 // pred_fallthru
        _
      %p5657 = scmp.le.s32.totalorder 2, %s27
      // Predicated region
      $region105: #{tpu_custom_call.1} parent=5 // pred_check
        %p5658 = pneg %p5657
      $region106: #{tpu_custom_call.1} parent=5 // pred_check_branch
        %5660 = sbr.rel (%p5658) target = $region108
      $region107: #{tpu_custom_call.1} parent=5 // pred_region
        %s5661 = ssub.s32 %s27, 2
        // Predicated region
        $region109: #{tpu_custom_call.1} parent=107 // pred_check
          %p5662 = pneg %p292
        $region110: #{tpu_custom_call.1} parent=107 // pred_check_branch
          %5664 = sbr.rel (%p5662) target = $region112
        $region111: #{tpu_custom_call.1} parent=107 // pred_region
          %s5665 = sand.u32 %s277, 1
          %s5666 = scalar_lea.sflag [#allocation4], %s5665
          %s5667 = sand.u32 %s277, 1
          %s5668 = smul.addr %s5667, 128
          %s5669 = scalar_lea.vmem [#allocation17], %s5668
          %5670 = dma.done %s5666, 2048
        $region112: #{tpu_custom_call.1} parent=107 // pred_fallthru
          _
      $region108: #{tpu_custom_call.1} parent=5 // pred_fallthru
        _
    $region6: #{tpu_custom_call.1} parent=1 // loop_footer
      %s31 = sadd.s32 1, %s27
    $region7: #{tpu_custom_call.1} parent=1 // loop_footer_branch
      %26 = sbr.rel target = $region3
    $region8: #{tpu_custom_call.1} parent=1 // loop_exit
      _
    %5671 = vsyncpa [#allocation3], 1
    %s5672 = scalar_lea.sflag [#allocation3], 1
    %5673 = vsyncpa %s5672, 1
    %5674 = vsyncpa [#allocation6], 1
    %5675 = vsyncpa [#allocation9], 1
    %5676 = vsyncpa [#allocation12], 1
    %5677 = vsyncpa [#allocation15], 1
    %5678 = vsyncpa [#allocation4], 1
    %s5679 = scalar_lea.sflag [#allocation4], 1
    %5680 = vsyncpa %s5679, 1

</llo_original>
